<compile_context>
chip_gen: v5e
topology: v5e:2x2
jax: 0.10.0
libtpu: 0.0.40
codegen_flags: <defaults>
</compile_context>

<pallas_src>
import functools
import math

import jax
import jax.numpy as jnp
from jax.experimental import pallas as pl
from jax.experimental.pallas import tpu as pltpu


# ---------------------------------------------------------------------------
# Fused ResnetkBlock kernel (one grid step == one batch image)
# ---------------------------------------------------------------------------

def _resnetk_block_kernel(x_ref, w0_ref, b0_ref, w1a_ref, b1a_ref,
                          w1b_ref, b1b_ref, w1c_ref, b1c_ref,
                          wm_ref, bm_ref, o_ref, t1buf_ref, padbuf_ref,
                          *, scale):
    H, W, C = x_ref.shape[1], x_ref.shape[2], x_ref.shape[3]
    C2 = w0_ref.shape[1]
    HW = H * W
    f32 = jnp.float32
    bf16 = jnp.bfloat16

    x = x_ref[0].reshape(HW, C).astype(bf16)                       # (HW, C)

    # tower0 = relu(1x1 conv), tower1 stage a = relu(1x1 conv)
    t0 = jnp.maximum(
        jnp.dot(x, w0_ref[...], preferred_element_type=f32) + b0_ref[...], 0.0)
    t1 = jnp.maximum(
        jnp.dot(x, w1a_ref[...], preferred_element_type=f32) + b1a_ref[...], 0.0)

    # ---- tower1 stage b: (1,3) conv, padding=0 (valid width = W-2) --------
    # Stage the activation in a right-margin-padded VMEM buffer so every
    # kw-shift is a sliced LOAD and every STORE is tile-aligned.
    t1buf_ref[...] = jnp.zeros_like(t1buf_ref)
    t1buf_ref[:, 0:W, :] = t1.astype(bf16).reshape(H, W, C2)
    t1v = t1buf_ref[...]                                           # (H, W+8, C2)
    y2 = b1b_ref[...].astype(f32)
    for kw in range(3):
        y2 = y2 + jnp.dot(t1v[:, kw:kw + W, :].reshape(HW, C2),
                          w1b_ref[kw], preferred_element_type=f32)
    y2 = jnp.maximum(y2, 0.0).reshape(H, W, C2)
    # Only columns 0 .. W-3 are valid outputs of the VALID conv; zero the rest
    col = jax.lax.broadcasted_iota(jnp.int32, (H, W, C2), 1)
    y2 = jnp.where(col < W - 2, y2, 0.0)

    # ---- tower1 stage c: (3,1) conv, padding=1 in both H and W ------------
    # padbuf[1+h, 8+w'] = y2[h, w'];  the zero-padded operand for output (h,w)
    # and tap kh is then padbuf[h+kh, 7+w]  (left margin 8 keeps stores aligned).
    padbuf_ref[...] = jnp.zeros_like(padbuf_ref)
    padbuf_ref[1:H + 1, 8:8 + W, :] = y2.astype(bf16)
    padv = padbuf_ref[...]                                         # (H+2, W+8, C2)
    t1c = b1c_ref[...].astype(f32)
    for kh in range(3):
        t1c = t1c + jnp.dot(padv[kh:kh + H, 7:7 + W, :].reshape(HW, C2),
                            w1c_ref[kh], preferred_element_type=f32)
    t1c = jnp.maximum(t1c, 0.0)                                    # (HW, C2)

    # ---- conv_mix on cat([tower0, tower1], channel) as a split matmul ------
    mix = (jnp.dot(t0.astype(bf16), wm_ref[0:C2, :], preferred_element_type=f32)
           + jnp.dot(t1c.astype(bf16), wm_ref[C2:C, :], preferred_element_type=f32)
           + bm_ref[...])
    out = jnp.maximum(mix * scale, 0.0)
    o_ref[0] = out.reshape(H, W, C).astype(o_ref.dtype)


# ---------------------------------------------------------------------------
# Wrapper (NCHW in / NCHW out, like the PyTorch module)
# ---------------------------------------------------------------------------

def resnetk_block_forward(x_nchw, params, *, scale=1.0):
    B, C, H, W = x_nchw.shape
    C2 = C // 2
    assert C % 2 == 0 and W % 8 == 0 and W >= 4, "demo kernel expects W%8==0"
    x_nhwc = jnp.transpose(x_nchw, (0, 2, 3, 1))

    kernel = functools.partial(_resnetk_block_kernel, scale=scale)
    out_nhwc = pl.pallas_call(
        kernel,
        out_shape=jax.ShapeDtypeStruct((B, H, W, C), x_nchw.dtype),
        grid_spec=pltpu.PrefetchScalarGridSpec(
            num_scalar_prefetch=0,
            grid=(B,),
            in_specs=[
                pl.BlockSpec((1, H, W, C), lambda b: (b, 0, 0, 0)),   # x
                pl.BlockSpec((C, C2), lambda b: (0, 0)),              # w0
                pl.BlockSpec((1, C2), lambda b: (0, 0)),              # b0
                pl.BlockSpec((C, C2), lambda b: (0, 0)),              # w1a
                pl.BlockSpec((1, C2), lambda b: (0, 0)),              # b1a
                pl.BlockSpec((3, C2, C2), lambda b: (0, 0, 0)),       # w1b
                pl.BlockSpec((1, C2), lambda b: (0, 0)),              # b1b
                pl.BlockSpec((3, C2, C2), lambda b: (0, 0, 0)),       # w1c
                pl.BlockSpec((1, C2), lambda b: (0, 0)),              # b1c
                pl.BlockSpec((C, C), lambda b: (0, 0)),               # wm
                pl.BlockSpec((1, C), lambda b: (0, 0)),               # bm
            ],
            out_specs=pl.BlockSpec((1, H, W, C), lambda b: (b, 0, 0, 0)),
            scratch_shapes=[
                pltpu.VMEM((H, W + 8, C2), jnp.bfloat16),       # margin-padded t1
                pltpu.VMEM((H + 2, W + 8, C2), jnp.bfloat16),   # zero-padded stage-b
            ],
        ),
        compiler_params=pltpu.CompilerParams(
            dimension_semantics=("parallel",)),
    )(x_nhwc,
      params["w0"], params["b0"],
      params["w1a"], params["b1a"],
      params["w1b"], params["b1b"],
      params["w1c"], params["b1c"],
      params["wm"], params["bm"])
    return jnp.transpose(out_nhwc, (0, 3, 1, 2))


# ---------------------------------------------------------------------------
# Pure-JAX reference (f32) mirroring the PyTorch forward, for a sanity check
# ---------------------------------------------------------------------------

def resnetk_block_reference(x_nchw, params, *, scale=1.0):
    x = jnp.transpose(x_nchw, (0, 2, 3, 1)).astype(jnp.float32)
    C = x.shape[-1]
    C2 = C // 2
    dn = ("NHWC", "HWIO", "NHWC")
    hi = jax.lax.Precision.HIGHEST
    relu = lambda t: jnp.maximum(t, 0.0)
    f32 = lambda a: a.astype(jnp.float32)

    def conv(inp, w_hwio, b, padding):
        y = jax.lax.conv_general_dilated(inp, w_hwio, window_strides=(1, 1),
                                         padding=padding, dimension_numbers=dn,
                                         precision=hi)
        return y + b.reshape(1, 1, 1, -1)

    w0 = f32(params["w0"]).reshape(1, 1, C, C2)
    w1a = f32(params["w1a"]).reshape(1, 1, C, C2)
    w1b = f32(params["w1b"])[None, :, :, :]        # (1, 3, C2, C2)
    w1c = f32(params["w1c"])[:, None, :, :]        # (3, 1, C2, C2)
    wm = f32(params["wm"]).reshape(1, 1, C, C)

    t0 = relu(conv(x, w0, params["b0"], "VALID"))
    t1 = relu(conv(x, w1a, params["b1a"], "VALID"))
    t1 = relu(conv(t1, w1b, params["b1b"], "VALID"))
    t1 = relu(conv(t1, w1c, params["b1c"], ((1, 1), (1, 1))))
    mixed = jnp.concatenate([t0, t1], axis=-1)
    mix = conv(mixed, wm, params["bm"], "VALID")
    out = relu(mix * scale)
    return jnp.transpose(out, (0, 3, 1, 2))


# ---------------------------------------------------------------------------
# Deterministic synthetic parameters (bf16 weights, f32 biases)
# ---------------------------------------------------------------------------

def init_params(key, ch):
    C2 = ch // 2
    ks = jax.random.split(key, 10)

    def wb(kw_, kb_, wshape, fan_in, bshape):
        w = (jax.random.normal(kw_, wshape, jnp.float32)
             / math.sqrt(fan_in)).astype(jnp.bfloat16)
        b = jax.random.normal(kb_, bshape, jnp.float32) * 0.01
        return w, b

    w0, b0 = wb(ks[0], ks[1], (ch, C2), ch, (1, C2))
    w1a, b1a = wb(ks[2], ks[3], (ch, C2), ch, (1, C2))
    w1b, b1b = wb(ks[4], ks[5], (3, C2, C2), 3 * C2, (1, C2))
    w1c, b1c = wb(ks[6], ks[7], (3, C2, C2), 3 * C2, (1, C2))
    wm, bm = wb(ks[8], ks[9], (ch, ch), ch, (1, ch))
    return dict(w0=w0, b0=b0, w1a=w1a, b1a=b1a, w1b=w1b, b1b=b1b,
                w1c=w1c, b1c=b1c, wm=wm, bm=bm)


if __name__ == "__main__":
    key = jax.random.PRNGKey(0)
    kx, kp = jax.random.split(key)

    # Small shapes consistent with the module: (B, ch, H, W); ch even so that
    # ch//2 towers exist; 256 channels keep the towers lane-aligned (128).
    B, C, H, W = 2, 256, 16, 16
    scale = 0.5

    x = jax.random.normal(kx, (B, C, H, W), jnp.float32)   # NCHW, like PyTorch
    params = init_params(kp, C)

    fwd = jax.jit(functools.partial(resnetk_block_forward, scale=scale))
    y = jax.block_until_ready(fwd(x, params))
    assert y.shape == (B, C, H, W), y.shape
    assert bool(jnp.all(jnp.isfinite(y)))

    # Sanity check against the pure-JAX reference (loose tolerance: the kernel
    # casts activations to bf16 at each MXU dot, the reference stays f32).
    y_ref = jax.block_until_ready(
        jax.jit(functools.partial(resnetk_block_reference, scale=scale))(x, params))
    max_err = float(jnp.max(jnp.abs(y - y_ref)))
    assert max_err < 0.2, f"kernel/reference mismatch: max abs err {max_err}"

    print("KERNEL_OK")
</pallas_src>

<mosaic_0001>
module attributes {stable_mosaic.version = 11 : i64} {
  func.func @_resnetk_block_kernel(%arg0: i32, %arg1: memref<1x16x16x256xf32, #tpu.memory_space<vmem>>, %arg2: memref<256x128xbf16, #tpu.memory_space<vmem>>, %arg3: memref<1x128xf32, #tpu.memory_space<vmem>>, %arg4: memref<256x128xbf16, #tpu.memory_space<vmem>>, %arg5: memref<1x128xf32, #tpu.memory_space<vmem>>, %arg6: memref<3x128x128xbf16, #tpu.memory_space<vmem>>, %arg7: memref<1x128xf32, #tpu.memory_space<vmem>>, %arg8: memref<3x128x128xbf16, #tpu.memory_space<vmem>>, %arg9: memref<1x128xf32, #tpu.memory_space<vmem>>, %arg10: memref<256x256xbf16, #tpu.memory_space<vmem>>, %arg11: memref<1x256xf32, #tpu.memory_space<vmem>>, %arg12: memref<1x16x16x256xf32, #tpu.memory_space<vmem>>, %arg13: memref<16x24x128xbf16, #tpu.memory_space<vmem>>, %arg14: memref<18x24x128xbf16, #tpu.memory_space<vmem>>) attributes {dimension_semantics = [#tpu.dimension_semantics<parallel>], iteration_bounds = array<i64: 2>, scalar_prefetch = 0 : i64, scratch_operands = 2 : i64, tpu.core_type = #tpu.core_type<tc>, window_params = [{transform_indices = @transform_0, window_bounds = array<i64: 1, 16, 16, 256>}, {pipeline_mode = #tpu.pipeline_mode<synchronous>, transform_indices = @transform_1, window_bounds = array<i64: 256, 128>}, {pipeline_mode = #tpu.pipeline_mode<synchronous>, transform_indices = @transform_2, window_bounds = array<i64: 1, 128>}, {pipeline_mode = #tpu.pipeline_mode<synchronous>, transform_indices = @transform_3, window_bounds = array<i64: 256, 128>}, {pipeline_mode = #tpu.pipeline_mode<synchronous>, transform_indices = @transform_4, window_bounds = array<i64: 1, 128>}, {pipeline_mode = #tpu.pipeline_mode<synchronous>, transform_indices = @transform_5, window_bounds = array<i64: 3, 128, 128>}, {pipeline_mode = #tpu.pipeline_mode<synchronous>, transform_indices = @transform_6, window_bounds = array<i64: 1, 128>}, {pipeline_mode = #tpu.pipeline_mode<synchronous>, transform_indices = @transform_7, window_bounds = array<i64: 3, 128, 128>}, {pipeline_mode = #tpu.pipeline_mode<synchronous>, transform_indices = @transform_8, window_bounds = array<i64: 1, 128>}, {pipeline_mode = #tpu.pipeline_mode<synchronous>, transform_indices = @transform_9, window_bounds = array<i64: 256, 256>}, {pipeline_mode = #tpu.pipeline_mode<synchronous>, transform_indices = @transform_10, window_bounds = array<i64: 1, 256>}, {transform_indices = @transform_11, window_bounds = array<i64: 1, 16, 16, 256>}]} {
    %c0 = arith.constant 0 : index
    %c0_0 = arith.constant 0 : index
    %c0_1 = arith.constant 0 : index
    %c0_2 = arith.constant 0 : index
    %0 = vector.load %arg1[%c0, %c0_0, %c0_1, %c0_2] : memref<1x16x16x256xf32, #tpu.memory_space<vmem>>, vector<1x16x16x256xf32>
    %1 = vector.shape_cast %0 : vector<1x16x16x256xf32> to vector<16x16x256xf32>
    %2 = vector.shape_cast %1 : vector<16x16x256xf32> to vector<256x256xf32>
    %3 = arith.truncf %2 : vector<256x256xf32> to vector<256x256xbf16>
    %c0_3 = arith.constant 0 : index
    %c0_4 = arith.constant 0 : index
    %4 = vector.load %arg2[%c0_3, %c0_4] : memref<256x128xbf16, #tpu.memory_space<vmem>>, vector<256x128xbf16>
    %cst = arith.constant dense<0.000000e+00> : vector<256x128xf32>
    %5 = tpu.matmul %3, %4, %cst {dimension_numbers = #tpu.dot_dimension_numbers<[1], [0], [0], [1], [0, 0, 1, 1], [], []>} : vector<256x256xbf16>, vector<256x128xbf16>, vector<256x128xf32> -> vector<256x128xf32>
    %c0_5 = arith.constant 0 : index
    %c0_6 = arith.constant 0 : index
    %6 = vector.load %arg3[%c0_5, %c0_6] : memref<1x128xf32, #tpu.memory_space<vmem>>, vector<1x128xf32>
    %7 = vector.broadcast %6 : vector<1x128xf32> to vector<256x128xf32>
    %8 = arith.addf %5, %7 : vector<256x128xf32>
    %cst_7 = arith.constant 0.000000e+00 : f32
    %9 = vector.broadcast %cst_7 : f32 to vector<256x128xf32>
    %10 = arith.maximumf %8, %9 : vector<256x128xf32>
    %c0_8 = arith.constant 0 : index
    %c0_9 = arith.constant 0 : index
    %11 = vector.load %arg4[%c0_8, %c0_9] : memref<256x128xbf16, #tpu.memory_space<vmem>>, vector<256x128xbf16>
    %cst_10 = arith.constant dense<0.000000e+00> : vector<256x128xf32>
    %12 = tpu.matmul %3, %11, %cst_10 {dimension_numbers = #tpu.dot_dimension_numbers<[1], [0], [0], [1], [0, 0, 1, 1], [], []>} : vector<256x256xbf16>, vector<256x128xbf16>, vector<256x128xf32> -> vector<256x128xf32>
    %c0_11 = arith.constant 0 : index
    %c0_12 = arith.constant 0 : index
    %13 = vector.load %arg5[%c0_11, %c0_12] : memref<1x128xf32, #tpu.memory_space<vmem>>, vector<1x128xf32>
    %14 = vector.broadcast %13 : vector<1x128xf32> to vector<256x128xf32>
    %15 = arith.addf %12, %14 : vector<256x128xf32>
    %cst_13 = arith.constant 0.000000e+00 : f32
    %16 = vector.broadcast %cst_13 : f32 to vector<256x128xf32>
    %17 = arith.maximumf %15, %16 : vector<256x128xf32>
    %cst_14 = arith.constant 0.000000e+00 : bf16
    %18 = vector.broadcast %cst_14 : bf16 to vector<16x24x128xbf16>
    %c0_15 = arith.constant 0 : index
    %c0_16 = arith.constant 0 : index
    %c0_17 = arith.constant 0 : index
    %19 = vector.load %arg13[%c0_15, %c0_16, %c0_17] : memref<16x24x128xbf16, #tpu.memory_space<vmem>>, vector<16x24x128xbf16>
    tpu.vector_store %arg13[%c0_15, %c0_16, %c0_17], %18 {strides = array<i32>} : memref<16x24x128xbf16, #tpu.memory_space<vmem>>, vector<16x24x128xbf16>,
    %20 = arith.truncf %17 : vector<256x128xf32> to vector<256x128xbf16>
    %21 = vector.shape_cast %20 : vector<256x128xbf16> to vector<16x16x128xbf16>
    %c0_18 = arith.constant 0 : index
    %c0_19 = arith.constant 0 : index
    %c0_20 = arith.constant 0 : index
    %22 = vector.load %arg13[%c0_18, %c0_19, %c0_20] : memref<16x24x128xbf16, #tpu.memory_space<vmem>>, vector<16x16x128xbf16>
    tpu.vector_store %arg13[%c0_18, %c0_19, %c0_20], %21 {strides = array<i32>} : memref<16x24x128xbf16, #tpu.memory_space<vmem>>, vector<16x16x128xbf16>,
    %c0_21 = arith.constant 0 : index
    %c0_22 = arith.constant 0 : index
    %c0_23 = arith.constant 0 : index
    %23 = vector.load %arg13[%c0_21, %c0_22, %c0_23] : memref<16x24x128xbf16, #tpu.memory_space<vmem>>, vector<16x24x128xbf16>
    %c0_24 = arith.constant 0 : index
    %c0_25 = arith.constant 0 : index
    %24 = vector.load %arg7[%c0_24, %c0_25] : memref<1x128xf32, #tpu.memory_space<vmem>>, vector<1x128xf32>
    %25 = vector.extract_strided_slice %23 {offsets = [0, 0, 0], sizes = [16, 16, 128], strides = [1, 1, 1]} : vector<16x24x128xbf16> to vector<16x16x128xbf16>
    %26 = vector.shape_cast %25 : vector<16x16x128xbf16> to vector<256x128xbf16>
    %c0_26 = arith.constant 0 : index
    %c0_27 = arith.constant 0 : index
    %c0_28 = arith.constant 0 : index
    %27 = vector.load %arg6[%c0_26, %c0_27, %c0_28] : memref<3x128x128xbf16, #tpu.memory_space<vmem>>, vector<1x128x128xbf16>
    %28 = vector.shape_cast %27 : vector<1x128x128xbf16> to vector<128x128xbf16>
    %cst_29 = arith.constant dense<0.000000e+00> : vector<256x128xf32>
    %29 = tpu.matmul %26, %28, %cst_29 {dimension_numbers = #tpu.dot_dimension_numbers<[1], [0], [0], [1], [0, 0, 1, 1], [], []>} : vector<256x128xbf16>, vector<128x128xbf16>, vector<256x128xf32> -> vector<256x128xf32>
    %30 = vector.broadcast %24 : vector<1x128xf32> to vector<256x128xf32>
    %31 = arith.addf %30, %29 : vector<256x128xf32>
    %32 = vector.extract_strided_slice %23 {offsets = [0, 1, 0], sizes = [16, 16, 128], strides = [1, 1, 1]} : vector<16x24x128xbf16> to vector<16x16x128xbf16>
    %33 = vector.shape_cast %32 : vector<16x16x128xbf16> to vector<256x128xbf16>
    %c1 = arith.constant 1 : index
    %c0_30 = arith.constant 0 : index
    %c0_31 = arith.constant 0 : index
    %34 = vector.load %arg6[%c1, %c0_30, %c0_31] : memref<3x128x128xbf16, #tpu.memory_space<vmem>>, vector<1x128x128xbf16>
    %35 = vector.shape_cast %34 : vector<1x128x128xbf16> to vector<128x128xbf16>
    %cst_32 = arith.constant dense<0.000000e+00> : vector<256x128xf32>
    %36 = tpu.matmul %33, %35, %cst_32 {dimension_numbers = #tpu.dot_dimension_numbers<[1], [0], [0], [1], [0, 0, 1, 1], [], []>} : vector<256x128xbf16>, vector<128x128xbf16>, vector<256x128xf32> -> vector<256x128xf32>
    %37 = arith.addf %31, %36 : vector<256x128xf32>
    %38 = vector.extract_strided_slice %23 {offsets = [0, 2, 0], sizes = [16, 16, 128], strides = [1, 1, 1]} : vector<16x24x128xbf16> to vector<16x16x128xbf16>
    %39 = vector.shape_cast %38 : vector<16x16x128xbf16> to vector<256x128xbf16>
    %c2 = arith.constant 2 : index
    %c0_33 = arith.constant 0 : index
    %c0_34 = arith.constant 0 : index
    %40 = vector.load %arg6[%c2, %c0_33, %c0_34] : memref<3x128x128xbf16, #tpu.memory_space<vmem>>, vector<1x128x128xbf16>
    %41 = vector.shape_cast %40 : vector<1x128x128xbf16> to vector<128x128xbf16>
    %cst_35 = arith.constant dense<0.000000e+00> : vector<256x128xf32>
    %42 = tpu.matmul %39, %41, %cst_35 {dimension_numbers = #tpu.dot_dimension_numbers<[1], [0], [0], [1], [0, 0, 1, 1], [], []>} : vector<256x128xbf16>, vector<128x128xbf16>, vector<256x128xf32> -> vector<256x128xf32>
    %43 = arith.addf %37, %42 : vector<256x128xf32>
    %cst_36 = arith.constant 0.000000e+00 : f32
    %44 = vector.broadcast %cst_36 : f32 to vector<256x128xf32>
    %45 = arith.maximumf %43, %44 : vector<256x128xf32>
    %46 = vector.shape_cast %45 : vector<256x128xf32> to vector<16x16x128xf32>
    %47 = tpu.iota {dimensions = array<i32: 1>} : vector<16x16x128xi32>
    %c14_i32 = arith.constant 14 : i32
    %48 = vector.broadcast %c14_i32 : i32 to vector<16x16x128xi32>
    %49 = arith.cmpi slt, %47, %48 : vector<16x16x128xi32>
    %cst_37 = arith.constant 0.000000e+00 : f32
    %50 = vector.broadcast %cst_37 : f32 to vector<16x16x128xf32>
    %51 = arith.select %49, %46, %50 : vector<16x16x128xi1>, vector<16x16x128xf32>
    %cst_38 = arith.constant 0.000000e+00 : bf16
    %52 = vector.broadcast %cst_38 : bf16 to vector<18x24x128xbf16>
    %c0_39 = arith.constant 0 : index
    %c0_40 = arith.constant 0 : index
    %c0_41 = arith.constant 0 : index
    %53 = vector.load %arg14[%c0_39, %c0_40, %c0_41] : memref<18x24x128xbf16, #tpu.memory_space<vmem>>, vector<18x24x128xbf16>
    tpu.vector_store %arg14[%c0_39, %c0_40, %c0_41], %52 {strides = array<i32>} : memref<18x24x128xbf16, #tpu.memory_space<vmem>>, vector<18x24x128xbf16>,
    %54 = arith.truncf %51 : vector<16x16x128xf32> to vector<16x16x128xbf16>
    %c1_42 = arith.constant 1 : index
    %c8 = arith.constant 8 : index
    %c0_43 = arith.constant 0 : index
    %55 = vector.load %arg14[%c1_42, %c8, %c0_43] : memref<18x24x128xbf16, #tpu.memory_space<vmem>>, vector<16x16x128xbf16>
    tpu.vector_store %arg14[%c1_42, %c8, %c0_43], %54 {strides = array<i32>} : memref<18x24x128xbf16, #tpu.memory_space<vmem>>, vector<16x16x128xbf16>,
    %c0_44 = arith.constant 0 : index
    %c0_45 = arith.constant 0 : index
    %c0_46 = arith.constant 0 : index
    %56 = vector.load %arg14[%c0_44, %c0_45, %c0_46] : memref<18x24x128xbf16, #tpu.memory_space<vmem>>, vector<18x24x128xbf16>
    %c0_47 = arith.constant 0 : index
    %c0_48 = arith.constant 0 : index
    %57 = vector.load %arg9[%c0_47, %c0_48] : memref<1x128xf32, #tpu.memory_space<vmem>>, vector<1x128xf32>
    %58 = vector.extract_strided_slice %56 {offsets = [0, 7, 0], sizes = [16, 16, 128], strides = [1, 1, 1]} : vector<18x24x128xbf16> to vector<16x16x128xbf16>
    %59 = vector.shape_cast %58 : vector<16x16x128xbf16> to vector<256x128xbf16>
    %c0_49 = arith.constant 0 : index
    %c0_50 = arith.constant 0 : index
    %c0_51 = arith.constant 0 : index
    %60 = vector.load %arg8[%c0_49, %c0_50, %c0_51] : memref<3x128x128xbf16, #tpu.memory_space<vmem>>, vector<1x128x128xbf16>
    %61 = vector.shape_cast %60 : vector<1x128x128xbf16> to vector<128x128xbf16>
    %cst_52 = arith.constant dense<0.000000e+00> : vector<256x128xf32>
    %62 = tpu.matmul %59, %61, %cst_52 {dimension_numbers = #tpu.dot_dimension_numbers<[1], [0], [0], [1], [0, 0, 1, 1], [], []>} : vector<256x128xbf16>, vector<128x128xbf16>, vector<256x128xf32> -> vector<256x128xf32>
    %63 = vector.broadcast %57 : vector<1x128xf32> to vector<256x128xf32>
    %64 = arith.addf %63, %62 : vector<256x128xf32>
    %65 = vector.extract_strided_slice %56 {offsets = [1, 7, 0], sizes = [16, 16, 128], strides = [1, 1, 1]} : vector<18x24x128xbf16> to vector<16x16x128xbf16>
    %66 = vector.shape_cast %65 : vector<16x16x128xbf16> to vector<256x128xbf16>
    %c1_53 = arith.constant 1 : index
    %c0_54 = arith.constant 0 : index
    %c0_55 = arith.constant 0 : index
    %67 = vector.load %arg8[%c1_53, %c0_54, %c0_55] : memref<3x128x128xbf16, #tpu.memory_space<vmem>>, vector<1x128x128xbf16>
    %68 = vector.shape_cast %67 : vector<1x128x128xbf16> to vector<128x128xbf16>
    %cst_56 = arith.constant dense<0.000000e+00> : vector<256x128xf32>
    %69 = tpu.matmul %66, %68, %cst_56 {dimension_numbers = #tpu.dot_dimension_numbers<[1], [0], [0], [1], [0, 0, 1, 1], [], []>} : vector<256x128xbf16>, vector<128x128xbf16>, vector<256x128xf32> -> vector<256x128xf32>
    %70 = arith.addf %64, %69 : vector<256x128xf32>
    %71 = vector.extract_strided_slice %56 {offsets = [2, 7, 0], sizes = [16, 16, 128], strides = [1, 1, 1]} : vector<18x24x128xbf16> to vector<16x16x128xbf16>
    %72 = vector.shape_cast %71 : vector<16x16x128xbf16> to vector<256x128xbf16>
    %c2_57 = arith.constant 2 : index
    %c0_58 = arith.constant 0 : index
    %c0_59 = arith.constant 0 : index
    %73 = vector.load %arg8[%c2_57, %c0_58, %c0_59] : memref<3x128x128xbf16, #tpu.memory_space<vmem>>, vector<1x128x128xbf16>
    %74 = vector.shape_cast %73 : vector<1x128x128xbf16> to vector<128x128xbf16>
    %cst_60 = arith.constant dense<0.000000e+00> : vector<256x128xf32>
    %75 = tpu.matmul %72, %74, %cst_60 {dimension_numbers = #tpu.dot_dimension_numbers<[1], [0], [0], [1], [0, 0, 1, 1], [], []>} : vector<256x128xbf16>, vector<128x128xbf16>, vector<256x128xf32> -> vector<256x128xf32>
    %76 = arith.addf %70, %75 : vector<256x128xf32>
    %cst_61 = arith.constant 0.000000e+00 : f32
    %77 = vector.broadcast %cst_61 : f32 to vector<256x128xf32>
    %78 = arith.maximumf %76, %77 : vector<256x128xf32>
    %79 = arith.truncf %10 : vector<256x128xf32> to vector<256x128xbf16>
    %c0_62 = arith.constant 0 : index
    %c0_63 = arith.constant 0 : index
    %80 = vector.load %arg10[%c0_62, %c0_63] : memref<256x256xbf16, #tpu.memory_space<vmem>>, vector<128x256xbf16>
    %cst_64 = arith.constant dense<0.000000e+00> : vector<256x256xf32>
    %81 = tpu.matmul %79, %80, %cst_64 {dimension_numbers = #tpu.dot_dimension_numbers<[1], [0], [0], [1], [0, 0, 1, 1], [], []>} : vector<256x128xbf16>, vector<128x256xbf16>, vector<256x256xf32> -> vector<256x256xf32>
    %82 = arith.truncf %78 : vector<256x128xf32> to vector<256x128xbf16>
    %c128 = arith.constant 128 : index
    %c0_65 = arith.constant 0 : index
    %83 = vector.load %arg10[%c128, %c0_65] : memref<256x256xbf16, #tpu.memory_space<vmem>>, vector<128x256xbf16>
    %cst_66 = arith.constant dense<0.000000e+00> : vector<256x256xf32>
    %84 = tpu.matmul %82, %83, %cst_66 {dimension_numbers = #tpu.dot_dimension_numbers<[1], [0], [0], [1], [0, 0, 1, 1], [], []>} : vector<256x128xbf16>, vector<128x256xbf16>, vector<256x256xf32> -> vector<256x256xf32>
    %85 = arith.addf %81, %84 : vector<256x256xf32>
    %c0_67 = arith.constant 0 : index
    %c0_68 = arith.constant 0 : index
    %86 = vector.load %arg11[%c0_67, %c0_68] : memref<1x256xf32, #tpu.memory_space<vmem>>, vector<1x256xf32>
    %87 = vector.broadcast %86 : vector<1x256xf32> to vector<256x256xf32>
    %88 = arith.addf %85, %87 : vector<256x256xf32>
    %cst_69 = arith.constant 5.000000e-01 : f32
    %89 = vector.broadcast %cst_69 : f32 to vector<256x256xf32>
    %90 = arith.mulf %88, %89 : vector<256x256xf32>
    %cst_70 = arith.constant 0.000000e+00 : f32
    %91 = vector.broadcast %cst_70 : f32 to vector<256x256xf32>
    %92 = arith.maximumf %90, %91 : vector<256x256xf32>
    %93 = vector.shape_cast %92 : vector<256x256xf32> to vector<16x16x256xf32>
    %c0_71 = arith.constant 0 : index
    %c0_72 = arith.constant 0 : index
    %c0_73 = arith.constant 0 : index
    %c0_74 = arith.constant 0 : index
    %94 = vector.load %arg12[%c0_71, %c0_72, %c0_73, %c0_74] : memref<1x16x16x256xf32, #tpu.memory_space<vmem>>, vector<1x16x16x256xf32>
    %95 = vector.shape_cast %94 : vector<1x16x16x256xf32> to vector<16x16x256xf32>
    %96 = vector.shape_cast %93 : vector<16x16x256xf32> to vector<1x16x16x256xf32>
    tpu.vector_store %arg12[%c0_71, %c0_72, %c0_73, %c0_74], %96 {strides = array<i32>} : memref<1x16x16x256xf32, #tpu.memory_space<vmem>>, vector<1x16x16x256xf32>,
    return
  }
  func.func @transform_0(%arg0: i32) -> (i32, i32, i32, i32) {
    %c0_i32 = arith.constant 0 : i32
    %c0_i32_0 = arith.constant 0 : i32
    %c0_i32_1 = arith.constant 0 : i32
    %c0_i32_2 = arith.constant 0 : i32
    return %arg0, %c0_i32, %c0_i32_0, %c0_i32_1 : i32, i32, i32, i32
  }
  func.func @transform_1(%arg0: i32) -> (i32, i32) {
    %c0_i32 = arith.constant 0 : i32
    %c0_i32_0 = arith.constant 0 : i32
    %c0_i32_1 = arith.constant 0 : i32
    return %c0_i32, %c0_i32_0 : i32, i32
  }
  func.func @transform_2(%arg0: i32) -> (i32, i32) {
    %c0_i32 = arith.constant 0 : i32
    %c0_i32_0 = arith.constant 0 : i32
    %c0_i32_1 = arith.constant 0 : i32
    return %c0_i32, %c0_i32_0 : i32, i32
  }
  func.func @transform_3(%arg0: i32) -> (i32, i32) {
    %c0_i32 = arith.constant 0 : i32
    %c0_i32_0 = arith.constant 0 : i32
    %c0_i32_1 = arith.constant 0 : i32
    return %c0_i32, %c0_i32_0 : i32, i32
  }
  func.func @transform_4(%arg0: i32) -> (i32, i32) {
    %c0_i32 = arith.constant 0 : i32
    %c0_i32_0 = arith.constant 0 : i32
    %c0_i32_1 = arith.constant 0 : i32
    return %c0_i32, %c0_i32_0 : i32, i32
  }
  func.func @transform_5(%arg0: i32) -> (i32, i32, i32) {
    %c0_i32 = arith.constant 0 : i32
    %c0_i32_0 = arith.constant 0 : i32
    %c0_i32_1 = arith.constant 0 : i32
    %c0_i32_2 = arith.constant 0 : i32
    return %c0_i32, %c0_i32_0, %c0_i32_1 : i32, i32, i32
  }
  func.func @transform_6(%arg0: i32) -> (i32, i32) {
    %c0_i32 = arith.constant 0 : i32
    %c0_i32_0 = arith.constant 0 : i32
    %c0_i32_1 = arith.constant 0 : i32
    return %c0_i32, %c0_i32_0 : i32, i32
  }
  func.func @transform_7(%arg0: i32) -> (i32, i32, i32) {
    %c0_i32 = arith.constant 0 : i32
    %c0_i32_0 = arith.constant 0 : i32
    %c0_i32_1 = arith.constant 0 : i32
    %c0_i32_2 = arith.constant 0 : i32
    return %c0_i32, %c0_i32_0, %c0_i32_1 : i32, i32, i32
  }
  func.func @transform_8(%arg0: i32) -> (i32, i32) {
    %c0_i32 = arith.constant 0 : i32
    %c0_i32_0 = arith.constant 0 : i32
    %c0_i32_1 = arith.constant 0 : i32
    return %c0_i32, %c0_i32_0 : i32, i32
  }
  func.func @transform_9(%arg0: i32) -> (i32, i32) {
    %c0_i32 = arith.constant 0 : i32
    %c0_i32_0 = arith.constant 0 : i32
    %c0_i32_1 = arith.constant 0 : i32
    return %c0_i32, %c0_i32_0 : i32, i32
  }
  func.func @transform_10(%arg0: i32) -> (i32, i32) {
    %c0_i32 = arith.constant 0 : i32
    %c0_i32_0 = arith.constant 0 : i32
    %c0_i32_1 = arith.constant 0 : i32
    return %c0_i32, %c0_i32_0 : i32, i32
  }
  func.func @transform_11(%arg0: i32) -> (i32, i32, i32, i32) {
    %c0_i32 = arith.constant 0 : i32
    %c0_i32_0 = arith.constant 0 : i32
    %c0_i32_1 = arith.constant 0 : i32
    %c0_i32_2 = arith.constant 0 : i32
    return %arg0, %c0_i32, %c0_i32_0, %c0_i32_1 : i32, i32, i32, i32
  }
}

</mosaic_0001>

<llo_original>
// kernel: resnetk_block_forward.1
$region0: #{resnetk_block_forward.1}
  #allocation0 [shape = 'u32[]', space=smem, size = 0x4, offset = 0x4, fixed_abs, tag = 'smem constant byte address 0x4 - core index']
  #allocation1 [shape = 'u32[72,128]{1,0:T(1,128)}', space=vmem, size = 0x9000, scoped, tag = 'internal scratch']
  #allocation2 [shape = 'bf16[16,24,128]{2,1,0:T(8,128)(2,1)}', space=vmem, size = 0x18000, scoped, tag = 'scratch operand']
  #allocation3 [shape = 'bf16[18,24,128]{2,1,0:T(8,128)(2,1)}', space=vmem, size = 0x1b000, scoped, tag = 'scratch operand']
  %s0 = inlined_call_operand.hbm [shape: f32[2,16,16,256], index: 0, kind: input, shape index: {}]
  %s1 = inlined_call_operand.hbm [shape: bf16[256,128], index: 1, kind: input, shape index: {}]
  %s2 = inlined_call_operand.vmem [shape: f32[1,128], index: 2, kind: input, shape index: {}]
  %s3 = inlined_call_operand.hbm [shape: bf16[256,128], index: 3, kind: input, shape index: {}]
  %s4 = inlined_call_operand.hbm [shape: f32[1,128], index: 4, kind: input, shape index: {}]
  %s5 = inlined_call_operand.hbm [shape: bf16[3,128,128], index: 5, kind: input, shape index: {}]
  %s6 = inlined_call_operand.hbm [shape: f32[1,128], index: 6, kind: input, shape index: {}]
  %s7 = inlined_call_operand.hbm [shape: bf16[3,128,128], index: 7, kind: input, shape index: {}]
  %s8 = inlined_call_operand.vmem [shape: f32[1,128], index: 8, kind: input, shape index: {}]
  %s9 = inlined_call_operand.hbm [shape: bf16[256,256], index: 9, kind: input, shape index: {}]
  %s10 = inlined_call_operand.vmem [shape: f32[1,256], index: 10, kind: input, shape index: {}]
  %s11 = inlined_call_operand.hbm [shape: f32[2,16,16,256], index: 11, kind: output, shape index: {}]
  %s12 = sld [smem:[#allocation0]]
  $region109: #{resnetk_block_forward.1} parent=0
    _
  %s14 = ssub.s32 1, %s12
  %s15 = scalar_select 0, %s14, %s12
  $region1: #{resnetk_block_forward.1} parent=0
    #allocation4 [shape = 'u8[524288]{0}', space=vmem, size = 0x80000, scoped, tag = 'input window, operand 0']
    #allocation5 [shape = 's32[2]{0}', space=sflag, size = 0x8, scoped, tag = 'scoped memory for resnetk_block_forward.1']
    #allocation6 [shape = 's32[2]{0}', space=sflag, size = 0x8, scoped, tag = 'scoped memory for resnetk_block_forward.1']
    #allocation7 [shape = 'u8[65536]{0}', space=vmem, size = 0x10000, scoped, tag = 'input window, operand 1, single buffered']
    #allocation8 [shape = 's32[1]{0}', space=sflag, size = 0x4, scoped, tag = 'scoped memory for resnetk_block_forward.1']
    #allocation9 [shape = 'u8[65536]{0}', space=vmem, size = 0x10000, scoped, tag = 'input window, operand 3, single buffered']
    #allocation10 [shape = 'u8[512]{0}', space=vmem, size = 0x400, scoped, tag = 'input window, operand 4, single buffered']
    #allocation11 [shape = 's32[1]{0}', space=sflag, size = 0x4, scoped, tag = 'scoped memory for resnetk_block_forward.1']
    #allocation12 [shape = 'u8[98304]{0}', space=vmem, size = 0x18000, scoped, tag = 'input window, operand 5, single buffered']
    #allocation13 [shape = 'u8[512]{0}', space=vmem, size = 0x400, scoped, tag = 'input window, operand 6, single buffered']
    #allocation14 [shape = 's32[1]{0}', space=sflag, size = 0x4, scoped, tag = 'scoped memory for resnetk_block_forward.1']
    #allocation15 [shape = 'u8[98304]{0}', space=vmem, size = 0x18000, scoped, tag = 'input window, operand 7, single buffered']
    #allocation16 [shape = 'u8[131072]{0}', space=vmem, size = 0x20000, scoped, tag = 'input window, operand 9, single buffered']
    #allocation17 [shape = 's32[1]{0}', space=sflag, size = 0x4, scoped, tag = 'scoped memory for resnetk_block_forward.1']
    #allocation18 [shape = 'u8[524288]{0}', space=vmem, size = 0x80000, scoped, tag = 'output window, operand 0']
    %16 = vsyncpa [#allocation5], 0
    %s17 = scalar_lea.sflag [#allocation5], 1
    %18 = vsyncpa %s17, 0
    %19 = vsyncpa [#allocation8], 0
    %20 = vsyncpa [#allocation11], 0
    %21 = vsyncpa [#allocation14], 0
    %22 = vsyncpa [#allocation17], 0
    %23 = vsyncpa [#allocation6], 0
    %s24 = scalar_lea.sflag [#allocation6], 1
    %25 = vsyncpa %s24, 0
    loop: start=0, step=1, limit=4
    $region2: #{resnetk_block_forward.1} parent=1 // loop_pre_header
      _
    $region3: #{resnetk_block_forward.1} parent=1 // loop_header
      %s27 = sphi 0, %s31
      %p28 = scmp.ge.s32.totalorder %s27, 4
      %s37 = sphi 0, %s39
      %s40 = sphi 0, %s37
      %s41 = sphi 0, %s40
      %s57 = sphi 0, %s41
      %s61 = sphi 0, %s61
      %s63 = sphi 0, %s61
      %s64 = sphi 0, %s63
      %s78 = sphi 0, %s64
      %s82 = sphi 0, %s82
      %s84 = sphi 0, %s82
      %s85 = sphi 0, %s84
      %s99 = sphi 0, %s85
      %s103 = sphi 0, %s103
      %s105 = sphi 0, %s103
      %s106 = sphi 0, %s105
      %s120 = sphi 0, %s106
      %s124 = sphi 0, %s124
      %s126 = sphi 0, %s124
      %s127 = sphi 0, %s126
      %s141 = sphi 0, %s127
      %s145 = sphi 0, %s145
      %s147 = sphi 0, %s145
      %s148 = sphi 0, %s147
      %s162 = sphi 0, %s148
      %s166 = sphi 0, %s166
      %s168 = sphi 0, %s166
      %s169 = sphi 0, %s168
      %s183 = sphi 0, %s169
      %s187 = sphi 0, %s187
      %s189 = sphi 0, %s187
      %s190 = sphi 0, %s189
      %s204 = sphi 0, %s190
      %s208 = sphi 0, %s208
      %s210 = sphi 0, %s208
      %s211 = sphi 0, %s210
      %s225 = sphi 0, %s211
      %s229 = sphi 0, %s229
      %s231 = sphi 0, %s229
      %s232 = sphi 0, %s231
      %s246 = sphi 0, %s232
      %s250 = sphi 0, %s250
      %s252 = sphi 0, %s250
      %s253 = sphi 0, %s252
      %s267 = sphi 0, %s253
      %s273 = sphi 0, %s275
      %s276 = sphi 0, %s273
      %s277 = sphi 0, %s276
      %s293 = sphi 0, %s277
    $region4: #{resnetk_block_forward.1} parent=1 // loop_header_branch
      %30 = sbr.rel (%p28) target = $region8
    $region5: #{resnetk_block_forward.1} parent=1 // loop_body
      %s32 = ssub.s32 %s27, 1
      %s33 = ssub.s32 %s27, 2
      %s34 = sadd.s32 %s27, 1
      %s35 = ssub.s32 %s27, %s34
      %p36 = scmp.eq.s32.totalorder %s35, 0
      %s38 = sadd.s32 %s37, 1
      %s39 = scalar_select %p36, %s37, %s38
      %p42 = pneg %p36
      %p43 = scmp.eq.s32.totalorder %s27, 1
      %p44 = por %p42, %p43
      %p45 = scmp.ne.s32.totalorder %s37, %s40
      %p46 = scmp.eq.s32.totalorder %s27, 0
      %p47 = por %p45, %p46
      %p48 = scmp.ne.s32.totalorder %s37, %s40
      %p49 = scmp.eq.s32.totalorder %s32, 1
      %p50 = por %p48, %p49
      %p51 = scmp.ne.s32.totalorder %s40, %s41
      %p52 = scmp.eq.s32.totalorder %s32, 0
      %p53 = por %p51, %p52
      %p54 = scmp.ne.s32.totalorder %s40, %s41
      %p55 = scmp.eq.s32.totalorder %s33, 1
      %p56 = por %p54, %p55
      %p58 = scmp.ne.s32.totalorder %s41, %s57
      %p59 = scmp.eq.s32.totalorder %s33, 0
      %p60 = por %p58, %p59
      %s62 = sadd.s32 %s61, 1
      %p65 = scmp.eq.s32.totalorder %s27, 1
      %p66 = scmp.ne.s32.totalorder %s61, %s63
      %p67 = scmp.eq.s32.totalorder %s27, 0
      %p68 = por %p66, %p67
      %p69 = scmp.ne.s32.totalorder %s61, %s63
      %p70 = scmp.eq.s32.totalorder %s32, 1
      %p71 = por %p69, %p70
      %p72 = scmp.ne.s32.totalorder %s63, %s64
      %p73 = scmp.eq.s32.totalorder %s32, 0
      %p74 = por %p72, %p73
      %p75 = scmp.ne.s32.totalorder %s63, %s64
      %p76 = scmp.eq.s32.totalorder %s33, 1
      %p77 = por %p75, %p76
      %p79 = scmp.ne.s32.totalorder %s64, %s78
      %p80 = scmp.eq.s32.totalorder %s33, 0
      %p81 = por %p79, %p80
      %s83 = sadd.s32 %s82, 1
      %p86 = scmp.eq.s32.totalorder %s27, 1
      %p87 = scmp.ne.s32.totalorder %s82, %s84
      %p88 = scmp.eq.s32.totalorder %s27, 0
      %p89 = por %p87, %p88
      %p90 = scmp.ne.s32.totalorder %s82, %s84
      %p91 = scmp.eq.s32.totalorder %s32, 1
      %p92 = por %p90, %p91
      %p93 = scmp.ne.s32.totalorder %s84, %s85
      %p94 = scmp.eq.s32.totalorder %s32, 0
      %p95 = por %p93, %p94
      %p96 = scmp.ne.s32.totalorder %s84, %s85
      %p97 = scmp.eq.s32.totalorder %s33, 1
      %p98 = por %p96, %p97
      %p100 = scmp.ne.s32.totalorder %s85, %s99
      %p101 = scmp.eq.s32.totalorder %s33, 0
      %p102 = por %p100, %p101
      %s104 = sadd.s32 %s103, 1
      %p107 = scmp.eq.s32.totalorder %s27, 1
      %p108 = scmp.ne.s32.totalorder %s103, %s105
      %p109 = scmp.eq.s32.totalorder %s27, 0
      %p110 = por %p108, %p109
      %p111 = scmp.ne.s32.totalorder %s103, %s105
      %p112 = scmp.eq.s32.totalorder %s32, 1
      %p113 = por %p111, %p112
      %p114 = scmp.ne.s32.totalorder %s105, %s106
      %p115 = scmp.eq.s32.totalorder %s32, 0
      %p116 = por %p114, %p115
      %p117 = scmp.ne.s32.totalorder %s105, %s106
      %p118 = scmp.eq.s32.totalorder %s33, 1
      %p119 = por %p117, %p118
      %p121 = scmp.ne.s32.totalorder %s106, %s120
      %p122 = scmp.eq.s32.totalorder %s33, 0
      %p123 = por %p121, %p122
      %s125 = sadd.s32 %s124, 1
      %p128 = scmp.eq.s32.totalorder %s27, 1
      %p129 = scmp.ne.s32.totalorder %s124, %s126
      %p130 = scmp.eq.s32.totalorder %s27, 0
      %p131 = por %p129, %p130
      %p132 = scmp.ne.s32.totalorder %s124, %s126
      %p133 = scmp.eq.s32.totalorder %s32, 1
      %p134 = por %p132, %p133
      %p135 = scmp.ne.s32.totalorder %s126, %s127
      %p136 = scmp.eq.s32.totalorder %s32, 0
      %p137 = por %p135, %p136
      %p138 = scmp.ne.s32.totalorder %s126, %s127
      %p139 = scmp.eq.s32.totalorder %s33, 1
      %p140 = por %p138, %p139
      %p142 = scmp.ne.s32.totalorder %s127, %s141
      %p143 = scmp.eq.s32.totalorder %s33, 0
      %p144 = por %p142, %p143
      %s146 = sadd.s32 %s145, 1
      %p149 = scmp.eq.s32.totalorder %s27, 1
      %p150 = scmp.ne.s32.totalorder %s145, %s147
      %p151 = scmp.eq.s32.totalorder %s27, 0
      %p152 = por %p150, %p151
      %p153 = scmp.ne.s32.totalorder %s145, %s147
      %p154 = scmp.eq.s32.totalorder %s32, 1
      %p155 = por %p153, %p154
      %p156 = scmp.ne.s32.totalorder %s147, %s148
      %p157 = scmp.eq.s32.totalorder %s32, 0
      %p158 = por %p156, %p157
      %p159 = scmp.ne.s32.totalorder %s147, %s148
      %p160 = scmp.eq.s32.totalorder %s33, 1
      %p161 = por %p159, %p160
      %p163 = scmp.ne.s32.totalorder %s148, %s162
      %p164 = scmp.eq.s32.totalorder %s33, 0
      %p165 = por %p163, %p164
      %s167 = sadd.s32 %s166, 1
      %p170 = scmp.eq.s32.totalorder %s27, 1
      %p171 = scmp.ne.s32.totalorder %s166, %s168
      %p172 = scmp.eq.s32.totalorder %s27, 0
      %p173 = por %p171, %p172
      %p174 = scmp.ne.s32.totalorder %s166, %s168
      %p175 = scmp.eq.s32.totalorder %s32, 1
      %p176 = por %p174, %p175
      %p177 = scmp.ne.s32.totalorder %s168, %s169
      %p178 = scmp.eq.s32.totalorder %s32, 0
      %p179 = por %p177, %p178
      %p180 = scmp.ne.s32.totalorder %s168, %s169
      %p181 = scmp.eq.s32.totalorder %s33, 1
      %p182 = por %p180, %p181
      %p184 = scmp.ne.s32.totalorder %s169, %s183
      %p185 = scmp.eq.s32.totalorder %s33, 0
      %p186 = por %p184, %p185
      %s188 = sadd.s32 %s187, 1
      %p191 = scmp.eq.s32.totalorder %s27, 1
      %p192 = scmp.ne.s32.totalorder %s187, %s189
      %p193 = scmp.eq.s32.totalorder %s27, 0
      %p194 = por %p192, %p193
      %p195 = scmp.ne.s32.totalorder %s187, %s189
      %p196 = scmp.eq.s32.totalorder %s32, 1
      %p197 = por %p195, %p196
      %p198 = scmp.ne.s32.totalorder %s189, %s190
      %p199 = scmp.eq.s32.totalorder %s32, 0
      %p200 = por %p198, %p199
      %p201 = scmp.ne.s32.totalorder %s189, %s190
      %p202 = scmp.eq.s32.totalorder %s33, 1
      %p203 = por %p201, %p202
      %p205 = scmp.ne.s32.totalorder %s190, %s204
      %p206 = scmp.eq.s32.totalorder %s33, 0
      %p207 = por %p205, %p206
      %s209 = sadd.s32 %s208, 1
      %p212 = scmp.eq.s32.totalorder %s27, 1
      %p213 = scmp.ne.s32.totalorder %s208, %s210
      %p214 = scmp.eq.s32.totalorder %s27, 0
      %p215 = por %p213, %p214
      %p216 = scmp.ne.s32.totalorder %s208, %s210
      %p217 = scmp.eq.s32.totalorder %s32, 1
      %p218 = por %p216, %p217
      %p219 = scmp.ne.s32.totalorder %s210, %s211
      %p220 = scmp.eq.s32.totalorder %s32, 0
      %p221 = por %p219, %p220
      %p222 = scmp.ne.s32.totalorder %s210, %s211
      %p223 = scmp.eq.s32.totalorder %s33, 1
      %p224 = por %p222, %p223
      %p226 = scmp.ne.s32.totalorder %s211, %s225
      %p227 = scmp.eq.s32.totalorder %s33, 0
      %p228 = por %p226, %p227
      %s230 = sadd.s32 %s229, 1
      %p233 = scmp.eq.s32.totalorder %s27, 1
      %p234 = scmp.ne.s32.totalorder %s229, %s231
      %p235 = scmp.eq.s32.totalorder %s27, 0
      %p236 = por %p234, %p235
      %p237 = scmp.ne.s32.totalorder %s229, %s231
      %p238 = scmp.eq.s32.totalorder %s32, 1
      %p239 = por %p237, %p238
      %p240 = scmp.ne.s32.totalorder %s231, %s232
      %p241 = scmp.eq.s32.totalorder %s32, 0
      %p242 = por %p240, %p241
      %p243 = scmp.ne.s32.totalorder %s231, %s232
      %p244 = scmp.eq.s32.totalorder %s33, 1
      %p245 = por %p243, %p244
      %p247 = scmp.ne.s32.totalorder %s232, %s246
      %p248 = scmp.eq.s32.totalorder %s33, 0
      %p249 = por %p247, %p248
      %s251 = sadd.s32 %s250, 1
      %p254 = scmp.eq.s32.totalorder %s27, 1
      %p255 = scmp.ne.s32.totalorder %s250, %s252
      %p256 = scmp.eq.s32.totalorder %s27, 0
      %p257 = por %p255, %p256
      %p258 = scmp.ne.s32.totalorder %s250, %s252
      %p259 = scmp.eq.s32.totalorder %s32, 1
      %p260 = por %p258, %p259
      %p261 = scmp.ne.s32.totalorder %s252, %s253
      %p262 = scmp.eq.s32.totalorder %s32, 0
      %p263 = por %p261, %p262
      %p264 = scmp.ne.s32.totalorder %s252, %s253
      %p265 = scmp.eq.s32.totalorder %s33, 1
      %p266 = por %p264, %p265
      %p268 = scmp.ne.s32.totalorder %s253, %s267
      %p269 = scmp.eq.s32.totalorder %s33, 0
      %p270 = por %p268, %p269
      %s271 = ssub.s32 %s27, %s34
      %p272 = scmp.eq.s32.totalorder %s271, 0
      %s274 = sadd.s32 %s273, 1
      %s275 = scalar_select %p272, %s273, %s274
      %p278 = pneg %p272
      %p279 = scmp.eq.s32.totalorder %s27, 1
      %p280 = por %p278, %p279
      %p281 = scmp.ne.s32.totalorder %s273, %s276
      %p282 = scmp.eq.s32.totalorder %s27, 0
      %p283 = por %p281, %p282
      %p284 = scmp.ne.s32.totalorder %s273, %s276
      %p285 = scmp.eq.s32.totalorder %s32, 1
      %p286 = por %p284, %p285
      %p287 = scmp.ne.s32.totalorder %s276, %s277
      %p288 = scmp.eq.s32.totalorder %s32, 0
      %p289 = por %p287, %p288
      %p290 = scmp.ne.s32.totalorder %s276, %s277
      %p291 = scmp.eq.s32.totalorder %s33, 1
      %p292 = por %p290, %p291
      %p294 = scmp.ne.s32.totalorder %s277, %s293
      %p295 = scmp.eq.s32.totalorder %s33, 0
      %p296 = por %p294, %p295
      %p297 = scmp.le.s32.totalorder 1, %s27
      %p298 = scmp.lt.s32.totalorder %s27, 3
      %p299 = pnand %p297, %p298
      %p300 = pneg %p299
      // Predicated region
      $region9: #{resnetk_block_forward.1} parent=5 // pred_check
        _
      $region10: #{resnetk_block_forward.1} parent=5 // pred_check_branch
        %302 = sbr.rel (%p299) target = $region12
      $region11: #{resnetk_block_forward.1} parent=5 // pred_region
        %s303 = ssub.s32 %s27, 1
        // Predicated region
        $region13: #{resnetk_block_forward.1} parent=11 // pred_check
          %p304 = pneg %p74
        $region14: #{resnetk_block_forward.1} parent=11 // pred_check_branch
          %306 = sbr.rel (%p304) target = $region16
        $region15: #{resnetk_block_forward.1} parent=11 // pred_region
          %308 = vsyncadd [#allocation8], 0
          %s309 = sshll.u32 %s1, 4
          %s310 = int_to_ptr.hbm [resolvable:$true] %s309
          %s311 = sshll.u32 [#allocation7], 4
          %s312 = int_to_ptr.vmem [resolvable:$true] %s311
          %317 = dma.hbm_to_vmem [thread:$0]  %s310, 2048, %s312, [#allocation8], 64, 64, 4
        $region16: #{resnetk_block_forward.1} parent=11 // pred_fallthru
          _
        // Predicated region
        $region17: #{resnetk_block_forward.1} parent=11 // pred_check
          %p318 = pneg %p95
        $region18: #{resnetk_block_forward.1} parent=11 // pred_check_branch
          %320 = sbr.rel (%p318) target = $region20
        $region19: #{resnetk_block_forward.1} parent=11 // pred_region
          _
        $region20: #{resnetk_block_forward.1} parent=11 // pred_fallthru
          _
        // Predicated region
        $region21: #{resnetk_block_forward.1} parent=11 // pred_check
          %p321 = pneg %p116
        $region22: #{resnetk_block_forward.1} parent=11 // pred_check_branch
          %323 = sbr.rel (%p321) target = $region24
        $region23: #{resnetk_block_forward.1} parent=11 // pred_region
          %325 = vsyncadd [#allocation8], 0
          %s326 = sshll.u32 %s3, 4
          %s327 = int_to_ptr.hbm [resolvable:$true] %s326
          %s328 = sshll.u32 [#allocation9], 4
          %s329 = int_to_ptr.vmem [resolvable:$true] %s328
          %334 = dma.hbm_to_vmem [thread:$0]  %s327, 2048, %s329, [#allocation8], 64, 64, 4
        $region24: #{resnetk_block_forward.1} parent=11 // pred_fallthru
          _
        // Predicated region
        $region25: #{resnetk_block_forward.1} parent=11 // pred_check
          %p335 = pneg %p137
        $region26: #{resnetk_block_forward.1} parent=11 // pred_check_branch
          %337 = sbr.rel (%p335) target = $region28
        $region27: #{resnetk_block_forward.1} parent=11 // pred_region
          %339 = vsyncadd [#allocation11], 0
          %s341 = sshll.u32 %s4, 4
          %s342 = int_to_ptr.hbm [resolvable:$true] %s341
          %s343 = sshll.u32 [#allocation10], 4
          %s344 = int_to_ptr.vmem [resolvable:$true] %s343
          %346 = dma.hbm_to_vmem [thread:$0]  %s342, 16, %s344, [#allocation11]
        $region28: #{resnetk_block_forward.1} parent=11 // pred_fallthru
          _
        // Predicated region
        $region29: #{resnetk_block_forward.1} parent=11 // pred_check
          %p347 = pneg %p158
        $region30: #{resnetk_block_forward.1} parent=11 // pred_check_branch
          %349 = sbr.rel (%p347) target = $region32
        $region31: #{resnetk_block_forward.1} parent=11 // pred_region
          %351 = vsyncadd [#allocation11], 0
          %s352 = sshll.u32 %s5, 4
          %s353 = int_to_ptr.hbm [resolvable:$true] %s352
          %s354 = sshll.u32 [#allocation12], 4
          %s355 = int_to_ptr.vmem [resolvable:$true] %s354
          %360 = dma.hbm_to_vmem [thread:$0]  %s353, 3072, %s355, [#allocation11], 64, 64, 4
        $region32: #{resnetk_block_forward.1} parent=11 // pred_fallthru
          _
        // Predicated region
        $region33: #{resnetk_block_forward.1} parent=11 // pred_check
          %p361 = pneg %p179
        $region34: #{resnetk_block_forward.1} parent=11 // pred_check_branch
          %363 = sbr.rel (%p361) target = $region36
        $region35: #{resnetk_block_forward.1} parent=11 // pred_region
          %365 = vsyncadd [#allocation14], 0
          %s367 = sshll.u32 %s6, 4
          %s368 = int_to_ptr.hbm [resolvable:$true] %s367
          %s369 = sshll.u32 [#allocation13], 4
          %s370 = int_to_ptr.vmem [resolvable:$true] %s369
          %372 = dma.hbm_to_vmem [thread:$0]  %s368, 16, %s370, [#allocation14]
        $region36: #{resnetk_block_forward.1} parent=11 // pred_fallthru
          _
        // Predicated region
        $region37: #{resnetk_block_forward.1} parent=11 // pred_check
          %p373 = pneg %p200
        $region38: #{resnetk_block_forward.1} parent=11 // pred_check_branch
          %375 = sbr.rel (%p373) target = $region40
        $region39: #{resnetk_block_forward.1} parent=11 // pred_region
          %377 = vsyncadd [#allocation14], 0
          %s378 = sshll.u32 %s7, 4
          %s379 = int_to_ptr.hbm [resolvable:$true] %s378
          %s380 = sshll.u32 [#allocation15], 4
          %s381 = int_to_ptr.vmem [resolvable:$true] %s380
          %386 = dma.hbm_to_vmem [thread:$0]  %s379, 3072, %s381, [#allocation14], 64, 64, 4
        $region40: #{resnetk_block_forward.1} parent=11 // pred_fallthru
          _
        // Predicated region
        $region41: #{resnetk_block_forward.1} parent=11 // pred_check
          %p387 = pneg %p221
        $region42: #{resnetk_block_forward.1} parent=11 // pred_check_branch
          %389 = sbr.rel (%p387) target = $region44
        $region43: #{resnetk_block_forward.1} parent=11 // pred_region
          _
        $region44: #{resnetk_block_forward.1} parent=11 // pred_fallthru
          _
        // Predicated region
        $region45: #{resnetk_block_forward.1} parent=11 // pred_check
          %p390 = pneg %p242
        $region46: #{resnetk_block_forward.1} parent=11 // pred_check_branch
          %392 = sbr.rel (%p390) target = $region48
        $region47: #{resnetk_block_forward.1} parent=11 // pred_region
          %394 = vsyncadd [#allocation17], 0
          %s395 = sshll.u32 %s9, 4
          %s396 = int_to_ptr.hbm [resolvable:$true] %s395
          %s397 = sshll.u32 [#allocation16], 4
          %s398 = int_to_ptr.vmem [resolvable:$true] %s397
          %403 = dma.hbm_to_vmem [thread:$0]  %s396, 4096, %s398, [#allocation17], 128, 128, 8
        $region48: #{resnetk_block_forward.1} parent=11 // pred_fallthru
          _
        // Predicated region
        $region49: #{resnetk_block_forward.1} parent=11 // pred_check
          %p404 = pneg %p263
        $region50: #{resnetk_block_forward.1} parent=11 // pred_check_branch
          %406 = sbr.rel (%p404) target = $region52
        $region51: #{resnetk_block_forward.1} parent=11 // pred_region
          _
        $region52: #{resnetk_block_forward.1} parent=11 // pred_fallthru
          _
      $region12: #{resnetk_block_forward.1} parent=5 // pred_fallthru
        _
      %p407 = scmp.lt.s32.totalorder %s27, 2
      // Predicated region
      $region53: #{resnetk_block_forward.1} parent=5 // pred_check
        %p408 = pneg %p407
      $region54: #{resnetk_block_forward.1} parent=5 // pred_check_branch
        %410 = sbr.rel (%p408) target = $region56
      $region55: #{resnetk_block_forward.1} parent=5 // pred_region
        // Predicated region
        $region57: #{resnetk_block_forward.1} parent=55 // pred_check
          %p411 = pneg %p47
        $region58: #{resnetk_block_forward.1} parent=55 // pred_check_branch
          %413 = sbr.rel (%p411) target = $region60
        $region59: #{resnetk_block_forward.1} parent=55 // pred_region
          %s414 = sand.u32 %s37, 1
          %s415 = scalar_lea.sflag [#allocation5], %s414
          %s416 = sand.u32 %s37, 1
          %s417 = smul.addr %s416, 512
          %s418 = scalar_lea.vmem [#allocation4], %s417
          %420 = vsyncadd %s415, 0
          %s421 = smul.addr %s27, 64
          %s422 = smul.addr %s421, 8
          %s423 = scalar_lea.hbm %s0, %s422
          %s424 = sshll.u32 %s423, 4
          %s425 = int_to_ptr.hbm [resolvable:$true] %s424
          %s426 = sshll.u32 %s418, 4
          %s427 = int_to_ptr.vmem [resolvable:$true] %s426
          %432 = dma.hbm_to_vmem [thread:$0]  %s425, 8192, %s427, %s415, 256, 256, 16
        $region60: #{resnetk_block_forward.1} parent=55 // pred_fallthru
          _
      $region56: #{resnetk_block_forward.1} parent=5 // pred_fallthru
        _
      %p433 = scmp.le.s32.totalorder 1, %s27
      %p434 = scmp.lt.s32.totalorder %s27, 3
      %p435 = pnand %p433, %p434
      %p436 = pneg %p435
      // Predicated region
      $region61: #{resnetk_block_forward.1} parent=5 // pred_check
        _
      $region62: #{resnetk_block_forward.1} parent=5 // pred_check_branch
        %438 = sbr.rel (%p435) target = $region64
      $region63: #{resnetk_block_forward.1} parent=5 // pred_region
        %s439 = ssub.s32 %s27, 1
        %s440 = sand.u32 %s40, 1
        %s441 = scalar_lea.sflag [#allocation5], %s440
        %s442 = sand.u32 %s40, 1
        %s443 = smul.addr %s442, 512
        %s444 = scalar_lea.vmem [#allocation4], %s443
        // Predicated region
        $region65: #{resnetk_block_forward.1} parent=63 // pred_check
          %p445 = pneg %p53
        $region66: #{resnetk_block_forward.1} parent=63 // pred_check_branch
          %447 = sbr.rel (%p445) target = $region68
        $region67: #{resnetk_block_forward.1} parent=63 // pred_region
          %449 = dma.done %s441, 8192
        $region68: #{resnetk_block_forward.1} parent=63 // pred_fallthru
          _
        // Predicated region
        $region69: #{resnetk_block_forward.1} parent=63 // pred_check
          %p450 = pneg %p74
        $region70: #{resnetk_block_forward.1} parent=63 // pred_check_branch
          %452 = sbr.rel (%p450) target = $region72
        $region71: #{resnetk_block_forward.1} parent=63 // pred_region
          %454 = dma.done [#allocation8], 2048
        $region72: #{resnetk_block_forward.1} parent=63 // pred_fallthru
          _
        // Predicated region
        $region73: #{resnetk_block_forward.1} parent=63 // pred_check
          %p455 = pneg %p116
        $region74: #{resnetk_block_forward.1} parent=63 // pred_check_branch
          %457 = sbr.rel (%p455) target = $region76
        $region75: #{resnetk_block_forward.1} parent=63 // pred_region
          %459 = dma.done [#allocation8], 2048
        $region76: #{resnetk_block_forward.1} parent=63 // pred_fallthru
          _
        // Predicated region
        $region77: #{resnetk_block_forward.1} parent=63 // pred_check
          %p460 = pneg %p137
        $region78: #{resnetk_block_forward.1} parent=63 // pred_check_branch
          %462 = sbr.rel (%p460) target = $region80
        $region79: #{resnetk_block_forward.1} parent=63 // pred_region
          %464 = dma.done [#allocation11], 16
        $region80: #{resnetk_block_forward.1} parent=63 // pred_fallthru
          _
        // Predicated region
        $region81: #{resnetk_block_forward.1} parent=63 // pred_check
          %p465 = pneg %p158
        $region82: #{resnetk_block_forward.1} parent=63 // pred_check_branch
          %467 = sbr.rel (%p465) target = $region84
        $region83: #{resnetk_block_forward.1} parent=63 // pred_region
          %469 = dma.done [#allocation11], 3072
        $region84: #{resnetk_block_forward.1} parent=63 // pred_fallthru
          _
        // Predicated region
        $region85: #{resnetk_block_forward.1} parent=63 // pred_check
          %p470 = pneg %p179
        $region86: #{resnetk_block_forward.1} parent=63 // pred_check_branch
          %472 = sbr.rel (%p470) target = $region88
        $region87: #{resnetk_block_forward.1} parent=63 // pred_region
          %474 = dma.done [#allocation14], 16
        $region88: #{resnetk_block_forward.1} parent=63 // pred_fallthru
          _
        // Predicated region
        $region89: #{resnetk_block_forward.1} parent=63 // pred_check
          %p475 = pneg %p200
        $region90: #{resnetk_block_forward.1} parent=63 // pred_check_branch
          %477 = sbr.rel (%p475) target = $region92
        $region91: #{resnetk_block_forward.1} parent=63 // pred_region
          %479 = dma.done [#allocation14], 3072
        $region92: #{resnetk_block_forward.1} parent=63 // pred_fallthru
          _
        // Predicated region
        $region93: #{resnetk_block_forward.1} parent=63 // pred_check
          %p480 = pneg %p242
        $region94: #{resnetk_block_forward.1} parent=63 // pred_check_branch
          %482 = sbr.rel (%p480) target = $region96
        $region95: #{resnetk_block_forward.1} parent=63 // pred_region
          %484 = dma.done [#allocation17], 4096
        $region96: #{resnetk_block_forward.1} parent=63 // pred_fallthru
          _
        %s485 = sand.u32 %s40, 1
        %s486 = scalar_lea.sflag [#allocation5], %s485
        %s487 = sand.u32 %s40, 1
        %s488 = smul.addr %s487, 512
        %s489 = scalar_lea.vmem [#allocation4], %s488
        %p490 = pneg %p53
        %p491 = pneg %p50
        %p492 = pneg %p74
        %p493 = pneg %p71
        %p494 = pneg %p95
        %p495 = pneg %p92
        %p496 = pneg %p116
        %p497 = pneg %p113
        %p498 = pneg %p137
        %p499 = pneg %p134
        %p500 = pneg %p158
        %p501 = pneg %p155
        %p502 = pneg %p179
        %p503 = pneg %p176
        %p504 = pneg %p200
        %p505 = pneg %p197
        %p506 = pneg %p221
        %p507 = pneg %p218
        %p508 = pneg %p242
        %p509 = pneg %p239
        %p510 = pneg %p263
        %p511 = pneg %p260
        %p512 = pneg %p289
        %p513 = pneg %p286
        %s514 = sand.u32 %s276, 1
        %s515 = scalar_lea.sflag [#allocation6], %s514
        %s516 = sand.u32 %s276, 1
        %s517 = smul.addr %s516, 512
        %s518 = scalar_lea.vmem [#allocation18], %s517
        %v520 = vld [vmem:[%s444] sm:$0xff]
        %v521 = vld [vmem:[%s444 + $0x8] sm:$0xff]
        %v522 = vld [vmem:[%s444 + $0x10] sm:$0xff]
        %v523 = vld [vmem:[%s444 + $0x18] sm:$0xff]
        %v524 = vld [vmem:[%s444 + $0x20] sm:$0xff]
        %v525 = vld [vmem:[%s444 + $0x28] sm:$0xff]
        %v526 = vld [vmem:[%s444 + $0x30] sm:$0xff]
        %v527 = vld [vmem:[%s444 + $0x38] sm:$0xff]
        %v528 = vld [vmem:[%s444 + $0x40] sm:$0xff]
        %v529 = vld [vmem:[%s444 + $0x48] sm:$0xff]
        %v530 = vld [vmem:[%s444 + $0x50] sm:$0xff]
        %v531 = vld [vmem:[%s444 + $0x58] sm:$0xff]
        %v532 = vld [vmem:[%s444 + $0x60] sm:$0xff]
        %v533 = vld [vmem:[%s444 + $0x68] sm:$0xff]
        %v534 = vld [vmem:[%s444 + $0x70] sm:$0xff]
        %v535 = vld [vmem:[%s444 + $0x78] sm:$0xff]
        %v536 = vld [vmem:[%s444 + $0x80] sm:$0xff]
        %v537 = vld [vmem:[%s444 + $0x88] sm:$0xff]
        %v538 = vld [vmem:[%s444 + $0x90] sm:$0xff]
        %v539 = vld [vmem:[%s444 + $0x98] sm:$0xff]
        %v540 = vld [vmem:[%s444 + $0xa0] sm:$0xff]
        %v541 = vld [vmem:[%s444 + $0xa8] sm:$0xff]
        %v542 = vld [vmem:[%s444 + $0xb0] sm:$0xff]
        %v543 = vld [vmem:[%s444 + $0xb8] sm:$0xff]
        %v544 = vld [vmem:[%s444 + $0xc0] sm:$0xff]
        %v545 = vld [vmem:[%s444 + $0xc8] sm:$0xff]
        %v546 = vld [vmem:[%s444 + $0xd0] sm:$0xff]
        %v547 = vld [vmem:[%s444 + $0xd8] sm:$0xff]
        %v548 = vld [vmem:[%s444 + $0xe0] sm:$0xff]
        %v549 = vld [vmem:[%s444 + $0xe8] sm:$0xff]
        %v550 = vld [vmem:[%s444 + $0xf0] sm:$0xff]
        %v551 = vld [vmem:[%s444 + $0xf8] sm:$0xff]
        %v552 = vld [vmem:[%s444 + $0x100] sm:$0xff]
        %v553 = vld [vmem:[%s444 + $0x108] sm:$0xff]
        %v554 = vld [vmem:[%s444 + $0x110] sm:$0xff]
        %v555 = vld [vmem:[%s444 + $0x118] sm:$0xff]
        %v556 = vld [vmem:[%s444 + $0x120] sm:$0xff]
        %v557 = vld [vmem:[%s444 + $0x128] sm:$0xff]
        %v558 = vld [vmem:[%s444 + $0x130] sm:$0xff]
        %v559 = vld [vmem:[%s444 + $0x138] sm:$0xff]
        %v560 = vld [vmem:[%s444 + $0x140] sm:$0xff]
        %v561 = vld [vmem:[%s444 + $0x148] sm:$0xff]
        %v562 = vld [vmem:[%s444 + $0x150] sm:$0xff]
        %v563 = vld [vmem:[%s444 + $0x158] sm:$0xff]
        %v564 = vld [vmem:[%s444 + $0x160] sm:$0xff]
        %v565 = vld [vmem:[%s444 + $0x168] sm:$0xff]
        %v566 = vld [vmem:[%s444 + $0x170] sm:$0xff]
        %v567 = vld [vmem:[%s444 + $0x178] sm:$0xff]
        %v568 = vld [vmem:[%s444 + $0x180] sm:$0xff]
        %v569 = vld [vmem:[%s444 + $0x188] sm:$0xff]
        %v570 = vld [vmem:[%s444 + $0x190] sm:$0xff]
        %v571 = vld [vmem:[%s444 + $0x198] sm:$0xff]
        %v572 = vld [vmem:[%s444 + $0x1a0] sm:$0xff]
        %v573 = vld [vmem:[%s444 + $0x1a8] sm:$0xff]
        %v574 = vld [vmem:[%s444 + $0x1b0] sm:$0xff]
        %v575 = vld [vmem:[%s444 + $0x1b8] sm:$0xff]
        %v576 = vld [vmem:[%s444 + $0x1c0] sm:$0xff]
        %v577 = vld [vmem:[%s444 + $0x1c8] sm:$0xff]
        %v578 = vld [vmem:[%s444 + $0x1d0] sm:$0xff]
        %v579 = vld [vmem:[%s444 + $0x1d8] sm:$0xff]
        %v580 = vld [vmem:[%s444 + $0x1e0] sm:$0xff]
        %v581 = vld [vmem:[%s444 + $0x1e8] sm:$0xff]
        %v582 = vld [vmem:[%s444 + $0x1f0] sm:$0xff]
        %v583 = vld [vmem:[%s444 + $0x1f8] sm:$0xff]
        %v584 = vpack.c.bf16 %v522, %v520
        %v585 = vpack.c.bf16 %v523, %v521
        %v586 = vpack.c.bf16 %v526, %v524
        %v587 = vpack.c.bf16 %v527, %v525
        %v588 = vpack.c.bf16 %v530, %v528
        %v589 = vpack.c.bf16 %v531, %v529
        %v590 = vpack.c.bf16 %v534, %v532
        %v591 = vpack.c.bf16 %v535, %v533
        %v592 = vpack.c.bf16 %v538, %v536
        %v593 = vpack.c.bf16 %v539, %v537
        %v594 = vpack.c.bf16 %v542, %v540
        %v595 = vpack.c.bf16 %v543, %v541
        %v596 = vpack.c.bf16 %v546, %v544
        %v597 = vpack.c.bf16 %v547, %v545
        %v598 = vpack.c.bf16 %v550, %v548
        %v599 = vpack.c.bf16 %v551, %v549
        %v600 = vpack.c.bf16 %v554, %v552
        %v601 = vpack.c.bf16 %v555, %v553
        %v602 = vpack.c.bf16 %v558, %v556
        %v603 = vpack.c.bf16 %v559, %v557
        %v604 = vpack.c.bf16 %v562, %v560
        %v605 = vpack.c.bf16 %v563, %v561
        %v606 = vpack.c.bf16 %v566, %v564
        %v607 = vpack.c.bf16 %v567, %v565
        %v608 = vpack.c.bf16 %v570, %v568
        %v609 = vpack.c.bf16 %v571, %v569
        %v610 = vpack.c.bf16 %v574, %v572
        %v611 = vpack.c.bf16 %v575, %v573
        %v612 = vpack.c.bf16 %v578, %v576
        %v613 = vpack.c.bf16 %v579, %v577
        %v614 = vpack.c.bf16 %v582, %v580
        %v615 = vpack.c.bf16 %v583, %v581
        %v616 = vld [vmem:[#allocation7] sm:$0xf]
        %v617 = vld [vmem:[#allocation7 + $0x4] sm:$0xf]
        %v618 = vld [vmem:[#allocation7 + $0x8] sm:$0xf]
        %v619 = vld [vmem:[#allocation7 + $0xc] sm:$0xf]
        %v620 = vld [vmem:[#allocation7 + $0x10] sm:$0xf]
        %v621 = vld [vmem:[#allocation7 + $0x14] sm:$0xf]
        %v622 = vld [vmem:[#allocation7 + $0x18] sm:$0xf]
        %v623 = vld [vmem:[#allocation7 + $0x1c] sm:$0xf]
        %v624 = vld [vmem:[#allocation7 + $0x20] sm:$0xf]
        %v625 = vld [vmem:[#allocation7 + $0x24] sm:$0xf]
        %v626 = vld [vmem:[#allocation7 + $0x28] sm:$0xf]
        %v627 = vld [vmem:[#allocation7 + $0x2c] sm:$0xf]
        %v628 = vld [vmem:[#allocation7 + $0x30] sm:$0xf]
        %v629 = vld [vmem:[#allocation7 + $0x34] sm:$0xf]
        %v630 = vld [vmem:[#allocation7 + $0x38] sm:$0xf]
        %v631 = vld [vmem:[#allocation7 + $0x3c] sm:$0xf]
        %v632 = vld [vmem:[#allocation7 + $0x40] sm:$0xf]
        %v633 = vld [vmem:[#allocation7 + $0x44] sm:$0xf]
        %v634 = vld [vmem:[#allocation7 + $0x48] sm:$0xf]
        %v635 = vld [vmem:[#allocation7 + $0x4c] sm:$0xf]
        %v636 = vld [vmem:[#allocation7 + $0x50] sm:$0xf]
        %v637 = vld [vmem:[#allocation7 + $0x54] sm:$0xf]
        %v638 = vld [vmem:[#allocation7 + $0x58] sm:$0xf]
        %v639 = vld [vmem:[#allocation7 + $0x5c] sm:$0xf]
        %v640 = vld [vmem:[#allocation7 + $0x60] sm:$0xf]
        %v641 = vld [vmem:[#allocation7 + $0x64] sm:$0xf]
        %v642 = vld [vmem:[#allocation7 + $0x68] sm:$0xf]
        %v643 = vld [vmem:[#allocation7 + $0x6c] sm:$0xf]
        %v644 = vld [vmem:[#allocation7 + $0x70] sm:$0xf]
        %v645 = vld [vmem:[#allocation7 + $0x74] sm:$0xf]
        %v646 = vld [vmem:[#allocation7 + $0x78] sm:$0xf]
        %v647 = vld [vmem:[#allocation7 + $0x7c] sm:$0xf]
        %v648 = vld [vmem:[%s2] sm:$0x1]
        %v650 = vperm.slane %v648, 0
        %v684 = vunpack.c.l.b16 %v616
        %v685 = vunpack.c.l.b16 %v617
        %v686 = vunpack.c.l.b16 %v618
        %v687 = vunpack.c.l.b16 %v619
        %v688 = vunpack.c.l.b16 %v620
        %v689 = vunpack.c.l.b16 %v621
        %v690 = vunpack.c.l.b16 %v622
        %v691 = vunpack.c.l.b16 %v623
        %v692 = vunpack.c.l.b16 %v624
        %v693 = vunpack.c.l.b16 %v625
        %v694 = vunpack.c.l.b16 %v626
        %v695 = vunpack.c.l.b16 %v627
        %v696 = vunpack.c.l.b16 %v628
        %v697 = vunpack.c.l.b16 %v629
        %v698 = vunpack.c.l.b16 %v630
        %v699 = vunpack.c.l.b16 %v631
        %v700 = vunpack.c.l.b16 %v632
        %v701 = vunpack.c.l.b16 %v633
        %v702 = vunpack.c.l.b16 %v634
        %v703 = vunpack.c.l.b16 %v635
        %v704 = vunpack.c.l.b16 %v636
        %v705 = vunpack.c.l.b16 %v637
        %v706 = vunpack.c.l.b16 %v638
        %v707 = vunpack.c.l.b16 %v639
        %v708 = vunpack.c.l.b16 %v640
        %v709 = vunpack.c.l.b16 %v641
        %v710 = vunpack.c.l.b16 %v642
        %v711 = vunpack.c.l.b16 %v643
        %v712 = vunpack.c.l.b16 %v644
        %v713 = vunpack.c.l.b16 %v645
        %v714 = vunpack.c.l.b16 %v646
        %v715 = vunpack.c.l.b16 %v647
        %v716 = vpack.c.b16 %v685, %v684
        %v717 = vpack.c.b16 %v687, %v686
        %v718 = vpack.c.b16 %v689, %v688
        %v719 = vpack.c.b16 %v691, %v690
        %v720 = vpack.c.b16 %v693, %v692
        %v721 = vpack.c.b16 %v695, %v694
        %v722 = vpack.c.b16 %v697, %v696
        %v723 = vpack.c.b16 %v699, %v698
        %v724 = vpack.c.b16 %v701, %v700
        %v725 = vpack.c.b16 %v703, %v702
        %v726 = vpack.c.b16 %v705, %v704
        %v727 = vpack.c.b16 %v707, %v706
        %v728 = vpack.c.b16 %v709, %v708
        %v729 = vpack.c.b16 %v711, %v710
        %v730 = vpack.c.b16 %v713, %v712
        %v731 = vpack.c.b16 %v715, %v714
        %748 = vmatpush.bf16.msra.mxu0 %v723
        %749 = vmatpush.bf16.msra.mxu0 %v722
        %750 = vmatpush.bf16.msra.mxu0 %v721
        %751 = vmatpush.bf16.msra.mxu0 %v720
        %752 = vmatpush.bf16.msra.mxu0 %v719
        %753 = vmatpush.bf16.msra.mxu0 %v718
        %754 = vmatpush.bf16.msra.mxu0 %v717
        %755 = vmatpush.bf16.msra.mxu0 %v716
        %756 = vmatmul.bf16.gmra.mxu0 %v584
        %v757 = vpop.f32.mrf.mxu0
        %v758 = vadd.f32 %v650, %v757
        %v759 = vpop.f32.mrf.mxu0
        %v760 = vadd.f32 %v650, %v759
        %761 = vmatmul.bf16.gmra.mxu0 %v586
        %v762 = vpop.f32.mrf.mxu0
        %v763 = vadd.f32 %v650, %v762
        %v764 = vpop.f32.mrf.mxu0
        %v765 = vadd.f32 %v650, %v764
        %766 = vmatmul.bf16.gmra.mxu0 %v588
        %v767 = vpop.f32.mrf.mxu0
        %v768 = vadd.f32 %v650, %v767
        %v769 = vpop.f32.mrf.mxu0
        %v770 = vadd.f32 %v650, %v769
        %771 = vmatmul.bf16.gmra.mxu0 %v590
        %v772 = vpop.f32.mrf.mxu0
        %v773 = vadd.f32 %v650, %v772
        %v774 = vpop.f32.mrf.mxu0
        %v775 = vadd.f32 %v650, %v774
        %776 = vmatmul.bf16.gmra.mxu0 %v592
        %v777 = vpop.f32.mrf.mxu0
        %v778 = vadd.f32 %v650, %v777
        %v779 = vpop.f32.mrf.mxu0
        %v780 = vadd.f32 %v650, %v779
        %781 = vmatmul.bf16.gmra.mxu0 %v594
        %v782 = vpop.f32.mrf.mxu0
        %v783 = vadd.f32 %v650, %v782
        %v784 = vpop.f32.mrf.mxu0
        %v785 = vadd.f32 %v650, %v784
        %786 = vmatmul.bf16.gmra.mxu0 %v596
        %v787 = vpop.f32.mrf.mxu0
        %v788 = vadd.f32 %v650, %v787
        %v789 = vpop.f32.mrf.mxu0
        %v790 = vadd.f32 %v650, %v789
        %791 = vmatmul.bf16.gmra.mxu0 %v598
        %v792 = vpop.f32.mrf.mxu0
        %v793 = vadd.f32 %v650, %v792
        %v794 = vpop.f32.mrf.mxu0
        %v795 = vadd.f32 %v650, %v794
        %796 = vmatmul.bf16.gmra.mxu0 %v600
        %v797 = vpop.f32.mrf.mxu0
        %v798 = vadd.f32 %v650, %v797
        %v799 = vpop.f32.mrf.mxu0
        %v800 = vadd.f32 %v650, %v799
        %801 = vmatmul.bf16.gmra.mxu0 %v602
        %v802 = vpop.f32.mrf.mxu0
        %v803 = vadd.f32 %v650, %v802
        %v804 = vpop.f32.mrf.mxu0
        %v805 = vadd.f32 %v650, %v804
        %806 = vmatmul.bf16.gmra.mxu0 %v604
        %v807 = vpop.f32.mrf.mxu0
        %v808 = vadd.f32 %v650, %v807
        %v809 = vpop.f32.mrf.mxu0
        %v810 = vadd.f32 %v650, %v809
        %811 = vmatmul.bf16.gmra.mxu0 %v606
        %v812 = vpop.f32.mrf.mxu0
        %v813 = vadd.f32 %v650, %v812
        %v814 = vpop.f32.mrf.mxu0
        %v815 = vadd.f32 %v650, %v814
        %816 = vmatmul.bf16.gmra.mxu0 %v608
        %v817 = vpop.f32.mrf.mxu0
        %v818 = vadd.f32 %v650, %v817
        %v819 = vpop.f32.mrf.mxu0
        %v820 = vadd.f32 %v650, %v819
        %821 = vmatmul.bf16.gmra.mxu0 %v610
        %v822 = vpop.f32.mrf.mxu0
        %v823 = vadd.f32 %v650, %v822
        %v824 = vpop.f32.mrf.mxu0
        %v825 = vadd.f32 %v650, %v824
        %826 = vmatmul.bf16.gmra.mxu0 %v612
        %v827 = vpop.f32.mrf.mxu0
        %v828 = vadd.f32 %v650, %v827
        %v829 = vpop.f32.mrf.mxu0
        %v830 = vadd.f32 %v650, %v829
        %831 = vmatmul.bf16.gmra.mxu0 %v614
        %v832 = vpop.f32.mrf.mxu0
        %v833 = vadd.f32 %v650, %v832
        %v834 = vpop.f32.mrf.mxu0
        %v835 = vadd.f32 %v650, %v834
        %836 = vdwg.mxu0
        %837 = vmatpush.bf16.msra.mxu0 %v731
        %838 = vmatpush.bf16.msra.mxu0 %v730
        %839 = vmatpush.bf16.msra.mxu0 %v729
        %840 = vmatpush.bf16.msra.mxu0 %v728
        %841 = vmatpush.bf16.msra.mxu0 %v727
        %842 = vmatpush.bf16.msra.mxu0 %v726
        %843 = vmatpush.bf16.msra.mxu0 %v725
        %844 = vmatpush.bf16.msra.mxu0 %v724
        %845 = vmatmul.bf16.gmra.mxu0 %v585
        %v846 = vpop.f32.mrf.mxu0
        %v847 = vadd.f32 %v758, %v846
        %v848 = vpop.f32.mrf.mxu0
        %v849 = vadd.f32 %v760, %v848
        %850 = vmatmul.bf16.gmra.mxu0 %v587
        %v851 = vpop.f32.mrf.mxu0
        %v852 = vadd.f32 %v763, %v851
        %v853 = vpop.f32.mrf.mxu0
        %v854 = vadd.f32 %v765, %v853
        %855 = vmatmul.bf16.gmra.mxu0 %v589
        %v856 = vpop.f32.mrf.mxu0
        %v857 = vadd.f32 %v768, %v856
        %v858 = vpop.f32.mrf.mxu0
        %v859 = vadd.f32 %v770, %v858
        %860 = vmatmul.bf16.gmra.mxu0 %v591
        %v861 = vpop.f32.mrf.mxu0
        %v862 = vadd.f32 %v773, %v861
        %v863 = vpop.f32.mrf.mxu0
        %v864 = vadd.f32 %v775, %v863
        %865 = vmatmul.bf16.gmra.mxu0 %v593
        %v866 = vpop.f32.mrf.mxu0
        %v867 = vadd.f32 %v778, %v866
        %v868 = vpop.f32.mrf.mxu0
        %v869 = vadd.f32 %v780, %v868
        %870 = vmatmul.bf16.gmra.mxu0 %v595
        %v871 = vpop.f32.mrf.mxu0
        %v872 = vadd.f32 %v783, %v871
        %v873 = vpop.f32.mrf.mxu0
        %v874 = vadd.f32 %v785, %v873
        %875 = vmatmul.bf16.gmra.mxu0 %v597
        %v876 = vpop.f32.mrf.mxu0
        %v877 = vadd.f32 %v788, %v876
        %v878 = vpop.f32.mrf.mxu0
        %v879 = vadd.f32 %v790, %v878
        %880 = vmatmul.bf16.gmra.mxu0 %v599
        %v881 = vpop.f32.mrf.mxu0
        %v882 = vadd.f32 %v793, %v881
        %v883 = vpop.f32.mrf.mxu0
        %v884 = vadd.f32 %v795, %v883
        %885 = vmatmul.bf16.gmra.mxu0 %v601
        %v886 = vpop.f32.mrf.mxu0
        %v887 = vadd.f32 %v798, %v886
        %v888 = vpop.f32.mrf.mxu0
        %v889 = vadd.f32 %v800, %v888
        %890 = vmatmul.bf16.gmra.mxu0 %v603
        %v891 = vpop.f32.mrf.mxu0
        %v892 = vadd.f32 %v803, %v891
        %v893 = vpop.f32.mrf.mxu0
        %v894 = vadd.f32 %v805, %v893
        %895 = vmatmul.bf16.gmra.mxu0 %v605
        %v896 = vpop.f32.mrf.mxu0
        %v897 = vadd.f32 %v808, %v896
        %v898 = vpop.f32.mrf.mxu0
        %v899 = vadd.f32 %v810, %v898
        %900 = vmatmul.bf16.gmra.mxu0 %v607
        %v901 = vpop.f32.mrf.mxu0
        %v902 = vadd.f32 %v813, %v901
        %v903 = vpop.f32.mrf.mxu0
        %v904 = vadd.f32 %v815, %v903
        %905 = vmatmul.bf16.gmra.mxu0 %v609
        %v906 = vpop.f32.mrf.mxu0
        %v907 = vadd.f32 %v818, %v906
        %v908 = vpop.f32.mrf.mxu0
        %v909 = vadd.f32 %v820, %v908
        %910 = vmatmul.bf16.gmra.mxu0 %v611
        %v911 = vpop.f32.mrf.mxu0
        %v912 = vadd.f32 %v823, %v911
        %v913 = vpop.f32.mrf.mxu0
        %v914 = vadd.f32 %v825, %v913
        %915 = vmatmul.bf16.gmra.mxu0 %v613
        %v916 = vpop.f32.mrf.mxu0
        %v917 = vadd.f32 %v828, %v916
        %v918 = vpop.f32.mrf.mxu0
        %v919 = vadd.f32 %v830, %v918
        %920 = vmatmul.bf16.gmra.mxu0 %v615
        %v921 = vpop.f32.mrf.mxu0
        %v922 = vadd.f32 %v833, %v921
        %v923 = vpop.f32.mrf.mxu0
        %v924 = vadd.f32 %v835, %v923
        %925 = vdwg.mxu0
        %v926 = vmax.f32 %v847, 0.0
        %v927 = vmax.f32 %v849, 0.0
        %v928 = vmax.f32 %v852, 0.0
        %v929 = vmax.f32 %v854, 0.0
        %v930 = vmax.f32 %v857, 0.0
        %v931 = vmax.f32 %v859, 0.0
        %v932 = vmax.f32 %v862, 0.0
        %v933 = vmax.f32 %v864, 0.0
        %v934 = vmax.f32 %v867, 0.0
        %v935 = vmax.f32 %v869, 0.0
        %v936 = vmax.f32 %v872, 0.0
        %v937 = vmax.f32 %v874, 0.0
        %v938 = vmax.f32 %v877, 0.0
        %v939 = vmax.f32 %v879, 0.0
        %v940 = vmax.f32 %v882, 0.0
        %v941 = vmax.f32 %v884, 0.0
        %v942 = vmax.f32 %v887, 0.0
        %v943 = vmax.f32 %v889, 0.0
        %v944 = vmax.f32 %v892, 0.0
        %v945 = vmax.f32 %v894, 0.0
        %v946 = vmax.f32 %v897, 0.0
        %v947 = vmax.f32 %v899, 0.0
        %v948 = vmax.f32 %v902, 0.0
        %v949 = vmax.f32 %v904, 0.0
        %v950 = vmax.f32 %v907, 0.0
        %v951 = vmax.f32 %v909, 0.0
        %v952 = vmax.f32 %v912, 0.0
        %v953 = vmax.f32 %v914, 0.0
        %v954 = vmax.f32 %v917, 0.0
        %v955 = vmax.f32 %v919, 0.0
        %v956 = vmax.f32 %v922, 0.0
        %v957 = vmax.f32 %v924, 0.0
        %v958 = vld [vmem:[#allocation9] sm:$0xf]
        %v959 = vld [vmem:[#allocation9 + $0x4] sm:$0xf]
        %v960 = vld [vmem:[#allocation9 + $0x8] sm:$0xf]
        %v961 = vld [vmem:[#allocation9 + $0xc] sm:$0xf]
        %v962 = vld [vmem:[#allocation9 + $0x10] sm:$0xf]
        %v963 = vld [vmem:[#allocation9 + $0x14] sm:$0xf]
        %v964 = vld [vmem:[#allocation9 + $0x18] sm:$0xf]
        %v965 = vld [vmem:[#allocation9 + $0x1c] sm:$0xf]
        %v966 = vld [vmem:[#allocation9 + $0x20] sm:$0xf]
        %v967 = vld [vmem:[#allocation9 + $0x24] sm:$0xf]
        %v968 = vld [vmem:[#allocation9 + $0x28] sm:$0xf]
        %v969 = vld [vmem:[#allocation9 + $0x2c] sm:$0xf]
        %v970 = vld [vmem:[#allocation9 + $0x30] sm:$0xf]
        %v971 = vld [vmem:[#allocation9 + $0x34] sm:$0xf]
        %v972 = vld [vmem:[#allocation9 + $0x38] sm:$0xf]
        %v973 = vld [vmem:[#allocation9 + $0x3c] sm:$0xf]
        %v974 = vld [vmem:[#allocation9 + $0x40] sm:$0xf]
        %v975 = vld [vmem:[#allocation9 + $0x44] sm:$0xf]
        %v976 = vld [vmem:[#allocation9 + $0x48] sm:$0xf]
        %v977 = vld [vmem:[#allocation9 + $0x4c] sm:$0xf]
        %v978 = vld [vmem:[#allocation9 + $0x50] sm:$0xf]
        %v979 = vld [vmem:[#allocation9 + $0x54] sm:$0xf]
        %v980 = vld [vmem:[#allocation9 + $0x58] sm:$0xf]
        %v981 = vld [vmem:[#allocation9 + $0x5c] sm:$0xf]
        %v982 = vld [vmem:[#allocation9 + $0x60] sm:$0xf]
        %v983 = vld [vmem:[#allocation9 + $0x64] sm:$0xf]
        %v984 = vld [vmem:[#allocation9 + $0x68] sm:$0xf]
        %v985 = vld [vmem:[#allocation9 + $0x6c] sm:$0xf]
        %v986 = vld [vmem:[#allocation9 + $0x70] sm:$0xf]
        %v987 = vld [vmem:[#allocation9 + $0x74] sm:$0xf]
        %v988 = vld [vmem:[#allocation9 + $0x78] sm:$0xf]
        %v989 = vld [vmem:[#allocation9 + $0x7c] sm:$0xf]
        %v990 = vld [vmem:[#allocation10] sm:$0x1]
        %v992 = vperm.slane %v990, 0
        %v1026 = vunpack.c.l.b16 %v958
        %v1027 = vunpack.c.l.b16 %v959
        %v1028 = vunpack.c.l.b16 %v960
        %v1029 = vunpack.c.l.b16 %v961
        %v1030 = vunpack.c.l.b16 %v962
        %v1031 = vunpack.c.l.b16 %v963
        %v1032 = vunpack.c.l.b16 %v964
        %v1033 = vunpack.c.l.b16 %v965
        %v1034 = vunpack.c.l.b16 %v966
        %v1035 = vunpack.c.l.b16 %v967
        %v1036 = vunpack.c.l.b16 %v968
        %v1037 = vunpack.c.l.b16 %v969
        %v1038 = vunpack.c.l.b16 %v970
        %v1039 = vunpack.c.l.b16 %v971
        %v1040 = vunpack.c.l.b16 %v972
        %v1041 = vunpack.c.l.b16 %v973
        %v1042 = vunpack.c.l.b16 %v974
        %v1043 = vunpack.c.l.b16 %v975
        %v1044 = vunpack.c.l.b16 %v976
        %v1045 = vunpack.c.l.b16 %v977
        %v1046 = vunpack.c.l.b16 %v978
        %v1047 = vunpack.c.l.b16 %v979
        %v1048 = vunpack.c.l.b16 %v980
        %v1049 = vunpack.c.l.b16 %v981
        %v1050 = vunpack.c.l.b16 %v982
        %v1051 = vunpack.c.l.b16 %v983
        %v1052 = vunpack.c.l.b16 %v984
        %v1053 = vunpack.c.l.b16 %v985
        %v1054 = vunpack.c.l.b16 %v986
        %v1055 = vunpack.c.l.b16 %v987
        %v1056 = vunpack.c.l.b16 %v988
        %v1057 = vunpack.c.l.b16 %v989
        %v1058 = vpack.c.b16 %v1027, %v1026
        %v1059 = vpack.c.b16 %v1029, %v1028
        %v1060 = vpack.c.b16 %v1031, %v1030
        %v1061 = vpack.c.b16 %v1033, %v1032
        %v1062 = vpack.c.b16 %v1035, %v1034
        %v1063 = vpack.c.b16 %v1037, %v1036
        %v1064 = vpack.c.b16 %v1039, %v1038
        %v1065 = vpack.c.b16 %v1041, %v1040
        %v1066 = vpack.c.b16 %v1043, %v1042
        %v1067 = vpack.c.b16 %v1045, %v1044
        %v1068 = vpack.c.b16 %v1047, %v1046
        %v1069 = vpack.c.b16 %v1049, %v1048
        %v1070 = vpack.c.b16 %v1051, %v1050
        %v1071 = vpack.c.b16 %v1053, %v1052
        %v1072 = vpack.c.b16 %v1055, %v1054
        %v1073 = vpack.c.b16 %v1057, %v1056
        %1090 = vmatpush.bf16.msra.mxu0 %v1065
        %1091 = vmatpush.bf16.msra.mxu0 %v1064
        %1092 = vmatpush.bf16.msra.mxu0 %v1063
        %1093 = vmatpush.bf16.msra.mxu0 %v1062
        %1094 = vmatpush.bf16.msra.mxu0 %v1061
        %1095 = vmatpush.bf16.msra.mxu0 %v1060
        %1096 = vmatpush.bf16.msra.mxu0 %v1059
        %1097 = vmatpush.bf16.msra.mxu0 %v1058
        %1098 = vmatmul.bf16.gmra.mxu0 %v584
        %v1099 = vpop.f32.mrf.mxu0
        %v1100 = vadd.f32 %v992, %v1099
        %v1101 = vpop.f32.mrf.mxu0
        %v1102 = vadd.f32 %v992, %v1101
        %1103 = vmatmul.bf16.gmra.mxu0 %v586
        %v1104 = vpop.f32.mrf.mxu0
        %v1105 = vadd.f32 %v992, %v1104
        %v1106 = vpop.f32.mrf.mxu0
        %v1107 = vadd.f32 %v992, %v1106
        %1108 = vmatmul.bf16.gmra.mxu0 %v588
        %v1109 = vpop.f32.mrf.mxu0
        %v1110 = vadd.f32 %v992, %v1109
        %v1111 = vpop.f32.mrf.mxu0
        %v1112 = vadd.f32 %v992, %v1111
        %1113 = vmatmul.bf16.gmra.mxu0 %v590
        %v1114 = vpop.f32.mrf.mxu0
        %v1115 = vadd.f32 %v992, %v1114
        %v1116 = vpop.f32.mrf.mxu0
        %v1117 = vadd.f32 %v992, %v1116
        %1118 = vmatmul.bf16.gmra.mxu0 %v592
        %v1119 = vpop.f32.mrf.mxu0
        %v1120 = vadd.f32 %v992, %v1119
        %v1121 = vpop.f32.mrf.mxu0
        %v1122 = vadd.f32 %v992, %v1121
        %1123 = vmatmul.bf16.gmra.mxu0 %v594
        %v1124 = vpop.f32.mrf.mxu0
        %v1125 = vadd.f32 %v992, %v1124
        %v1126 = vpop.f32.mrf.mxu0
        %v1127 = vadd.f32 %v992, %v1126
        %1128 = vmatmul.bf16.gmra.mxu0 %v596
        %v1129 = vpop.f32.mrf.mxu0
        %v1130 = vadd.f32 %v992, %v1129
        %v1131 = vpop.f32.mrf.mxu0
        %v1132 = vadd.f32 %v992, %v1131
        %1133 = vmatmul.bf16.gmra.mxu0 %v598
        %v1134 = vpop.f32.mrf.mxu0
        %v1135 = vadd.f32 %v992, %v1134
        %v1136 = vpop.f32.mrf.mxu0
        %v1137 = vadd.f32 %v992, %v1136
        %1138 = vmatmul.bf16.gmra.mxu0 %v600
        %v1139 = vpop.f32.mrf.mxu0
        %v1140 = vadd.f32 %v992, %v1139
        %v1141 = vpop.f32.mrf.mxu0
        %v1142 = vadd.f32 %v992, %v1141
        %1143 = vmatmul.bf16.gmra.mxu0 %v602
        %v1144 = vpop.f32.mrf.mxu0
        %v1145 = vadd.f32 %v992, %v1144
        %v1146 = vpop.f32.mrf.mxu0
        %v1147 = vadd.f32 %v992, %v1146
        %1148 = vmatmul.bf16.gmra.mxu0 %v604
        %v1149 = vpop.f32.mrf.mxu0
        %v1150 = vadd.f32 %v992, %v1149
        %v1151 = vpop.f32.mrf.mxu0
        %v1152 = vadd.f32 %v992, %v1151
        %1153 = vmatmul.bf16.gmra.mxu0 %v606
        %v1154 = vpop.f32.mrf.mxu0
        %v1155 = vadd.f32 %v992, %v1154
        %v1156 = vpop.f32.mrf.mxu0
        %v1157 = vadd.f32 %v992, %v1156
        %1158 = vmatmul.bf16.gmra.mxu0 %v608
        %v1159 = vpop.f32.mrf.mxu0
        %v1160 = vadd.f32 %v992, %v1159
        %v1161 = vpop.f32.mrf.mxu0
        %v1162 = vadd.f32 %v992, %v1161
        %1163 = vmatmul.bf16.gmra.mxu0 %v610
        %v1164 = vpop.f32.mrf.mxu0
        %v1165 = vadd.f32 %v992, %v1164
        %v1166 = vpop.f32.mrf.mxu0
        %v1167 = vadd.f32 %v992, %v1166
        %1168 = vmatmul.bf16.gmra.mxu0 %v612
        %v1169 = vpop.f32.mrf.mxu0
        %v1170 = vadd.f32 %v992, %v1169
        %v1171 = vpop.f32.mrf.mxu0
        %v1172 = vadd.f32 %v992, %v1171
        %1173 = vmatmul.bf16.gmra.mxu0 %v614
        %v1174 = vpop.f32.mrf.mxu0
        %v1175 = vadd.f32 %v992, %v1174
        %v1176 = vpop.f32.mrf.mxu0
        %v1177 = vadd.f32 %v992, %v1176
        %1178 = vdwg.mxu0
        %1179 = vmatpush.bf16.msra.mxu0 %v1073
        %1180 = vmatpush.bf16.msra.mxu0 %v1072
        %1181 = vmatpush.bf16.msra.mxu0 %v1071
        %1182 = vmatpush.bf16.msra.mxu0 %v1070
        %1183 = vmatpush.bf16.msra.mxu0 %v1069
        %1184 = vmatpush.bf16.msra.mxu0 %v1068
        %1185 = vmatpush.bf16.msra.mxu0 %v1067
        %1186 = vmatpush.bf16.msra.mxu0 %v1066
        %1187 = vmatmul.bf16.gmra.mxu0 %v585
        %v1188 = vpop.f32.mrf.mxu0
        %v1189 = vadd.f32 %v1100, %v1188
        %v1190 = vpop.f32.mrf.mxu0
        %v1191 = vadd.f32 %v1102, %v1190
        %1192 = vmatmul.bf16.gmra.mxu0 %v587
        %v1193 = vpop.f32.mrf.mxu0
        %v1194 = vadd.f32 %v1105, %v1193
        %v1195 = vpop.f32.mrf.mxu0
        %v1196 = vadd.f32 %v1107, %v1195
        %1197 = vmatmul.bf16.gmra.mxu0 %v589
        %v1198 = vpop.f32.mrf.mxu0
        %v1199 = vadd.f32 %v1110, %v1198
        %v1200 = vpop.f32.mrf.mxu0
        %v1201 = vadd.f32 %v1112, %v1200
        %1202 = vmatmul.bf16.gmra.mxu0 %v591
        %v1203 = vpop.f32.mrf.mxu0
        %v1204 = vadd.f32 %v1115, %v1203
        %v1205 = vpop.f32.mrf.mxu0
        %v1206 = vadd.f32 %v1117, %v1205
        %1207 = vmatmul.bf16.gmra.mxu0 %v593
        %v1208 = vpop.f32.mrf.mxu0
        %v1209 = vadd.f32 %v1120, %v1208
        %v1210 = vpop.f32.mrf.mxu0
        %v1211 = vadd.f32 %v1122, %v1210
        %1212 = vmatmul.bf16.gmra.mxu0 %v595
        %v1213 = vpop.f32.mrf.mxu0
        %v1214 = vadd.f32 %v1125, %v1213
        %v1215 = vpop.f32.mrf.mxu0
        %v1216 = vadd.f32 %v1127, %v1215
        %1217 = vmatmul.bf16.gmra.mxu0 %v597
        %v1218 = vpop.f32.mrf.mxu0
        %v1219 = vadd.f32 %v1130, %v1218
        %v1220 = vpop.f32.mrf.mxu0
        %v1221 = vadd.f32 %v1132, %v1220
        %1222 = vmatmul.bf16.gmra.mxu0 %v599
        %v1223 = vpop.f32.mrf.mxu0
        %v1224 = vadd.f32 %v1135, %v1223
        %v1225 = vpop.f32.mrf.mxu0
        %v1226 = vadd.f32 %v1137, %v1225
        %1227 = vmatmul.bf16.gmra.mxu0 %v601
        %v1228 = vpop.f32.mrf.mxu0
        %v1229 = vadd.f32 %v1140, %v1228
        %v1230 = vpop.f32.mrf.mxu0
        %v1231 = vadd.f32 %v1142, %v1230
        %1232 = vmatmul.bf16.gmra.mxu0 %v603
        %v1233 = vpop.f32.mrf.mxu0
        %v1234 = vadd.f32 %v1145, %v1233
        %v1235 = vpop.f32.mrf.mxu0
        %v1236 = vadd.f32 %v1147, %v1235
        %1237 = vmatmul.bf16.gmra.mxu0 %v605
        %v1238 = vpop.f32.mrf.mxu0
        %v1239 = vadd.f32 %v1150, %v1238
        %v1240 = vpop.f32.mrf.mxu0
        %v1241 = vadd.f32 %v1152, %v1240
        %1242 = vmatmul.bf16.gmra.mxu0 %v607
        %v1243 = vpop.f32.mrf.mxu0
        %v1244 = vadd.f32 %v1155, %v1243
        %v1245 = vpop.f32.mrf.mxu0
        %v1246 = vadd.f32 %v1157, %v1245
        %1247 = vmatmul.bf16.gmra.mxu0 %v609
        %v1248 = vpop.f32.mrf.mxu0
        %v1249 = vadd.f32 %v1160, %v1248
        %v1250 = vpop.f32.mrf.mxu0
        %v1251 = vadd.f32 %v1162, %v1250
        %1252 = vmatmul.bf16.gmra.mxu0 %v611
        %v1253 = vpop.f32.mrf.mxu0
        %v1254 = vadd.f32 %v1165, %v1253
        %v1255 = vpop.f32.mrf.mxu0
        %v1256 = vadd.f32 %v1167, %v1255
        %1257 = vmatmul.bf16.gmra.mxu0 %v613
        %v1258 = vpop.f32.mrf.mxu0
        %v1259 = vadd.f32 %v1170, %v1258
        %v1260 = vpop.f32.mrf.mxu0
        %v1261 = vadd.f32 %v1172, %v1260
        %1262 = vmatmul.bf16.gmra.mxu0 %v615
        %v1263 = vpop.f32.mrf.mxu0
        %v1264 = vadd.f32 %v1175, %v1263
        %v1265 = vpop.f32.mrf.mxu0
        %v1266 = vadd.f32 %v1177, %v1265
        %1267 = vdwg.mxu0
        %v1268 = vmax.f32 %v1189, 0.0
        %v1269 = vmax.f32 %v1191, 0.0
        %v1270 = vmax.f32 %v1194, 0.0
        %v1271 = vmax.f32 %v1196, 0.0
        %v1272 = vmax.f32 %v1199, 0.0
        %v1273 = vmax.f32 %v1201, 0.0
        %v1274 = vmax.f32 %v1204, 0.0
        %v1275 = vmax.f32 %v1206, 0.0
        %v1276 = vmax.f32 %v1209, 0.0
        %v1277 = vmax.f32 %v1211, 0.0
        %v1278 = vmax.f32 %v1214, 0.0
        %v1279 = vmax.f32 %v1216, 0.0
        %v1280 = vmax.f32 %v1219, 0.0
        %v1281 = vmax.f32 %v1221, 0.0
        %v1282 = vmax.f32 %v1224, 0.0
        %v1283 = vmax.f32 %v1226, 0.0
        %v1284 = vmax.f32 %v1229, 0.0
        %v1285 = vmax.f32 %v1231, 0.0
        %v1286 = vmax.f32 %v1234, 0.0
        %v1287 = vmax.f32 %v1236, 0.0
        %v1288 = vmax.f32 %v1239, 0.0
        %v1289 = vmax.f32 %v1241, 0.0
        %v1290 = vmax.f32 %v1244, 0.0
        %v1291 = vmax.f32 %v1246, 0.0
        %v1292 = vmax.f32 %v1249, 0.0
        %v1293 = vmax.f32 %v1251, 0.0
        %v1294 = vmax.f32 %v1254, 0.0
        %v1295 = vmax.f32 %v1256, 0.0
        %v1296 = vmax.f32 %v1259, 0.0
        %v1297 = vmax.f32 %v1261, 0.0
        %v1298 = vmax.f32 %v1264, 0.0
        %v1299 = vmax.f32 %v1266, 0.0
        %1300 = vst [vmem:[#allocation2] sm:$0xf] 0
        %1301 = vst [vmem:[#allocation2 + $0x4] sm:$0xf] 0
        %1302 = vst [vmem:[#allocation2 + $0x8] sm:$0xf] 0
        %1303 = vst [vmem:[#allocation2 + $0xc] sm:$0xf] 0
        %1304 = vst [vmem:[#allocation2 + $0x10] sm:$0xf] 0
        %1305 = vst [vmem:[#allocation2 + $0x14] sm:$0xf] 0
        %1306 = vst [vmem:[#allocation2 + $0x18] sm:$0xf] 0
        %1307 = vst [vmem:[#allocation2 + $0x1c] sm:$0xf] 0
        %1308 = vst [vmem:[#allocation2 + $0x20] sm:$0xf] 0
        %1309 = vst [vmem:[#allocation2 + $0x24] sm:$0xf] 0
        %1310 = vst [vmem:[#allocation2 + $0x28] sm:$0xf] 0
        %1311 = vst [vmem:[#allocation2 + $0x2c] sm:$0xf] 0
        %1312 = vst [vmem:[#allocation2 + $0x30] sm:$0xf] 0
        %1313 = vst [vmem:[#allocation2 + $0x34] sm:$0xf] 0
        %1314 = vst [vmem:[#allocation2 + $0x38] sm:$0xf] 0
        %1315 = vst [vmem:[#allocation2 + $0x3c] sm:$0xf] 0
        %1316 = vst [vmem:[#allocation2 + $0x40] sm:$0xf] 0
        %1317 = vst [vmem:[#allocation2 + $0x44] sm:$0xf] 0
        %1318 = vst [vmem:[#allocation2 + $0x48] sm:$0xf] 0
        %1319 = vst [vmem:[#allocation2 + $0x4c] sm:$0xf] 0
        %1320 = vst [vmem:[#allocation2 + $0x50] sm:$0xf] 0
        %1321 = vst [vmem:[#allocation2 + $0x54] sm:$0xf] 0
        %1322 = vst [vmem:[#allocation2 + $0x58] sm:$0xf] 0
        %1323 = vst [vmem:[#allocation2 + $0x5c] sm:$0xf] 0
        %1324 = vst [vmem:[#allocation2 + $0x60] sm:$0xf] 0
        %1325 = vst [vmem:[#allocation2 + $0x64] sm:$0xf] 0
        %1326 = vst [vmem:[#allocation2 + $0x68] sm:$0xf] 0
        %1327 = vst [vmem:[#allocation2 + $0x6c] sm:$0xf] 0
        %1328 = vst [vmem:[#allocation2 + $0x70] sm:$0xf] 0
        %1329 = vst [vmem:[#allocation2 + $0x74] sm:$0xf] 0
        %1330 = vst [vmem:[#allocation2 + $0x78] sm:$0xf] 0
        %1331 = vst [vmem:[#allocation2 + $0x7c] sm:$0xf] 0
        %1332 = vst [vmem:[#allocation2 + $0x80] sm:$0xf] 0
        %1333 = vst [vmem:[#allocation2 + $0x84] sm:$0xf] 0
        %1334 = vst [vmem:[#allocation2 + $0x88] sm:$0xf] 0
        %1335 = vst [vmem:[#allocation2 + $0x8c] sm:$0xf] 0
        %1336 = vst [vmem:[#allocation2 + $0x90] sm:$0xf] 0
        %1337 = vst [vmem:[#allocation2 + $0x94] sm:$0xf] 0
        %1338 = vst [vmem:[#allocation2 + $0x98] sm:$0xf] 0
        %1339 = vst [vmem:[#allocation2 + $0x9c] sm:$0xf] 0
        %1340 = vst [vmem:[#allocation2 + $0xa0] sm:$0xf] 0
        %1341 = vst [vmem:[#allocation2 + $0xa4] sm:$0xf] 0
        %1342 = vst [vmem:[#allocation2 + $0xa8] sm:$0xf] 0
        %1343 = vst [vmem:[#allocation2 + $0xac] sm:$0xf] 0
        %1344 = vst [vmem:[#allocation2 + $0xb0] sm:$0xf] 0
        %1345 = vst [vmem:[#allocation2 + $0xb4] sm:$0xf] 0
        %1346 = vst [vmem:[#allocation2 + $0xb8] sm:$0xf] 0
        %1347 = vst [vmem:[#allocation2 + $0xbc] sm:$0xf] 0
        %v1348 = vpack.c.bf16 %v1268, %v1268
        %v1349 = vpack.c.bf16 %v1269, %v1269
        %v1350 = vpack.c.bf16 %v1270, %v1270
        %v1351 = vpack.c.bf16 %v1271, %v1271
        %v1352 = vpack.c.bf16 %v1272, %v1272
        %v1353 = vpack.c.bf16 %v1273, %v1273
        %v1354 = vpack.c.bf16 %v1274, %v1274
        %v1355 = vpack.c.bf16 %v1275, %v1275
        %v1356 = vpack.c.bf16 %v1276, %v1276
        %v1357 = vpack.c.bf16 %v1277, %v1277
        %v1358 = vpack.c.bf16 %v1278, %v1278
        %v1359 = vpack.c.bf16 %v1279, %v1279
        %v1360 = vpack.c.bf16 %v1280, %v1280
        %v1361 = vpack.c.bf16 %v1281, %v1281
        %v1362 = vpack.c.bf16 %v1282, %v1282
        %v1363 = vpack.c.bf16 %v1283, %v1283
        %v1364 = vpack.c.bf16 %v1284, %v1284
        %v1365 = vpack.c.bf16 %v1285, %v1285
        %v1366 = vpack.c.bf16 %v1286, %v1286
        %v1367 = vpack.c.bf16 %v1287, %v1287
        %v1368 = vpack.c.bf16 %v1288, %v1288
        %v1369 = vpack.c.bf16 %v1289, %v1289
        %v1370 = vpack.c.bf16 %v1290, %v1290
        %v1371 = vpack.c.bf16 %v1291, %v1291
        %v1372 = vpack.c.bf16 %v1292, %v1292
        %v1373 = vpack.c.bf16 %v1293, %v1293
        %v1374 = vpack.c.bf16 %v1294, %v1294
        %v1375 = vpack.c.bf16 %v1295, %v1295
        %v1376 = vpack.c.bf16 %v1296, %v1296
        %v1377 = vpack.c.bf16 %v1297, %v1297
        %v1378 = vpack.c.bf16 %v1298, %v1298
        %v1379 = vpack.c.bf16 %v1299, %v1299
        %1380 = vst [vmem:[#allocation2] sm:$0xf] %v1348
        %1381 = vst [vmem:[#allocation2 + $0x4] sm:$0xf] %v1349
        %1382 = vst [vmem:[#allocation2 + $0xc] sm:$0xf] %v1350
        %1383 = vst [vmem:[#allocation2 + $0x10] sm:$0xf] %v1351
        %1384 = vst [vmem:[#allocation2 + $0x18] sm:$0xf] %v1352
        %1385 = vst [vmem:[#allocation2 + $0x1c] sm:$0xf] %v1353
        %1386 = vst [vmem:[#allocation2 + $0x24] sm:$0xf] %v1354
        %1387 = vst [vmem:[#allocation2 + $0x28] sm:$0xf] %v1355
        %1388 = vst [vmem:[#allocation2 + $0x30] sm:$0xf] %v1356
        %1389 = vst [vmem:[#allocation2 + $0x34] sm:$0xf] %v1357
        %1390 = vst [vmem:[#allocation2 + $0x3c] sm:$0xf] %v1358
        %1391 = vst [vmem:[#allocation2 + $0x40] sm:$0xf] %v1359
        %1392 = vst [vmem:[#allocation2 + $0x48] sm:$0xf] %v1360
        %1393 = vst [vmem:[#allocation2 + $0x4c] sm:$0xf] %v1361
        %1394 = vst [vmem:[#allocation2 + $0x54] sm:$0xf] %v1362
        %1395 = vst [vmem:[#allocation2 + $0x58] sm:$0xf] %v1363
        %1396 = vst [vmem:[#allocation2 + $0x60] sm:$0xf] %v1364
        %1397 = vst [vmem:[#allocation2 + $0x64] sm:$0xf] %v1365
        %1398 = vst [vmem:[#allocation2 + $0x6c] sm:$0xf] %v1366
        %1399 = vst [vmem:[#allocation2 + $0x70] sm:$0xf] %v1367
        %1400 = vst [vmem:[#allocation2 + $0x78] sm:$0xf] %v1368
        %1401 = vst [vmem:[#allocation2 + $0x7c] sm:$0xf] %v1369
        %1402 = vst [vmem:[#allocation2 + $0x84] sm:$0xf] %v1370
        %1403 = vst [vmem:[#allocation2 + $0x88] sm:$0xf] %v1371
        %1404 = vst [vmem:[#allocation2 + $0x90] sm:$0xf] %v1372
        %1405 = vst [vmem:[#allocation2 + $0x94] sm:$0xf] %v1373
        %1406 = vst [vmem:[#allocation2 + $0x9c] sm:$0xf] %v1374
        %1407 = vst [vmem:[#allocation2 + $0xa0] sm:$0xf] %v1375
        %1408 = vst [vmem:[#allocation2 + $0xa8] sm:$0xf] %v1376
        %1409 = vst [vmem:[#allocation2 + $0xac] sm:$0xf] %v1377
        %1410 = vst [vmem:[#allocation2 + $0xb4] sm:$0xf] %v1378
        %1411 = vst [vmem:[#allocation2 + $0xb8] sm:$0xf] %v1379
        %v1412 = vld [vmem:[#allocation2] sm:$0xf]
        %v1413 = vld [vmem:[#allocation2 + $0x4] sm:$0xf]
        %v1414 = vld [vmem:[#allocation2 + $0x8] sm:$0xf]
        %v1415 = vld [vmem:[#allocation2 + $0xc] sm:$0xf]
        %v1416 = vld [vmem:[#allocation2 + $0x10] sm:$0xf]
        %v1417 = vld [vmem:[#allocation2 + $0x14] sm:$0xf]
        %v1418 = vld [vmem:[#allocation2 + $0x18] sm:$0xf]
        %v1419 = vld [vmem:[#allocation2 + $0x1c] sm:$0xf]
        %v1420 = vld [vmem:[#allocation2 + $0x20] sm:$0xf]
        %v1421 = vld [vmem:[#allocation2 + $0x24] sm:$0xf]
        %v1422 = vld [vmem:[#allocation2 + $0x28] sm:$0xf]
        %v1423 = vld [vmem:[#allocation2 + $0x2c] sm:$0xf]
        %v1424 = vld [vmem:[#allocation2 + $0x30] sm:$0xf]
        %v1425 = vld [vmem:[#allocation2 + $0x34] sm:$0xf]
        %v1426 = vld [vmem:[#allocation2 + $0x38] sm:$0xf]
        %v1427 = vld [vmem:[#allocation2 + $0x3c] sm:$0xf]
        %v1428 = vld [vmem:[#allocation2 + $0x40] sm:$0xf]
        %v1429 = vld [vmem:[#allocation2 + $0x44] sm:$0xf]
        %v1430 = vld [vmem:[#allocation2 + $0x48] sm:$0xf]
        %v1431 = vld [vmem:[#allocation2 + $0x4c] sm:$0xf]
        %v1432 = vld [vmem:[#allocation2 + $0x50] sm:$0xf]
        %v1433 = vld [vmem:[#allocation2 + $0x54] sm:$0xf]
        %v1434 = vld [vmem:[#allocation2 + $0x58] sm:$0xf]
        %v1435 = vld [vmem:[#allocation2 + $0x5c] sm:$0xf]
        %v1436 = vld [vmem:[#allocation2 + $0x60] sm:$0xf]
        %v1437 = vld [vmem:[#allocation2 + $0x64] sm:$0xf]
        %v1438 = vld [vmem:[#allocation2 + $0x68] sm:$0xf]
        %v1439 = vld [vmem:[#allocation2 + $0x6c] sm:$0xf]
        %v1440 = vld [vmem:[#allocation2 + $0x70] sm:$0xf]
        %v1441 = vld [vmem:[#allocation2 + $0x74] sm:$0xf]
        %v1442 = vld [vmem:[#allocation2 + $0x78] sm:$0xf]
        %v1443 = vld [vmem:[#allocation2 + $0x7c] sm:$0xf]
        %v1444 = vld [vmem:[#allocation2 + $0x80] sm:$0xf]
        %v1445 = vld [vmem:[#allocation2 + $0x84] sm:$0xf]
        %v1446 = vld [vmem:[#allocation2 + $0x88] sm:$0xf]
        %v1447 = vld [vmem:[#allocation2 + $0x8c] sm:$0xf]
        %v1448 = vld [vmem:[#allocation2 + $0x90] sm:$0xf]
        %v1449 = vld [vmem:[#allocation2 + $0x94] sm:$0xf]
        %v1450 = vld [vmem:[#allocation2 + $0x98] sm:$0xf]
        %v1451 = vld [vmem:[#allocation2 + $0x9c] sm:$0xf]
        %v1452 = vld [vmem:[#allocation2 + $0xa0] sm:$0xf]
        %v1453 = vld [vmem:[#allocation2 + $0xa4] sm:$0xf]
        %v1454 = vld [vmem:[#allocation2 + $0xa8] sm:$0xf]
        %v1455 = vld [vmem:[#allocation2 + $0xac] sm:$0xf]
        %v1456 = vld [vmem:[#allocation2 + $0xb0] sm:$0xf]
        %v1457 = vld [vmem:[#allocation2 + $0xb4] sm:$0xf]
        %v1458 = vld [vmem:[#allocation2 + $0xb8] sm:$0xf]
        %v1459 = vld [vmem:[#allocation2 + $0xbc] sm:$0xf]
        %v1460 = vld [vmem:[#allocation13] sm:$0x1]
        %v1461 = vld [vmem:[#allocation12] sm:$0xf]
        %v1462 = vld [vmem:[#allocation12 + $0x4] sm:$0xf]
        %v1463 = vld [vmem:[#allocation12 + $0x8] sm:$0xf]
        %v1464 = vld [vmem:[#allocation12 + $0xc] sm:$0xf]
        %v1465 = vld [vmem:[#allocation12 + $0x10] sm:$0xf]
        %v1466 = vld [vmem:[#allocation12 + $0x14] sm:$0xf]
        %v1467 = vld [vmem:[#allocation12 + $0x18] sm:$0xf]
        %v1468 = vld [vmem:[#allocation12 + $0x1c] sm:$0xf]
        %v1469 = vld [vmem:[#allocation12 + $0x20] sm:$0xf]
        %v1470 = vld [vmem:[#allocation12 + $0x24] sm:$0xf]
        %v1471 = vld [vmem:[#allocation12 + $0x28] sm:$0xf]
        %v1472 = vld [vmem:[#allocation12 + $0x2c] sm:$0xf]
        %v1473 = vld [vmem:[#allocation12 + $0x30] sm:$0xf]
        %v1474 = vld [vmem:[#allocation12 + $0x34] sm:$0xf]
        %v1475 = vld [vmem:[#allocation12 + $0x38] sm:$0xf]
        %v1476 = vld [vmem:[#allocation12 + $0x3c] sm:$0xf]
        %v1509 = vunpack.c.l.b16 %v1412
        %v1510 = vunpack.c.l.b16 %v1413
        %v1511 = vunpack.c.l.b16 %v1415
        %v1512 = vunpack.c.l.b16 %v1416
        %v1513 = vunpack.c.l.b16 %v1418
        %v1514 = vunpack.c.l.b16 %v1419
        %v1515 = vunpack.c.l.b16 %v1421
        %v1516 = vunpack.c.l.b16 %v1422
        %v1517 = vunpack.c.l.b16 %v1424
        %v1518 = vunpack.c.l.b16 %v1425
        %v1519 = vunpack.c.l.b16 %v1427
        %v1520 = vunpack.c.l.b16 %v1428
        %v1521 = vunpack.c.l.b16 %v1430
        %v1522 = vunpack.c.l.b16 %v1431
        %v1523 = vunpack.c.l.b16 %v1433
        %v1524 = vunpack.c.l.b16 %v1434
        %v1525 = vunpack.c.l.b16 %v1436
        %v1526 = vunpack.c.l.b16 %v1437
        %v1527 = vunpack.c.l.b16 %v1439
        %v1528 = vunpack.c.l.b16 %v1440
        %v1529 = vunpack.c.l.b16 %v1442
        %v1530 = vunpack.c.l.b16 %v1443
        %v1531 = vunpack.c.l.b16 %v1445
        %v1532 = vunpack.c.l.b16 %v1446
        %v1533 = vunpack.c.l.b16 %v1448
        %v1534 = vunpack.c.l.b16 %v1449
        %v1535 = vunpack.c.l.b16 %v1451
        %v1536 = vunpack.c.l.b16 %v1452
        %v1537 = vunpack.c.l.b16 %v1454
        %v1538 = vunpack.c.l.b16 %v1455
        %v1539 = vunpack.c.l.b16 %v1457
        %v1540 = vunpack.c.l.b16 %v1458
        %v1541 = vpack.c.b16 %v1510, %v1509
        %v1542 = vpack.c.b16 %v1512, %v1511
        %v1543 = vpack.c.b16 %v1514, %v1513
        %v1544 = vpack.c.b16 %v1516, %v1515
        %v1545 = vpack.c.b16 %v1518, %v1517
        %v1546 = vpack.c.b16 %v1520, %v1519
        %v1547 = vpack.c.b16 %v1522, %v1521
        %v1548 = vpack.c.b16 %v1524, %v1523
        %v1549 = vpack.c.b16 %v1526, %v1525
        %v1550 = vpack.c.b16 %v1528, %v1527
        %v1551 = vpack.c.b16 %v1530, %v1529
        %v1552 = vpack.c.b16 %v1532, %v1531
        %v1553 = vpack.c.b16 %v1534, %v1533
        %v1554 = vpack.c.b16 %v1536, %v1535
        %v1555 = vpack.c.b16 %v1538, %v1537
        %v1556 = vpack.c.b16 %v1540, %v1539
        %v1589 = vunpack.c.l.b16 %v1461
        %v1590 = vunpack.c.l.b16 %v1462
        %v1591 = vunpack.c.l.b16 %v1463
        %v1592 = vunpack.c.l.b16 %v1464
        %v1593 = vunpack.c.l.b16 %v1465
        %v1594 = vunpack.c.l.b16 %v1466
        %v1595 = vunpack.c.l.b16 %v1467
        %v1596 = vunpack.c.l.b16 %v1468
        %v1597 = vunpack.c.l.b16 %v1469
        %v1598 = vunpack.c.l.b16 %v1470
        %v1599 = vunpack.c.l.b16 %v1471
        %v1600 = vunpack.c.l.b16 %v1472
        %v1601 = vunpack.c.l.b16 %v1473
        %v1602 = vunpack.c.l.b16 %v1474
        %v1603 = vunpack.c.l.b16 %v1475
        %v1604 = vunpack.c.l.b16 %v1476
        %v1605 = vpack.c.b16 %v1590, %v1589
        %v1606 = vpack.c.b16 %v1592, %v1591
        %v1607 = vpack.c.b16 %v1594, %v1593
        %v1608 = vpack.c.b16 %v1596, %v1595
        %v1609 = vpack.c.b16 %v1598, %v1597
        %v1610 = vpack.c.b16 %v1600, %v1599
        %v1611 = vpack.c.b16 %v1602, %v1601
        %v1612 = vpack.c.b16 %v1604, %v1603
        %1621 = vmatpush.bf16.msra.mxu0 %v1612
        %1622 = vmatpush.bf16.msra.mxu0 %v1611
        %1623 = vmatpush.bf16.msra.mxu0 %v1610
        %1624 = vmatpush.bf16.msra.mxu0 %v1609
        %1625 = vmatpush.bf16.msra.mxu0 %v1608
        %1626 = vmatpush.bf16.msra.mxu0 %v1607
        %1627 = vmatpush.bf16.msra.mxu0 %v1606
        %1628 = vmatpush.bf16.msra.mxu0 %v1605
        %1629 = vmatmul.bf16.gmra.mxu0 %v1541
        %v1630 = vpop.f32.mrf.mxu0
        %v1631 = vadd.f32 0.0, %v1630
        %v1632 = vpop.f32.mrf.mxu0
        %v1633 = vadd.f32 0.0, %v1632
        %1634 = vmatmul.bf16.gmra.mxu0 %v1542
        %v1635 = vpop.f32.mrf.mxu0
        %v1636 = vadd.f32 0.0, %v1635
        %v1637 = vpop.f32.mrf.mxu0
        %v1638 = vadd.f32 0.0, %v1637
        %1639 = vmatmul.bf16.gmra.mxu0 %v1543
        %v1640 = vpop.f32.mrf.mxu0
        %v1641 = vadd.f32 0.0, %v1640
        %v1642 = vpop.f32.mrf.mxu0
        %v1643 = vadd.f32 0.0, %v1642
        %1644 = vmatmul.bf16.gmra.mxu0 %v1544
        %v1645 = vpop.f32.mrf.mxu0
        %v1646 = vadd.f32 0.0, %v1645
        %v1647 = vpop.f32.mrf.mxu0
        %v1648 = vadd.f32 0.0, %v1647
        %1649 = vmatmul.bf16.gmra.mxu0 %v1545
        %v1650 = vpop.f32.mrf.mxu0
        %v1651 = vadd.f32 0.0, %v1650
        %v1652 = vpop.f32.mrf.mxu0
        %v1653 = vadd.f32 0.0, %v1652
        %1654 = vmatmul.bf16.gmra.mxu0 %v1546
        %v1655 = vpop.f32.mrf.mxu0
        %v1656 = vadd.f32 0.0, %v1655
        %v1657 = vpop.f32.mrf.mxu0
        %v1658 = vadd.f32 0.0, %v1657
        %1659 = vmatmul.bf16.gmra.mxu0 %v1547
        %v1660 = vpop.f32.mrf.mxu0
        %v1661 = vadd.f32 0.0, %v1660
        %v1662 = vpop.f32.mrf.mxu0
        %v1663 = vadd.f32 0.0, %v1662
        %1664 = vmatmul.bf16.gmra.mxu0 %v1548
        %v1665 = vpop.f32.mrf.mxu0
        %v1666 = vadd.f32 0.0, %v1665
        %v1667 = vpop.f32.mrf.mxu0
        %v1668 = vadd.f32 0.0, %v1667
        %1669 = vmatmul.bf16.gmra.mxu0 %v1549
        %v1670 = vpop.f32.mrf.mxu0
        %v1671 = vadd.f32 0.0, %v1670
        %v1672 = vpop.f32.mrf.mxu0
        %v1673 = vadd.f32 0.0, %v1672
        %1674 = vmatmul.bf16.gmra.mxu0 %v1550
        %v1675 = vpop.f32.mrf.mxu0
        %v1676 = vadd.f32 0.0, %v1675
        %v1677 = vpop.f32.mrf.mxu0
        %v1678 = vadd.f32 0.0, %v1677
        %1679 = vmatmul.bf16.gmra.mxu0 %v1551
        %v1680 = vpop.f32.mrf.mxu0
        %v1681 = vadd.f32 0.0, %v1680
        %v1682 = vpop.f32.mrf.mxu0
        %v1683 = vadd.f32 0.0, %v1682
        %1684 = vmatmul.bf16.gmra.mxu0 %v1552
        %v1685 = vpop.f32.mrf.mxu0
        %v1686 = vadd.f32 0.0, %v1685
        %v1687 = vpop.f32.mrf.mxu0
        %v1688 = vadd.f32 0.0, %v1687
        %1689 = vmatmul.bf16.gmra.mxu0 %v1553
        %v1690 = vpop.f32.mrf.mxu0
        %v1691 = vadd.f32 0.0, %v1690
        %v1692 = vpop.f32.mrf.mxu0
        %v1693 = vadd.f32 0.0, %v1692
        %1694 = vmatmul.bf16.gmra.mxu0 %v1554
        %v1695 = vpop.f32.mrf.mxu0
        %v1696 = vadd.f32 0.0, %v1695
        %v1697 = vpop.f32.mrf.mxu0
        %v1698 = vadd.f32 0.0, %v1697
        %1699 = vmatmul.bf16.gmra.mxu0 %v1555
        %v1700 = vpop.f32.mrf.mxu0
        %v1701 = vadd.f32 0.0, %v1700
        %v1702 = vpop.f32.mrf.mxu0
        %v1703 = vadd.f32 0.0, %v1702
        %1704 = vmatmul.bf16.gmra.mxu0 %v1556
        %v1705 = vpop.f32.mrf.mxu0
        %v1706 = vadd.f32 0.0, %v1705
        %v1707 = vpop.f32.mrf.mxu0
        %v1708 = vadd.f32 0.0, %v1707
        %1709 = vdwg.mxu0
        %v1711 = vperm.slane %v1460, 0
        %v1713 = vadd.f32 %v1711, %v1631
        %v1714 = vadd.f32 %v1711, %v1633
        %v1715 = vadd.f32 %v1711, %v1636
        %v1716 = vadd.f32 %v1711, %v1638
        %v1717 = vadd.f32 %v1711, %v1641
        %v1718 = vadd.f32 %v1711, %v1643
        %v1719 = vadd.f32 %v1711, %v1646
        %v1720 = vadd.f32 %v1711, %v1648
        %v1721 = vadd.f32 %v1711, %v1651
        %v1722 = vadd.f32 %v1711, %v1653
        %v1723 = vadd.f32 %v1711, %v1656
        %v1724 = vadd.f32 %v1711, %v1658
        %v1725 = vadd.f32 %v1711, %v1661
        %v1726 = vadd.f32 %v1711, %v1663
        %v1727 = vadd.f32 %v1711, %v1666
        %v1728 = vadd.f32 %v1711, %v1668
        %v1729 = vadd.f32 %v1711, %v1671
        %v1730 = vadd.f32 %v1711, %v1673
        %v1731 = vadd.f32 %v1711, %v1676
        %v1732 = vadd.f32 %v1711, %v1678
        %v1733 = vadd.f32 %v1711, %v1681
        %v1734 = vadd.f32 %v1711, %v1683
        %v1735 = vadd.f32 %v1711, %v1686
        %v1736 = vadd.f32 %v1711, %v1688
        %v1737 = vadd.f32 %v1711, %v1691
        %v1738 = vadd.f32 %v1711, %v1693
        %v1739 = vadd.f32 %v1711, %v1696
        %v1740 = vadd.f32 %v1711, %v1698
        %v1741 = vadd.f32 %v1711, %v1701
        %v1742 = vadd.f32 %v1711, %v1703
        %v1743 = vadd.f32 %v1711, %v1706
        %v1744 = vadd.f32 %v1711, %v1708
        %vm1745 = vsmask.f32 3328
        %vm1746 = vsmask.f32 7440
        %vm1747 = vmor %vm1745, %vm1746
        %v1749 = vshrl.u32 %v1412, 16
        %v1751 = vrot.slane %v1749, 4
        %v1752 = vshll.u32 %v1412, 16
        %v1754 = vrot.slane %v1752, 5
        %v1755 = vor.u32 %v1751, %v1754
        %v1756 = vrot.slane %v1755, 4
        %v1758 = vshll.u32 %v1413, 16
        %v1760 = vrot.slane %v1758, 5
        %v1761 = vsel %vm1747, %v1756, %v1760
        %v1762 = vshrl.u32 %v1413, 16
        %v1764 = vrot.slane %v1762, 4
        %v1765 = vor.u32 %v1764, %v1760
        %v1766 = vrot.slane %v1765, 4
        %v1768 = vshll.u32 %v1414, 16
        %v1770 = vrot.slane %v1768, 5
        %v1771 = vsel %vm1747, %v1766, %v1770
        %v1773 = vshrl.u32 %v1415, 16
        %v1775 = vrot.slane %v1773, 4
        %v1776 = vshll.u32 %v1415, 16
        %v1778 = vrot.slane %v1776, 5
        %v1779 = vor.u32 %v1775, %v1778
        %v1780 = vrot.slane %v1779, 4
        %v1782 = vshll.u32 %v1416, 16
        %v1784 = vrot.slane %v1782, 5
        %v1785 = vsel %vm1747, %v1780, %v1784
        %v1786 = vshrl.u32 %v1416, 16
        %v1788 = vrot.slane %v1786, 4
        %v1789 = vor.u32 %v1788, %v1784
        %v1790 = vrot.slane %v1789, 4
        %v1792 = vshll.u32 %v1417, 16
        %v1794 = vrot.slane %v1792, 5
        %v1795 = vsel %vm1747, %v1790, %v1794
        %v1797 = vshrl.u32 %v1418, 16
        %v1799 = vrot.slane %v1797, 4
        %v1800 = vshll.u32 %v1418, 16
        %v1802 = vrot.slane %v1800, 5
        %v1803 = vor.u32 %v1799, %v1802
        %v1804 = vrot.slane %v1803, 4
        %v1806 = vshll.u32 %v1419, 16
        %v1808 = vrot.slane %v1806, 5
        %v1809 = vsel %vm1747, %v1804, %v1808
        %v1810 = vshrl.u32 %v1419, 16
        %v1812 = vrot.slane %v1810, 4
        %v1813 = vor.u32 %v1812, %v1808
        %v1814 = vrot.slane %v1813, 4
        %v1816 = vshll.u32 %v1420, 16
        %v1818 = vrot.slane %v1816, 5
        %v1819 = vsel %vm1747, %v1814, %v1818
        %v1821 = vshrl.u32 %v1421, 16
        %v1823 = vrot.slane %v1821, 4
        %v1824 = vshll.u32 %v1421, 16
        %v1826 = vrot.slane %v1824, 5
        %v1827 = vor.u32 %v1823, %v1826
        %v1828 = vrot.slane %v1827, 4
        %v1830 = vshll.u32 %v1422, 16
        %v1832 = vrot.slane %v1830, 5
        %v1833 = vsel %vm1747, %v1828, %v1832
        %v1834 = vshrl.u32 %v1422, 16
        %v1836 = vrot.slane %v1834, 4
        %v1837 = vor.u32 %v1836, %v1832
        %v1838 = vrot.slane %v1837, 4
        %v1840 = vshll.u32 %v1423, 16
        %v1842 = vrot.slane %v1840, 5
        %v1843 = vsel %vm1747, %v1838, %v1842
        %v1845 = vshrl.u32 %v1424, 16
        %v1847 = vrot.slane %v1845, 4
        %v1848 = vshll.u32 %v1424, 16
        %v1850 = vrot.slane %v1848, 5
        %v1851 = vor.u32 %v1847, %v1850
        %v1852 = vrot.slane %v1851, 4
        %v1854 = vshll.u32 %v1425, 16
        %v1856 = vrot.slane %v1854, 5
        %v1857 = vsel %vm1747, %v1852, %v1856
        %v1858 = vshrl.u32 %v1425, 16
        %v1860 = vrot.slane %v1858, 4
        %v1861 = vor.u32 %v1860, %v1856
        %v1862 = vrot.slane %v1861, 4
        %v1864 = vshll.u32 %v1426, 16
        %v1866 = vrot.slane %v1864, 5
        %v1867 = vsel %vm1747, %v1862, %v1866
        %v1869 = vshrl.u32 %v1427, 16
        %v1871 = vrot.slane %v1869, 4
        %v1872 = vshll.u32 %v1427, 16
        %v1874 = vrot.slane %v1872, 5
        %v1875 = vor.u32 %v1871, %v1874
        %v1876 = vrot.slane %v1875, 4
        %v1878 = vshll.u32 %v1428, 16
        %v1880 = vrot.slane %v1878, 5
        %v1881 = vsel %vm1747, %v1876, %v1880
        %v1882 = vshrl.u32 %v1428, 16
        %v1884 = vrot.slane %v1882, 4
        %v1885 = vor.u32 %v1884, %v1880
        %v1886 = vrot.slane %v1885, 4
        %v1888 = vshll.u32 %v1429, 16
        %v1890 = vrot.slane %v1888, 5
        %v1891 = vsel %vm1747, %v1886, %v1890
        %v1893 = vshrl.u32 %v1430, 16
        %v1895 = vrot.slane %v1893, 4
        %v1896 = vshll.u32 %v1430, 16
        %v1898 = vrot.slane %v1896, 5
        %v1899 = vor.u32 %v1895, %v1898
        %v1900 = vrot.slane %v1899, 4
        %v1902 = vshll.u32 %v1431, 16
        %v1904 = vrot.slane %v1902, 5
        %v1905 = vsel %vm1747, %v1900, %v1904
        %v1906 = vshrl.u32 %v1431, 16
        %v1908 = vrot.slane %v1906, 4
        %v1909 = vor.u32 %v1908, %v1904
        %v1910 = vrot.slane %v1909, 4
        %v1912 = vshll.u32 %v1432, 16
        %v1914 = vrot.slane %v1912, 5
        %v1915 = vsel %vm1747, %v1910, %v1914
        %v1917 = vshrl.u32 %v1433, 16
        %v1919 = vrot.slane %v1917, 4
        %v1920 = vshll.u32 %v1433, 16
        %v1922 = vrot.slane %v1920, 5
        %v1923 = vor.u32 %v1919, %v1922
        %v1924 = vrot.slane %v1923, 4
        %v1926 = vshll.u32 %v1434, 16
        %v1928 = vrot.slane %v1926, 5
        %v1929 = vsel %vm1747, %v1924, %v1928
        %v1930 = vshrl.u32 %v1434, 16
        %v1932 = vrot.slane %v1930, 4
        %v1933 = vor.u32 %v1932, %v1928
        %v1934 = vrot.slane %v1933, 4
        %v1936 = vshll.u32 %v1435, 16
        %v1938 = vrot.slane %v1936, 5
        %v1939 = vsel %vm1747, %v1934, %v1938
        %v1941 = vshrl.u32 %v1436, 16
        %v1943 = vrot.slane %v1941, 4
        %v1944 = vshll.u32 %v1436, 16
        %v1946 = vrot.slane %v1944, 5
        %v1947 = vor.u32 %v1943, %v1946
        %v1948 = vrot.slane %v1947, 4
        %v1950 = vshll.u32 %v1437, 16
        %v1952 = vrot.slane %v1950, 5
        %v1953 = vsel %vm1747, %v1948, %v1952
        %v1954 = vshrl.u32 %v1437, 16
        %v1956 = vrot.slane %v1954, 4
        %v1957 = vor.u32 %v1956, %v1952
        %v1958 = vrot.slane %v1957, 4
        %v1960 = vshll.u32 %v1438, 16
        %v1962 = vrot.slane %v1960, 5
        %v1963 = vsel %vm1747, %v1958, %v1962
        %v1965 = vshrl.u32 %v1439, 16
        %v1967 = vrot.slane %v1965, 4
        %v1968 = vshll.u32 %v1439, 16
        %v1970 = vrot.slane %v1968, 5
        %v1971 = vor.u32 %v1967, %v1970
        %v1972 = vrot.slane %v1971, 4
        %v1974 = vshll.u32 %v1440, 16
        %v1976 = vrot.slane %v1974, 5
        %v1977 = vsel %vm1747, %v1972, %v1976
        %v1978 = vshrl.u32 %v1440, 16
        %v1980 = vrot.slane %v1978, 4
        %v1981 = vor.u32 %v1980, %v1976
        %v1982 = vrot.slane %v1981, 4
        %v1984 = vshll.u32 %v1441, 16
        %v1986 = vrot.slane %v1984, 5
        %v1987 = vsel %vm1747, %v1982, %v1986
        %v1989 = vshrl.u32 %v1442, 16
        %v1991 = vrot.slane %v1989, 4
        %v1992 = vshll.u32 %v1442, 16
        %v1994 = vrot.slane %v1992, 5
        %v1995 = vor.u32 %v1991, %v1994
        %v1996 = vrot.slane %v1995, 4
        %v1998 = vshll.u32 %v1443, 16
        %v2000 = vrot.slane %v1998, 5
        %v2001 = vsel %vm1747, %v1996, %v2000
        %v2002 = vshrl.u32 %v1443, 16
        %v2004 = vrot.slane %v2002, 4
        %v2005 = vor.u32 %v2004, %v2000
        %v2006 = vrot.slane %v2005, 4
        %v2008 = vshll.u32 %v1444, 16
        %v2010 = vrot.slane %v2008, 5
        %v2011 = vsel %vm1747, %v2006, %v2010
        %v2013 = vshrl.u32 %v1445, 16
        %v2015 = vrot.slane %v2013, 4
        %v2016 = vshll.u32 %v1445, 16
        %v2018 = vrot.slane %v2016, 5
        %v2019 = vor.u32 %v2015, %v2018
        %v2020 = vrot.slane %v2019, 4
        %v2022 = vshll.u32 %v1446, 16
        %v2024 = vrot.slane %v2022, 5
        %v2025 = vsel %vm1747, %v2020, %v2024
        %v2026 = vshrl.u32 %v1446, 16
        %v2028 = vrot.slane %v2026, 4
        %v2029 = vor.u32 %v2028, %v2024
        %v2030 = vrot.slane %v2029, 4
        %v2032 = vshll.u32 %v1447, 16
        %v2034 = vrot.slane %v2032, 5
        %v2035 = vsel %vm1747, %v2030, %v2034
        %v2037 = vshrl.u32 %v1448, 16
        %v2039 = vrot.slane %v2037, 4
        %v2040 = vshll.u32 %v1448, 16
        %v2042 = vrot.slane %v2040, 5
        %v2043 = vor.u32 %v2039, %v2042
        %v2044 = vrot.slane %v2043, 4
        %v2046 = vshll.u32 %v1449, 16
        %v2048 = vrot.slane %v2046, 5
        %v2049 = vsel %vm1747, %v2044, %v2048
        %v2050 = vshrl.u32 %v1449, 16
        %v2052 = vrot.slane %v2050, 4
        %v2053 = vor.u32 %v2052, %v2048
        %v2054 = vrot.slane %v2053, 4
        %v2056 = vshll.u32 %v1450, 16
        %v2058 = vrot.slane %v2056, 5
        %v2059 = vsel %vm1747, %v2054, %v2058
        %v2061 = vshrl.u32 %v1451, 16
        %v2063 = vrot.slane %v2061, 4
        %v2064 = vshll.u32 %v1451, 16
        %v2066 = vrot.slane %v2064, 5
        %v2067 = vor.u32 %v2063, %v2066
        %v2068 = vrot.slane %v2067, 4
        %v2070 = vshll.u32 %v1452, 16
        %v2072 = vrot.slane %v2070, 5
        %v2073 = vsel %vm1747, %v2068, %v2072
        %v2074 = vshrl.u32 %v1452, 16
        %v2076 = vrot.slane %v2074, 4
        %v2077 = vor.u32 %v2076, %v2072
        %v2078 = vrot.slane %v2077, 4
        %v2080 = vshll.u32 %v1453, 16
        %v2082 = vrot.slane %v2080, 5
        %v2083 = vsel %vm1747, %v2078, %v2082
        %v2085 = vshrl.u32 %v1454, 16
        %v2087 = vrot.slane %v2085, 4
        %v2088 = vshll.u32 %v1454, 16
        %v2090 = vrot.slane %v2088, 5
        %v2091 = vor.u32 %v2087, %v2090
        %v2092 = vrot.slane %v2091, 4
        %v2094 = vshll.u32 %v1455, 16
        %v2096 = vrot.slane %v2094, 5
        %v2097 = vsel %vm1747, %v2092, %v2096
        %v2098 = vshrl.u32 %v1455, 16
        %v2100 = vrot.slane %v2098, 4
        %v2101 = vor.u32 %v2100, %v2096
        %v2102 = vrot.slane %v2101, 4
        %v2104 = vshll.u32 %v1456, 16
        %v2106 = vrot.slane %v2104, 5
        %v2107 = vsel %vm1747, %v2102, %v2106
        %v2109 = vshrl.u32 %v1457, 16
        %v2111 = vrot.slane %v2109, 4
        %v2112 = vshll.u32 %v1457, 16
        %v2114 = vrot.slane %v2112, 5
        %v2115 = vor.u32 %v2111, %v2114
        %v2116 = vrot.slane %v2115, 4
        %v2118 = vshll.u32 %v1458, 16
        %v2120 = vrot.slane %v2118, 5
        %v2121 = vsel %vm1747, %v2116, %v2120
        %v2122 = vshrl.u32 %v1458, 16
        %v2124 = vrot.slane %v2122, 4
        %v2125 = vor.u32 %v2124, %v2120
        %v2126 = vrot.slane %v2125, 4
        %v2128 = vshll.u32 %v1459, 16
        %v2130 = vrot.slane %v2128, 5
        %v2131 = vsel %vm1747, %v2126, %v2130
        %s2132 = scalar_lea.vmem [#allocation12], 64
        %v2133 = vld [vmem:[%s2132] sm:$0xf]
        %v2134 = vld [vmem:[%s2132 + $0x4] sm:$0xf]
        %v2135 = vld [vmem:[%s2132 + $0x8] sm:$0xf]
        %v2136 = vld [vmem:[%s2132 + $0xc] sm:$0xf]
        %v2137 = vld [vmem:[%s2132 + $0x10] sm:$0xf]
        %v2138 = vld [vmem:[%s2132 + $0x14] sm:$0xf]
        %v2139 = vld [vmem:[%s2132 + $0x18] sm:$0xf]
        %v2140 = vld [vmem:[%s2132 + $0x1c] sm:$0xf]
        %v2141 = vld [vmem:[%s2132 + $0x20] sm:$0xf]
        %v2142 = vld [vmem:[%s2132 + $0x24] sm:$0xf]
        %v2143 = vld [vmem:[%s2132 + $0x28] sm:$0xf]
        %v2144 = vld [vmem:[%s2132 + $0x2c] sm:$0xf]
        %v2145 = vld [vmem:[%s2132 + $0x30] sm:$0xf]
        %v2146 = vld [vmem:[%s2132 + $0x34] sm:$0xf]
        %v2147 = vld [vmem:[%s2132 + $0x38] sm:$0xf]
        %v2148 = vld [vmem:[%s2132 + $0x3c] sm:$0xf]
        %v2149 = vunpack.c.l.b16 %v1761
        %v2150 = vunpack.c.l.b16 %v1771
        %v2151 = vunpack.c.l.b16 %v1785
        %v2152 = vunpack.c.l.b16 %v1795
        %v2153 = vunpack.c.l.b16 %v1809
        %v2154 = vunpack.c.l.b16 %v1819
        %v2155 = vunpack.c.l.b16 %v1833
        %v2156 = vunpack.c.l.b16 %v1843
        %v2157 = vunpack.c.l.b16 %v1857
        %v2158 = vunpack.c.l.b16 %v1867
        %v2159 = vunpack.c.l.b16 %v1881
        %v2160 = vunpack.c.l.b16 %v1891
        %v2161 = vunpack.c.l.b16 %v1905
        %v2162 = vunpack.c.l.b16 %v1915
        %v2163 = vunpack.c.l.b16 %v1929
        %v2164 = vunpack.c.l.b16 %v1939
        %v2165 = vunpack.c.l.b16 %v1953
        %v2166 = vunpack.c.l.b16 %v1963
        %v2167 = vunpack.c.l.b16 %v1977
        %v2168 = vunpack.c.l.b16 %v1987
        %v2169 = vunpack.c.l.b16 %v2001
        %v2170 = vunpack.c.l.b16 %v2011
        %v2171 = vunpack.c.l.b16 %v2025
        %v2172 = vunpack.c.l.b16 %v2035
        %v2173 = vunpack.c.l.b16 %v2049
        %v2174 = vunpack.c.l.b16 %v2059
        %v2175 = vunpack.c.l.b16 %v2073
        %v2176 = vunpack.c.l.b16 %v2083
        %v2177 = vunpack.c.l.b16 %v2097
        %v2178 = vunpack.c.l.b16 %v2107
        %v2179 = vunpack.c.l.b16 %v2121
        %v2180 = vunpack.c.l.b16 %v2131
        %v2181 = vpack.c.b16 %v2150, %v2149
        %v2182 = vpack.c.b16 %v2152, %v2151
        %v2183 = vpack.c.b16 %v2154, %v2153
        %v2184 = vpack.c.b16 %v2156, %v2155
        %v2185 = vpack.c.b16 %v2158, %v2157
        %v2186 = vpack.c.b16 %v2160, %v2159
        %v2187 = vpack.c.b16 %v2162, %v2161
        %v2188 = vpack.c.b16 %v2164, %v2163
        %v2189 = vpack.c.b16 %v2166, %v2165
        %v2190 = vpack.c.b16 %v2168, %v2167
        %v2191 = vpack.c.b16 %v2170, %v2169
        %v2192 = vpack.c.b16 %v2172, %v2171
        %v2193 = vpack.c.b16 %v2174, %v2173
        %v2194 = vpack.c.b16 %v2176, %v2175
        %v2195 = vpack.c.b16 %v2178, %v2177
        %v2196 = vpack.c.b16 %v2180, %v2179
        %v2229 = vunpack.c.l.b16 %v2133
        %v2230 = vunpack.c.l.b16 %v2134
        %v2231 = vunpack.c.l.b16 %v2135
        %v2232 = vunpack.c.l.b16 %v2136
        %v2233 = vunpack.c.l.b16 %v2137
        %v2234 = vunpack.c.l.b16 %v2138
        %v2235 = vunpack.c.l.b16 %v2139
        %v2236 = vunpack.c.l.b16 %v2140
        %v2237 = vunpack.c.l.b16 %v2141
        %v2238 = vunpack.c.l.b16 %v2142
        %v2239 = vunpack.c.l.b16 %v2143
        %v2240 = vunpack.c.l.b16 %v2144
        %v2241 = vunpack.c.l.b16 %v2145
        %v2242 = vunpack.c.l.b16 %v2146
        %v2243 = vunpack.c.l.b16 %v2147
        %v2244 = vunpack.c.l.b16 %v2148
        %v2245 = vpack.c.b16 %v2230, %v2229
        %v2246 = vpack.c.b16 %v2232, %v2231
        %v2247 = vpack.c.b16 %v2234, %v2233
        %v2248 = vpack.c.b16 %v2236, %v2235
        %v2249 = vpack.c.b16 %v2238, %v2237
        %v2250 = vpack.c.b16 %v2240, %v2239
        %v2251 = vpack.c.b16 %v2242, %v2241
        %v2252 = vpack.c.b16 %v2244, %v2243
        %2261 = vmatpush.bf16.msra.mxu0 %v2252
        %2262 = vmatpush.bf16.msra.mxu0 %v2251
        %2263 = vmatpush.bf16.msra.mxu0 %v2250
        %2264 = vmatpush.bf16.msra.mxu0 %v2249
        %2265 = vmatpush.bf16.msra.mxu0 %v2248
        %2266 = vmatpush.bf16.msra.mxu0 %v2247
        %2267 = vmatpush.bf16.msra.mxu0 %v2246
        %2268 = vmatpush.bf16.msra.mxu0 %v2245
        %2269 = vmatmul.bf16.gmra.mxu0 %v2181
        %v2270 = vpop.f32.mrf.mxu0
        %v2271 = vadd.f32 0.0, %v2270
        %v2272 = vpop.f32.mrf.mxu0
        %v2273 = vadd.f32 0.0, %v2272
        %2274 = vmatmul.bf16.gmra.mxu0 %v2182
        %v2275 = vpop.f32.mrf.mxu0
        %v2276 = vadd.f32 0.0, %v2275
        %v2277 = vpop.f32.mrf.mxu0
        %v2278 = vadd.f32 0.0, %v2277
        %2279 = vmatmul.bf16.gmra.mxu0 %v2183
        %v2280 = vpop.f32.mrf.mxu0
        %v2281 = vadd.f32 0.0, %v2280
        %v2282 = vpop.f32.mrf.mxu0
        %v2283 = vadd.f32 0.0, %v2282
        %2284 = vmatmul.bf16.gmra.mxu0 %v2184
        %v2285 = vpop.f32.mrf.mxu0
        %v2286 = vadd.f32 0.0, %v2285
        %v2287 = vpop.f32.mrf.mxu0
        %v2288 = vadd.f32 0.0, %v2287
        %2289 = vmatmul.bf16.gmra.mxu0 %v2185
        %v2290 = vpop.f32.mrf.mxu0
        %v2291 = vadd.f32 0.0, %v2290
        %v2292 = vpop.f32.mrf.mxu0
        %v2293 = vadd.f32 0.0, %v2292
        %2294 = vmatmul.bf16.gmra.mxu0 %v2186
        %v2295 = vpop.f32.mrf.mxu0
        %v2296 = vadd.f32 0.0, %v2295
        %v2297 = vpop.f32.mrf.mxu0
        %v2298 = vadd.f32 0.0, %v2297
        %2299 = vmatmul.bf16.gmra.mxu0 %v2187
        %v2300 = vpop.f32.mrf.mxu0
        %v2301 = vadd.f32 0.0, %v2300
        %v2302 = vpop.f32.mrf.mxu0
        %v2303 = vadd.f32 0.0, %v2302
        %2304 = vmatmul.bf16.gmra.mxu0 %v2188
        %v2305 = vpop.f32.mrf.mxu0
        %v2306 = vadd.f32 0.0, %v2305
        %v2307 = vpop.f32.mrf.mxu0
        %v2308 = vadd.f32 0.0, %v2307
        %2309 = vmatmul.bf16.gmra.mxu0 %v2189
        %v2310 = vpop.f32.mrf.mxu0
        %v2311 = vadd.f32 0.0, %v2310
        %v2312 = vpop.f32.mrf.mxu0
        %v2313 = vadd.f32 0.0, %v2312
        %2314 = vmatmul.bf16.gmra.mxu0 %v2190
        %v2315 = vpop.f32.mrf.mxu0
        %v2316 = vadd.f32 0.0, %v2315
        %v2317 = vpop.f32.mrf.mxu0
        %v2318 = vadd.f32 0.0, %v2317
        %2319 = vmatmul.bf16.gmra.mxu0 %v2191
        %v2320 = vpop.f32.mrf.mxu0
        %v2321 = vadd.f32 0.0, %v2320
        %v2322 = vpop.f32.mrf.mxu0
        %v2323 = vadd.f32 0.0, %v2322
        %2324 = vmatmul.bf16.gmra.mxu0 %v2192
        %v2325 = vpop.f32.mrf.mxu0
        %v2326 = vadd.f32 0.0, %v2325
        %v2327 = vpop.f32.mrf.mxu0
        %v2328 = vadd.f32 0.0, %v2327
        %2329 = vmatmul.bf16.gmra.mxu0 %v2193
        %v2330 = vpop.f32.mrf.mxu0
        %v2331 = vadd.f32 0.0, %v2330
        %v2332 = vpop.f32.mrf.mxu0
        %v2333 = vadd.f32 0.0, %v2332
        %2334 = vmatmul.bf16.gmra.mxu0 %v2194
        %v2335 = vpop.f32.mrf.mxu0
        %v2336 = vadd.f32 0.0, %v2335
        %v2337 = vpop.f32.mrf.mxu0
        %v2338 = vadd.f32 0.0, %v2337
        %2339 = vmatmul.bf16.gmra.mxu0 %v2195
        %v2340 = vpop.f32.mrf.mxu0
        %v2341 = vadd.f32 0.0, %v2340
        %v2342 = vpop.f32.mrf.mxu0
        %v2343 = vadd.f32 0.0, %v2342
        %2344 = vmatmul.bf16.gmra.mxu0 %v2196
        %v2345 = vpop.f32.mrf.mxu0
        %v2346 = vadd.f32 0.0, %v2345
        %v2347 = vpop.f32.mrf.mxu0
        %v2348 = vadd.f32 0.0, %v2347
        %2349 = vdwg.mxu0
        %v2350 = vadd.f32 %v1713, %v2271
        %v2351 = vadd.f32 %v1714, %v2273
        %v2352 = vadd.f32 %v1715, %v2276
        %v2353 = vadd.f32 %v1716, %v2278
        %v2354 = vadd.f32 %v1717, %v2281
        %v2355 = vadd.f32 %v1718, %v2283
        %v2356 = vadd.f32 %v1719, %v2286
        %v2357 = vadd.f32 %v1720, %v2288
        %v2358 = vadd.f32 %v1721, %v2291
        %v2359 = vadd.f32 %v1722, %v2293
        %v2360 = vadd.f32 %v1723, %v2296
        %v2361 = vadd.f32 %v1724, %v2298
        %v2362 = vadd.f32 %v1725, %v2301
        %v2363 = vadd.f32 %v1726, %v2303
        %v2364 = vadd.f32 %v1727, %v2306
        %v2365 = vadd.f32 %v1728, %v2308
        %v2366 = vadd.f32 %v1729, %v2311
        %v2367 = vadd.f32 %v1730, %v2313
        %v2368 = vadd.f32 %v1731, %v2316
        %v2369 = vadd.f32 %v1732, %v2318
        %v2370 = vadd.f32 %v1733, %v2321
        %v2371 = vadd.f32 %v1734, %v2323
        %v2372 = vadd.f32 %v1735, %v2326
        %v2373 = vadd.f32 %v1736, %v2328
        %v2374 = vadd.f32 %v1737, %v2331
        %v2375 = vadd.f32 %v1738, %v2333
        %v2376 = vadd.f32 %v1739, %v2336
        %v2377 = vadd.f32 %v1740, %v2338
        %v2378 = vadd.f32 %v1741, %v2341
        %v2379 = vadd.f32 %v1742, %v2343
        %v2380 = vadd.f32 %v1743, %v2346
        %v2381 = vadd.f32 %v1744, %v2348
        %vm2398 = vcmask 1042432
        %vm2399 = vcmask 1046532
        %vm2400 = vmor %vm2398, %vm2399
        %v2401 = vrot.slane %v1412, 5
        %v2402 = vrot.slane %v2401, 4
        %v2403 = vrot.slane %v1413, 5
        %v2404 = vsel %vm2400, %v2402, %v2403
        %v2405 = vrot.slane %v2403, 4
        %v2406 = vrot.slane %v1414, 5
        %v2407 = vsel %vm2400, %v2405, %v2406
        %v2408 = vrot.slane %v1415, 5
        %v2409 = vrot.slane %v2408, 4
        %v2410 = vrot.slane %v1416, 5
        %v2411 = vsel %vm2400, %v2409, %v2410
        %v2412 = vrot.slane %v2410, 4
        %v2413 = vrot.slane %v1417, 5
        %v2414 = vsel %vm2400, %v2412, %v2413
        %v2415 = vrot.slane %v1418, 5
        %v2416 = vrot.slane %v2415, 4
        %v2417 = vrot.slane %v1419, 5
        %v2418 = vsel %vm2400, %v2416, %v2417
        %v2419 = vrot.slane %v2417, 4
        %v2420 = vrot.slane %v1420, 5
        %v2421 = vsel %vm2400, %v2419, %v2420
        %v2422 = vrot.slane %v1421, 5
        %v2423 = vrot.slane %v2422, 4
        %v2424 = vrot.slane %v1422, 5
        %v2425 = vsel %vm2400, %v2423, %v2424
        %v2426 = vrot.slane %v2424, 4
        %v2427 = vrot.slane %v1423, 5
        %v2428 = vsel %vm2400, %v2426, %v2427
        %v2429 = vrot.slane %v1424, 5
        %v2430 = vrot.slane %v2429, 4
        %v2431 = vrot.slane %v1425, 5
        %v2432 = vsel %vm2400, %v2430, %v2431
        %v2433 = vrot.slane %v2431, 4
        %v2434 = vrot.slane %v1426, 5
        %v2435 = vsel %vm2400, %v2433, %v2434
        %v2436 = vrot.slane %v1427, 5
        %v2437 = vrot.slane %v2436, 4
        %v2438 = vrot.slane %v1428, 5
        %v2439 = vsel %vm2400, %v2437, %v2438
        %v2440 = vrot.slane %v2438, 4
        %v2441 = vrot.slane %v1429, 5
        %v2442 = vsel %vm2400, %v2440, %v2441
        %v2443 = vrot.slane %v1430, 5
        %v2444 = vrot.slane %v2443, 4
        %v2445 = vrot.slane %v1431, 5
        %v2446 = vsel %vm2400, %v2444, %v2445
        %v2447 = vrot.slane %v2445, 4
        %v2448 = vrot.slane %v1432, 5
        %v2449 = vsel %vm2400, %v2447, %v2448
        %v2450 = vrot.slane %v1433, 5
        %v2451 = vrot.slane %v2450, 4
        %v2452 = vrot.slane %v1434, 5
        %v2453 = vsel %vm2400, %v2451, %v2452
        %v2454 = vrot.slane %v2452, 4
        %v2455 = vrot.slane %v1435, 5
        %v2456 = vsel %vm2400, %v2454, %v2455
        %v2457 = vrot.slane %v1436, 5
        %v2458 = vrot.slane %v2457, 4
        %v2459 = vrot.slane %v1437, 5
        %v2460 = vsel %vm2400, %v2458, %v2459
        %v2461 = vrot.slane %v2459, 4
        %v2462 = vrot.slane %v1438, 5
        %v2463 = vsel %vm2400, %v2461, %v2462
        %v2464 = vrot.slane %v1439, 5
        %v2465 = vrot.slane %v2464, 4
        %v2466 = vrot.slane %v1440, 5
        %v2467 = vsel %vm2400, %v2465, %v2466
        %v2468 = vrot.slane %v2466, 4
        %v2469 = vrot.slane %v1441, 5
        %v2470 = vsel %vm2400, %v2468, %v2469
        %v2471 = vrot.slane %v1442, 5
        %v2472 = vrot.slane %v2471, 4
        %v2473 = vrot.slane %v1443, 5
        %v2474 = vsel %vm2400, %v2472, %v2473
        %v2475 = vrot.slane %v2473, 4
        %v2476 = vrot.slane %v1444, 5
        %v2477 = vsel %vm2400, %v2475, %v2476
        %v2478 = vrot.slane %v1445, 5
        %v2479 = vrot.slane %v2478, 4
        %v2480 = vrot.slane %v1446, 5
        %v2481 = vsel %vm2400, %v2479, %v2480
        %v2482 = vrot.slane %v2480, 4
        %v2483 = vrot.slane %v1447, 5
        %v2484 = vsel %vm2400, %v2482, %v2483
        %v2485 = vrot.slane %v1448, 5
        %v2486 = vrot.slane %v2485, 4
        %v2487 = vrot.slane %v1449, 5
        %v2488 = vsel %vm2400, %v2486, %v2487
        %v2489 = vrot.slane %v2487, 4
        %v2490 = vrot.slane %v1450, 5
        %v2491 = vsel %vm2400, %v2489, %v2490
        %v2492 = vrot.slane %v1451, 5
        %v2493 = vrot.slane %v2492, 4
        %v2494 = vrot.slane %v1452, 5
        %v2495 = vsel %vm2400, %v2493, %v2494
        %v2496 = vrot.slane %v2494, 4
        %v2497 = vrot.slane %v1453, 5
        %v2498 = vsel %vm2400, %v2496, %v2497
        %v2499 = vrot.slane %v1454, 5
        %v2500 = vrot.slane %v2499, 4
        %v2501 = vrot.slane %v1455, 5
        %v2502 = vsel %vm2400, %v2500, %v2501
        %v2503 = vrot.slane %v2501, 4
        %v2504 = vrot.slane %v1456, 5
        %v2505 = vsel %vm2400, %v2503, %v2504
        %v2506 = vrot.slane %v1457, 5
        %v2507 = vrot.slane %v2506, 4
        %v2508 = vrot.slane %v1458, 5
        %v2509 = vsel %vm2400, %v2507, %v2508
        %v2510 = vrot.slane %v2508, 4
        %v2511 = vrot.slane %v1459, 5
        %v2512 = vsel %vm2400, %v2510, %v2511
        %s2513 = scalar_lea.vmem [#allocation12], 128
        %v2514 = vld [vmem:[%s2513] sm:$0xf]
        %v2515 = vld [vmem:[%s2513 + $0x4] sm:$0xf]
        %v2516 = vld [vmem:[%s2513 + $0x8] sm:$0xf]
        %v2517 = vld [vmem:[%s2513 + $0xc] sm:$0xf]
        %v2518 = vld [vmem:[%s2513 + $0x10] sm:$0xf]
        %v2519 = vld [vmem:[%s2513 + $0x14] sm:$0xf]
        %v2520 = vld [vmem:[%s2513 + $0x18] sm:$0xf]
        %v2521 = vld [vmem:[%s2513 + $0x1c] sm:$0xf]
        %v2522 = vld [vmem:[%s2513 + $0x20] sm:$0xf]
        %v2523 = vld [vmem:[%s2513 + $0x24] sm:$0xf]
        %v2524 = vld [vmem:[%s2513 + $0x28] sm:$0xf]
        %v2525 = vld [vmem:[%s2513 + $0x2c] sm:$0xf]
        %v2526 = vld [vmem:[%s2513 + $0x30] sm:$0xf]
        %v2527 = vld [vmem:[%s2513 + $0x34] sm:$0xf]
        %v2528 = vld [vmem:[%s2513 + $0x38] sm:$0xf]
        %v2529 = vld [vmem:[%s2513 + $0x3c] sm:$0xf]
        %v2530 = vunpack.c.l.b16 %v2404
        %v2531 = vunpack.c.l.b16 %v2407
        %v2532 = vunpack.c.l.b16 %v2411
        %v2533 = vunpack.c.l.b16 %v2414
        %v2534 = vunpack.c.l.b16 %v2418
        %v2535 = vunpack.c.l.b16 %v2421
        %v2536 = vunpack.c.l.b16 %v2425
        %v2537 = vunpack.c.l.b16 %v2428
        %v2538 = vunpack.c.l.b16 %v2432
        %v2539 = vunpack.c.l.b16 %v2435
        %v2540 = vunpack.c.l.b16 %v2439
        %v2541 = vunpack.c.l.b16 %v2442
        %v2542 = vunpack.c.l.b16 %v2446
        %v2543 = vunpack.c.l.b16 %v2449
        %v2544 = vunpack.c.l.b16 %v2453
        %v2545 = vunpack.c.l.b16 %v2456
        %v2546 = vunpack.c.l.b16 %v2460
        %v2547 = vunpack.c.l.b16 %v2463
        %v2548 = vunpack.c.l.b16 %v2467
        %v2549 = vunpack.c.l.b16 %v2470
        %v2550 = vunpack.c.l.b16 %v2474
        %v2551 = vunpack.c.l.b16 %v2477
        %v2552 = vunpack.c.l.b16 %v2481
        %v2553 = vunpack.c.l.b16 %v2484
        %v2554 = vunpack.c.l.b16 %v2488
        %v2555 = vunpack.c.l.b16 %v2491
        %v2556 = vunpack.c.l.b16 %v2495
        %v2557 = vunpack.c.l.b16 %v2498
        %v2558 = vunpack.c.l.b16 %v2502
        %v2559 = vunpack.c.l.b16 %v2505
        %v2560 = vunpack.c.l.b16 %v2509
        %v2561 = vunpack.c.l.b16 %v2512
        %v2562 = vpack.c.b16 %v2531, %v2530
        %v2563 = vpack.c.b16 %v2533, %v2532
        %v2564 = vpack.c.b16 %v2535, %v2534
        %v2565 = vpack.c.b16 %v2537, %v2536
        %v2566 = vpack.c.b16 %v2539, %v2538
        %v2567 = vpack.c.b16 %v2541, %v2540
        %v2568 = vpack.c.b16 %v2543, %v2542
        %v2569 = vpack.c.b16 %v2545, %v2544
        %v2570 = vpack.c.b16 %v2547, %v2546
        %v2571 = vpack.c.b16 %v2549, %v2548
        %v2572 = vpack.c.b16 %v2551, %v2550
        %v2573 = vpack.c.b16 %v2553, %v2552
        %v2574 = vpack.c.b16 %v2555, %v2554
        %v2575 = vpack.c.b16 %v2557, %v2556
        %v2576 = vpack.c.b16 %v2559, %v2558
        %v2577 = vpack.c.b16 %v2561, %v2560
        %v2610 = vunpack.c.l.b16 %v2514
        %v2611 = vunpack.c.l.b16 %v2515
        %v2612 = vunpack.c.l.b16 %v2516
        %v2613 = vunpack.c.l.b16 %v2517
        %v2614 = vunpack.c.l.b16 %v2518
        %v2615 = vunpack.c.l.b16 %v2519
        %v2616 = vunpack.c.l.b16 %v2520
        %v2617 = vunpack.c.l.b16 %v2521
        %v2618 = vunpack.c.l.b16 %v2522
        %v2619 = vunpack.c.l.b16 %v2523
        %v2620 = vunpack.c.l.b16 %v2524
        %v2621 = vunpack.c.l.b16 %v2525
        %v2622 = vunpack.c.l.b16 %v2526
        %v2623 = vunpack.c.l.b16 %v2527
        %v2624 = vunpack.c.l.b16 %v2528
        %v2625 = vunpack.c.l.b16 %v2529
        %v2626 = vpack.c.b16 %v2611, %v2610
        %v2627 = vpack.c.b16 %v2613, %v2612
        %v2628 = vpack.c.b16 %v2615, %v2614
        %v2629 = vpack.c.b16 %v2617, %v2616
        %v2630 = vpack.c.b16 %v2619, %v2618
        %v2631 = vpack.c.b16 %v2621, %v2620
        %v2632 = vpack.c.b16 %v2623, %v2622
        %v2633 = vpack.c.b16 %v2625, %v2624
        %2642 = vmatpush.bf16.msra.mxu0 %v2633
        %2643 = vmatpush.bf16.msra.mxu0 %v2632
        %2644 = vmatpush.bf16.msra.mxu0 %v2631
        %2645 = vmatpush.bf16.msra.mxu0 %v2630
        %2646 = vmatpush.bf16.msra.mxu0 %v2629
        %2647 = vmatpush.bf16.msra.mxu0 %v2628
        %2648 = vmatpush.bf16.msra.mxu0 %v2627
        %2649 = vmatpush.bf16.msra.mxu0 %v2626
        %2650 = vmatmul.bf16.gmra.mxu0 %v2562
        %v2651 = vpop.f32.mrf.mxu0
        %v2652 = vadd.f32 0.0, %v2651
        %v2653 = vpop.f32.mrf.mxu0
        %v2654 = vadd.f32 0.0, %v2653
        %2655 = vmatmul.bf16.gmra.mxu0 %v2563
        %v2656 = vpop.f32.mrf.mxu0
        %v2657 = vadd.f32 0.0, %v2656
        %v2658 = vpop.f32.mrf.mxu0
        %v2659 = vadd.f32 0.0, %v2658
        %2660 = vmatmul.bf16.gmra.mxu0 %v2564
        %v2661 = vpop.f32.mrf.mxu0
        %v2662 = vadd.f32 0.0, %v2661
        %v2663 = vpop.f32.mrf.mxu0
        %v2664 = vadd.f32 0.0, %v2663
        %2665 = vmatmul.bf16.gmra.mxu0 %v2565
        %v2666 = vpop.f32.mrf.mxu0
        %v2667 = vadd.f32 0.0, %v2666
        %v2668 = vpop.f32.mrf.mxu0
        %v2669 = vadd.f32 0.0, %v2668
        %2670 = vmatmul.bf16.gmra.mxu0 %v2566
        %v2671 = vpop.f32.mrf.mxu0
        %v2672 = vadd.f32 0.0, %v2671
        %v2673 = vpop.f32.mrf.mxu0
        %v2674 = vadd.f32 0.0, %v2673
        %2675 = vmatmul.bf16.gmra.mxu0 %v2567
        %v2676 = vpop.f32.mrf.mxu0
        %v2677 = vadd.f32 0.0, %v2676
        %v2678 = vpop.f32.mrf.mxu0
        %v2679 = vadd.f32 0.0, %v2678
        %2680 = vmatmul.bf16.gmra.mxu0 %v2568
        %v2681 = vpop.f32.mrf.mxu0
        %v2682 = vadd.f32 0.0, %v2681
        %v2683 = vpop.f32.mrf.mxu0
        %v2684 = vadd.f32 0.0, %v2683
        %2685 = vmatmul.bf16.gmra.mxu0 %v2569
        %v2686 = vpop.f32.mrf.mxu0
        %v2687 = vadd.f32 0.0, %v2686
        %v2688 = vpop.f32.mrf.mxu0
        %v2689 = vadd.f32 0.0, %v2688
        %2690 = vmatmul.bf16.gmra.mxu0 %v2570
        %v2691 = vpop.f32.mrf.mxu0
        %v2692 = vadd.f32 0.0, %v2691
        %v2693 = vpop.f32.mrf.mxu0
        %v2694 = vadd.f32 0.0, %v2693
        %2695 = vmatmul.bf16.gmra.mxu0 %v2571
        %v2696 = vpop.f32.mrf.mxu0
        %v2697 = vadd.f32 0.0, %v2696
        %v2698 = vpop.f32.mrf.mxu0
        %v2699 = vadd.f32 0.0, %v2698
        %2700 = vmatmul.bf16.gmra.mxu0 %v2572
        %v2701 = vpop.f32.mrf.mxu0
        %v2702 = vadd.f32 0.0, %v2701
        %v2703 = vpop.f32.mrf.mxu0
        %v2704 = vadd.f32 0.0, %v2703
        %2705 = vmatmul.bf16.gmra.mxu0 %v2573
        %v2706 = vpop.f32.mrf.mxu0
        %v2707 = vadd.f32 0.0, %v2706
        %v2708 = vpop.f32.mrf.mxu0
        %v2709 = vadd.f32 0.0, %v2708
        %2710 = vmatmul.bf16.gmra.mxu0 %v2574
        %v2711 = vpop.f32.mrf.mxu0
        %v2712 = vadd.f32 0.0, %v2711
        %v2713 = vpop.f32.mrf.mxu0
        %v2714 = vadd.f32 0.0, %v2713
        %2715 = vmatmul.bf16.gmra.mxu0 %v2575
        %v2716 = vpop.f32.mrf.mxu0
        %v2717 = vadd.f32 0.0, %v2716
        %v2718 = vpop.f32.mrf.mxu0
        %v2719 = vadd.f32 0.0, %v2718
        %2720 = vmatmul.bf16.gmra.mxu0 %v2576
        %v2721 = vpop.f32.mrf.mxu0
        %v2722 = vadd.f32 0.0, %v2721
        %v2723 = vpop.f32.mrf.mxu0
        %v2724 = vadd.f32 0.0, %v2723
        %2725 = vmatmul.bf16.gmra.mxu0 %v2577
        %v2726 = vpop.f32.mrf.mxu0
        %v2727 = vadd.f32 0.0, %v2726
        %v2728 = vpop.f32.mrf.mxu0
        %v2729 = vadd.f32 0.0, %v2728
        %2730 = vdwg.mxu0
        %v2731 = vadd.f32 %v2350, %v2652
        %v2732 = vadd.f32 %v2351, %v2654
        %v2733 = vadd.f32 %v2352, %v2657
        %v2734 = vadd.f32 %v2353, %v2659
        %v2735 = vadd.f32 %v2354, %v2662
        %v2736 = vadd.f32 %v2355, %v2664
        %v2737 = vadd.f32 %v2356, %v2667
        %v2738 = vadd.f32 %v2357, %v2669
        %v2739 = vadd.f32 %v2358, %v2672
        %v2740 = vadd.f32 %v2359, %v2674
        %v2741 = vadd.f32 %v2360, %v2677
        %v2742 = vadd.f32 %v2361, %v2679
        %v2743 = vadd.f32 %v2362, %v2682
        %v2744 = vadd.f32 %v2363, %v2684
        %v2745 = vadd.f32 %v2364, %v2687
        %v2746 = vadd.f32 %v2365, %v2689
        %v2747 = vadd.f32 %v2366, %v2692
        %v2748 = vadd.f32 %v2367, %v2694
        %v2749 = vadd.f32 %v2368, %v2697
        %v2750 = vadd.f32 %v2369, %v2699
        %v2751 = vadd.f32 %v2370, %v2702
        %v2752 = vadd.f32 %v2371, %v2704
        %v2753 = vadd.f32 %v2372, %v2707
        %v2754 = vadd.f32 %v2373, %v2709
        %v2755 = vadd.f32 %v2374, %v2712
        %v2756 = vadd.f32 %v2375, %v2714
        %v2757 = vadd.f32 %v2376, %v2717
        %v2758 = vadd.f32 %v2377, %v2719
        %v2759 = vadd.f32 %v2378, %v2722
        %v2760 = vadd.f32 %v2379, %v2724
        %v2761 = vadd.f32 %v2380, %v2727
        %v2762 = vadd.f32 %v2381, %v2729
        %v2763 = vmax.f32 %v2731, 0.0
        %v2764 = vmax.f32 %v2732, 0.0
        %v2765 = vmax.f32 %v2733, 0.0
        %v2766 = vmax.f32 %v2734, 0.0
        %v2767 = vmax.f32 %v2735, 0.0
        %v2768 = vmax.f32 %v2736, 0.0
        %v2769 = vmax.f32 %v2737, 0.0
        %v2770 = vmax.f32 %v2738, 0.0
        %v2771 = vmax.f32 %v2739, 0.0
        %v2772 = vmax.f32 %v2740, 0.0
        %v2773 = vmax.f32 %v2741, 0.0
        %v2774 = vmax.f32 %v2742, 0.0
        %v2775 = vmax.f32 %v2743, 0.0
        %v2776 = vmax.f32 %v2744, 0.0
        %v2777 = vmax.f32 %v2745, 0.0
        %v2778 = vmax.f32 %v2746, 0.0
        %v2779 = vmax.f32 %v2747, 0.0
        %v2780 = vmax.f32 %v2748, 0.0
        %v2781 = vmax.f32 %v2749, 0.0
        %v2782 = vmax.f32 %v2750, 0.0
        %v2783 = vmax.f32 %v2751, 0.0
        %v2784 = vmax.f32 %v2752, 0.0
        %v2785 = vmax.f32 %v2753, 0.0
        %v2786 = vmax.f32 %v2754, 0.0
        %v2787 = vmax.f32 %v2755, 0.0
        %v2788 = vmax.f32 %v2756, 0.0
        %v2789 = vmax.f32 %v2757, 0.0
        %v2790 = vmax.f32 %v2758, 0.0
        %v2791 = vmax.f32 %v2759, 0.0
        %v2792 = vmax.f32 %v2760, 0.0
        %v2793 = vmax.f32 %v2761, 0.0
        %v2794 = vmax.f32 %v2762, 0.0
        %v2795 = vlaneseq
        %v2796 = vshrl.u32 %v2795, 7
        %v2797 = vadd.s32 %v2796, 8
        %vm2798 = vcmp.lt.s32.totalorder %v2796, 14
        %vm2799 = vcmp.lt.s32.totalorder %v2797, 14
        %v2800 = vsel %vm2798, %v2763, 0.0
        %v2801 = vsel %vm2799, %v2764, 0.0
        %v2802 = vsel %vm2798, %v2765, 0.0
        %v2803 = vsel %vm2799, %v2766, 0.0
        %v2804 = vsel %vm2798, %v2767, 0.0
        %v2805 = vsel %vm2799, %v2768, 0.0
        %v2806 = vsel %vm2798, %v2769, 0.0
        %v2807 = vsel %vm2799, %v2770, 0.0
        %v2808 = vsel %vm2798, %v2771, 0.0
        %v2809 = vsel %vm2799, %v2772, 0.0
        %v2810 = vsel %vm2798, %v2773, 0.0
        %v2811 = vsel %vm2799, %v2774, 0.0
        %v2812 = vsel %vm2798, %v2775, 0.0
        %v2813 = vsel %vm2799, %v2776, 0.0
        %v2814 = vsel %vm2798, %v2777, 0.0
        %v2815 = vsel %vm2799, %v2778, 0.0
        %v2816 = vsel %vm2798, %v2779, 0.0
        %v2817 = vsel %vm2799, %v2780, 0.0
        %v2818 = vsel %vm2798, %v2781, 0.0
        %v2819 = vsel %vm2799, %v2782, 0.0
        %v2820 = vsel %vm2798, %v2783, 0.0
        %v2821 = vsel %vm2799, %v2784, 0.0
        %v2822 = vsel %vm2798, %v2785, 0.0
        %v2823 = vsel %vm2799, %v2786, 0.0
        %v2824 = vsel %vm2798, %v2787, 0.0
        %v2825 = vsel %vm2799, %v2788, 0.0
        %v2826 = vsel %vm2798, %v2789, 0.0
        %v2827 = vsel %vm2799, %v2790, 0.0
        %v2828 = vsel %vm2798, %v2791, 0.0
        %v2829 = vsel %vm2799, %v2792, 0.0
        %v2830 = vsel %vm2798, %v2793, 0.0
        %v2831 = vsel %vm2799, %v2794, 0.0
        %2832 = vst [vmem:[#allocation3] sm:$0xf] 0
        %2833 = vst [vmem:[#allocation3 + $0x4] sm:$0xf] 0
        %2834 = vst [vmem:[#allocation3 + $0x8] sm:$0xf] 0
        %2835 = vst [vmem:[#allocation3 + $0xc] sm:$0xf] 0
        %2836 = vst [vmem:[#allocation3 + $0x10] sm:$0xf] 0
        %2837 = vst [vmem:[#allocation3 + $0x14] sm:$0xf] 0
        %2838 = vst [vmem:[#allocation3 + $0x18] sm:$0xf] 0
        %2839 = vst [vmem:[#allocation3 + $0x1c] sm:$0xf] 0
        %2840 = vst [vmem:[#allocation3 + $0x20] sm:$0xf] 0
        %2841 = vst [vmem:[#allocation3 + $0x24] sm:$0xf] 0
        %2842 = vst [vmem:[#allocation3 + $0x28] sm:$0xf] 0
        %2843 = vst [vmem:[#allocation3 + $0x2c] sm:$0xf] 0
        %2844 = vst [vmem:[#allocation3 + $0x30] sm:$0xf] 0
        %2845 = vst [vmem:[#allocation3 + $0x34] sm:$0xf] 0
        %2846 = vst [vmem:[#allocation3 + $0x38] sm:$0xf] 0
        %2847 = vst [vmem:[#allocation3 + $0x3c] sm:$0xf] 0
        %2848 = vst [vmem:[#allocation3 + $0x40] sm:$0xf] 0
        %2849 = vst [vmem:[#allocation3 + $0x44] sm:$0xf] 0
        %2850 = vst [vmem:[#allocation3 + $0x48] sm:$0xf] 0
        %2851 = vst [vmem:[#allocation3 + $0x4c] sm:$0xf] 0
        %2852 = vst [vmem:[#allocation3 + $0x50] sm:$0xf] 0
        %2853 = vst [vmem:[#allocation3 + $0x54] sm:$0xf] 0
        %2854 = vst [vmem:[#allocation3 + $0x58] sm:$0xf] 0
        %2855 = vst [vmem:[#allocation3 + $0x5c] sm:$0xf] 0
        %2856 = vst [vmem:[#allocation3 + $0x60] sm:$0xf] 0
        %2857 = vst [vmem:[#allocation3 + $0x64] sm:$0xf] 0
        %2858 = vst [vmem:[#allocation3 + $0x68] sm:$0xf] 0
        %2859 = vst [vmem:[#allocation3 + $0x6c] sm:$0xf] 0
        %2860 = vst [vmem:[#allocation3 + $0x70] sm:$0xf] 0
        %2861 = vst [vmem:[#allocation3 + $0x74] sm:$0xf] 0
        %2862 = vst [vmem:[#allocation3 + $0x78] sm:$0xf] 0
        %2863 = vst [vmem:[#allocation3 + $0x7c] sm:$0xf] 0
        %2864 = vst [vmem:[#allocation3 + $0x80] sm:$0xf] 0
        %2865 = vst [vmem:[#allocation3 + $0x84] sm:$0xf] 0
        %2866 = vst [vmem:[#allocation3 + $0x88] sm:$0xf] 0
        %2867 = vst [vmem:[#allocation3 + $0x8c] sm:$0xf] 0
        %2868 = vst [vmem:[#allocation3 + $0x90] sm:$0xf] 0
        %2869 = vst [vmem:[#allocation3 + $0x94] sm:$0xf] 0
        %2870 = vst [vmem:[#allocation3 + $0x98] sm:$0xf] 0
        %2871 = vst [vmem:[#allocation3 + $0x9c] sm:$0xf] 0
        %2872 = vst [vmem:[#allocation3 + $0xa0] sm:$0xf] 0
        %2873 = vst [vmem:[#allocation3 + $0xa4] sm:$0xf] 0
        %2874 = vst [vmem:[#allocation3 + $0xa8] sm:$0xf] 0
        %2875 = vst [vmem:[#allocation3 + $0xac] sm:$0xf] 0
        %2876 = vst [vmem:[#allocation3 + $0xb0] sm:$0xf] 0
        %2877 = vst [vmem:[#allocation3 + $0xb4] sm:$0xf] 0
        %2878 = vst [vmem:[#allocation3 + $0xb8] sm:$0xf] 0
        %2879 = vst [vmem:[#allocation3 + $0xbc] sm:$0xf] 0
        %2880 = vst [vmem:[#allocation3 + $0xc0] sm:$0xf] 0
        %2881 = vst [vmem:[#allocation3 + $0xc4] sm:$0xf] 0
        %2882 = vst [vmem:[#allocation3 + $0xc8] sm:$0xf] 0
        %2883 = vst [vmem:[#allocation3 + $0xcc] sm:$0xf] 0
        %2884 = vst [vmem:[#allocation3 + $0xd0] sm:$0xf] 0
        %2885 = vst [vmem:[#allocation3 + $0xd4] sm:$0xf] 0
        %v2886 = vpack.c.bf16 %v2800, %v2800
        %v2887 = vpack.c.bf16 %v2801, %v2801
        %v2888 = vpack.c.bf16 %v2802, %v2802
        %v2889 = vpack.c.bf16 %v2803, %v2803
        %v2890 = vpack.c.bf16 %v2804, %v2804
        %v2891 = vpack.c.bf16 %v2805, %v2805
        %v2892 = vpack.c.bf16 %v2806, %v2806
        %v2893 = vpack.c.bf16 %v2807, %v2807
        %v2894 = vpack.c.bf16 %v2808, %v2808
        %v2895 = vpack.c.bf16 %v2809, %v2809
        %v2896 = vpack.c.bf16 %v2810, %v2810
        %v2897 = vpack.c.bf16 %v2811, %v2811
        %v2898 = vpack.c.bf16 %v2812, %v2812
        %v2899 = vpack.c.bf16 %v2813, %v2813
        %v2900 = vpack.c.bf16 %v2814, %v2814
        %v2901 = vpack.c.bf16 %v2815, %v2815
        %v2902 = vpack.c.bf16 %v2816, %v2816
        %v2903 = vpack.c.bf16 %v2817, %v2817
        %v2904 = vpack.c.bf16 %v2818, %v2818
        %v2905 = vpack.c.bf16 %v2819, %v2819
        %v2906 = vpack.c.bf16 %v2820, %v2820
        %v2907 = vpack.c.bf16 %v2821, %v2821
        %v2908 = vpack.c.bf16 %v2822, %v2822
        %v2909 = vpack.c.bf16 %v2823, %v2823
        %v2910 = vpack.c.bf16 %v2824, %v2824
        %v2911 = vpack.c.bf16 %v2825, %v2825
        %v2912 = vpack.c.bf16 %v2826, %v2826
        %v2913 = vpack.c.bf16 %v2827, %v2827
        %v2914 = vpack.c.bf16 %v2828, %v2828
        %v2915 = vpack.c.bf16 %v2829, %v2829
        %v2916 = vpack.c.bf16 %v2830, %v2830
        %v2917 = vpack.c.bf16 %v2831, %v2831
        %s2918 = scalar_lea.vmem [#allocation3], 12
        %2919 = vst [vmem:[%s2918 + $0x4] sm:$0xf] %v2886
        %2920 = vst [vmem:[%s2918 + $0x8] sm:$0xf] %v2887
        %2921 = vst [vmem:[%s2918 + $0x10] sm:$0xf] %v2888
        %2922 = vst [vmem:[%s2918 + $0x14] sm:$0xf] %v2889
        %2923 = vst [vmem:[%s2918 + $0x1c] sm:$0xf] %v2890
        %2924 = vst [vmem:[%s2918 + $0x20] sm:$0xf] %v2891
        %2925 = vst [vmem:[%s2918 + $0x28] sm:$0xf] %v2892
        %2926 = vst [vmem:[%s2918 + $0x2c] sm:$0xf] %v2893
        %2927 = vst [vmem:[%s2918 + $0x34] sm:$0xf] %v2894
        %2928 = vst [vmem:[%s2918 + $0x38] sm:$0xf] %v2895
        %2929 = vst [vmem:[%s2918 + $0x40] sm:$0xf] %v2896
        %2930 = vst [vmem:[%s2918 + $0x44] sm:$0xf] %v2897
        %2931 = vst [vmem:[%s2918 + $0x4c] sm:$0xf] %v2898
        %2932 = vst [vmem:[%s2918 + $0x50] sm:$0xf] %v2899
        %2933 = vst [vmem:[%s2918 + $0x58] sm:$0xf] %v2900
        %2934 = vst [vmem:[%s2918 + $0x5c] sm:$0xf] %v2901
        %2935 = vst [vmem:[%s2918 + $0x64] sm:$0xf] %v2902
        %2936 = vst [vmem:[%s2918 + $0x68] sm:$0xf] %v2903
        %2937 = vst [vmem:[%s2918 + $0x70] sm:$0xf] %v2904
        %2938 = vst [vmem:[%s2918 + $0x74] sm:$0xf] %v2905
        %2939 = vst [vmem:[%s2918 + $0x7c] sm:$0xf] %v2906
        %2940 = vst [vmem:[%s2918 + $0x80] sm:$0xf] %v2907
        %2941 = vst [vmem:[%s2918 + $0x88] sm:$0xf] %v2908
        %2942 = vst [vmem:[%s2918 + $0x8c] sm:$0xf] %v2909
        %2943 = vst [vmem:[%s2918 + $0x94] sm:$0xf] %v2910
        %2944 = vst [vmem:[%s2918 + $0x98] sm:$0xf] %v2911
        %2945 = vst [vmem:[%s2918 + $0xa0] sm:$0xf] %v2912
        %2946 = vst [vmem:[%s2918 + $0xa4] sm:$0xf] %v2913
        %2947 = vst [vmem:[%s2918 + $0xac] sm:$0xf] %v2914
        %2948 = vst [vmem:[%s2918 + $0xb0] sm:$0xf] %v2915
        %2949 = vst [vmem:[%s2918 + $0xb8] sm:$0xf] %v2916
        %2950 = vst [vmem:[%s2918 + $0xbc] sm:$0xf] %v2917
        %v2951 = vld [vmem:[#allocation3] sm:$0xf]
        %v2952 = vld [vmem:[#allocation3 + $0x4] sm:$0xf]
        %v2953 = vld [vmem:[#allocation3 + $0x8] sm:$0xf]
        %v2954 = vld [vmem:[#allocation3 + $0xc] sm:$0xf]
        %v2955 = vld [vmem:[#allocation3 + $0x10] sm:$0xf]
        %v2956 = vld [vmem:[#allocation3 + $0x14] sm:$0xf]
        %v2957 = vld [vmem:[#allocation3 + $0x18] sm:$0xf]
        %v2958 = vld [vmem:[#allocation3 + $0x1c] sm:$0xf]
        %v2959 = vld [vmem:[#allocation3 + $0x20] sm:$0xf]
        %v2960 = vld [vmem:[#allocation3 + $0x24] sm:$0xf]
        %v2961 = vld [vmem:[#allocation3 + $0x28] sm:$0xf]
        %v2962 = vld [vmem:[#allocation3 + $0x2c] sm:$0xf]
        %v2963 = vld [vmem:[#allocation3 + $0x30] sm:$0xf]
        %v2964 = vld [vmem:[#allocation3 + $0x34] sm:$0xf]
        %v2965 = vld [vmem:[#allocation3 + $0x38] sm:$0xf]
        %v2966 = vld [vmem:[#allocation3 + $0x3c] sm:$0xf]
        %v2967 = vld [vmem:[#allocation3 + $0x40] sm:$0xf]
        %v2968 = vld [vmem:[#allocation3 + $0x44] sm:$0xf]
        %v2969 = vld [vmem:[#allocation3 + $0x48] sm:$0xf]
        %v2970 = vld [vmem:[#allocation3 + $0x4c] sm:$0xf]
        %v2971 = vld [vmem:[#allocation3 + $0x50] sm:$0xf]
        %v2972 = vld [vmem:[#allocation3 + $0x54] sm:$0xf]
        %v2973 = vld [vmem:[#allocation3 + $0x58] sm:$0xf]
        %v2974 = vld [vmem:[#allocation3 + $0x5c] sm:$0xf]
        %v2975 = vld [vmem:[#allocation3 + $0x60] sm:$0xf]
        %v2976 = vld [vmem:[#allocation3 + $0x64] sm:$0xf]
        %v2977 = vld [vmem:[#allocation3 + $0x68] sm:$0xf]
        %v2978 = vld [vmem:[#allocation3 + $0x6c] sm:$0xf]
        %v2979 = vld [vmem:[#allocation3 + $0x70] sm:$0xf]
        %v2980 = vld [vmem:[#allocation3 + $0x74] sm:$0xf]
        %v2981 = vld [vmem:[#allocation3 + $0x78] sm:$0xf]
        %v2982 = vld [vmem:[#allocation3 + $0x7c] sm:$0xf]
        %v2983 = vld [vmem:[#allocation3 + $0x80] sm:$0xf]
        %v2984 = vld [vmem:[#allocation3 + $0x84] sm:$0xf]
        %v2985 = vld [vmem:[#allocation3 + $0x88] sm:$0xf]
        %v2986 = vld [vmem:[#allocation3 + $0x8c] sm:$0xf]
        %v2987 = vld [vmem:[#allocation3 + $0x90] sm:$0xf]
        %v2988 = vld [vmem:[#allocation3 + $0x94] sm:$0xf]
        %v2989 = vld [vmem:[#allocation3 + $0x98] sm:$0xf]
        %v2990 = vld [vmem:[#allocation3 + $0x9c] sm:$0xf]
        %v2991 = vld [vmem:[#allocation3 + $0xa0] sm:$0xf]
        %v2992 = vld [vmem:[#allocation3 + $0xa4] sm:$0xf]
        %v2993 = vld [vmem:[#allocation3 + $0xa8] sm:$0xf]
        %v2994 = vld [vmem:[#allocation3 + $0xac] sm:$0xf]
        %v2995 = vld [vmem:[#allocation3 + $0xb0] sm:$0xf]
        %v2996 = vld [vmem:[#allocation3 + $0xb4] sm:$0xf]
        %v2997 = vld [vmem:[#allocation3 + $0xb8] sm:$0xf]
        %v2998 = vld [vmem:[#allocation3 + $0xbc] sm:$0xf]
        %v2999 = vld [vmem:[#allocation3 + $0xc0] sm:$0xf]
        %v3000 = vld [vmem:[#allocation3 + $0xc4] sm:$0xf]
        %v3001 = vld [vmem:[#allocation3 + $0xc8] sm:$0xf]
        %v3002 = vld [vmem:[#allocation3 + $0xcc] sm:$0xf]
        %v3003 = vld [vmem:[#allocation3 + $0xd0] sm:$0xf]
        %v3004 = vld [vmem:[#allocation3 + $0xd4] sm:$0xf]
        %v3005 = vld [vmem:[%s8] sm:$0x1]
        %vm3006 = vsmask.f32 256
        %vm3007 = vsmask.f32 4368
        %vm3008 = vmor %vm3006, %vm3007
        %v3010 = vshrl.u32 %v2951, 16
        %v3012 = vrot.slane %v3010, 7
        %v3013 = vrot.slane %v3012, 4
        %v3015 = vshrl.u32 %v2952, 16
        %v3017 = vrot.slane %v3015, 7
        %v3018 = vshll.u32 %v2952, 16
        %v3020 = vor.u32 %v3017, %v3018
        %v3021 = vsel %vm3008, %v3013, %v3020
        %v3022 = vrot.slane %v3017, 4
        %v3024 = vshrl.u32 %v2953, 16
        %v3026 = vrot.slane %v3024, 7
        %v3027 = vshll.u32 %v2953, 16
        %v3029 = vor.u32 %v3026, %v3027
        %v3030 = vsel %vm3008, %v3022, %v3029
        %v3032 = vshrl.u32 %v2954, 16
        %v3034 = vrot.slane %v3032, 7
        %v3035 = vrot.slane %v3034, 4
        %v3037 = vshrl.u32 %v2955, 16
        %v3039 = vrot.slane %v3037, 7
        %v3040 = vshll.u32 %v2955, 16
        %v3042 = vor.u32 %v3039, %v3040
        %v3043 = vsel %vm3008, %v3035, %v3042
        %v3044 = vrot.slane %v3039, 4
        %v3046 = vshrl.u32 %v2956, 16
        %v3048 = vrot.slane %v3046, 7
        %v3049 = vshll.u32 %v2956, 16
        %v3051 = vor.u32 %v3048, %v3049
        %v3052 = vsel %vm3008, %v3044, %v3051
        %v3054 = vshrl.u32 %v2957, 16
        %v3056 = vrot.slane %v3054, 7
        %v3057 = vrot.slane %v3056, 4
        %v3059 = vshrl.u32 %v2958, 16
        %v3061 = vrot.slane %v3059, 7
        %v3062 = vshll.u32 %v2958, 16
        %v3064 = vor.u32 %v3061, %v3062
        %v3065 = vsel %vm3008, %v3057, %v3064
        %v3066 = vrot.slane %v3061, 4
        %v3068 = vshrl.u32 %v2959, 16
        %v3070 = vrot.slane %v3068, 7
        %v3071 = vshll.u32 %v2959, 16
        %v3073 = vor.u32 %v3070, %v3071
        %v3074 = vsel %vm3008, %v3066, %v3073
        %v3076 = vshrl.u32 %v2960, 16
        %v3078 = vrot.slane %v3076, 7
        %v3079 = vrot.slane %v3078, 4
        %v3081 = vshrl.u32 %v2961, 16
        %v3083 = vrot.slane %v3081, 7
        %v3084 = vshll.u32 %v2961, 16
        %v3086 = vor.u32 %v3083, %v3084
        %v3087 = vsel %vm3008, %v3079, %v3086
        %v3088 = vrot.slane %v3083, 4
        %v3090 = vshrl.u32 %v2962, 16
        %v3092 = vrot.slane %v3090, 7
        %v3093 = vshll.u32 %v2962, 16
        %v3095 = vor.u32 %v3092, %v3093
        %v3096 = vsel %vm3008, %v3088, %v3095
        %v3098 = vshrl.u32 %v2963, 16
        %v3100 = vrot.slane %v3098, 7
        %v3101 = vrot.slane %v3100, 4
        %v3103 = vshrl.u32 %v2964, 16
        %v3105 = vrot.slane %v3103, 7
        %v3106 = vshll.u32 %v2964, 16
        %v3108 = vor.u32 %v3105, %v3106
        %v3109 = vsel %vm3008, %v3101, %v3108
        %v3110 = vrot.slane %v3105, 4
        %v3112 = vshrl.u32 %v2965, 16
        %v3114 = vrot.slane %v3112, 7
        %v3115 = vshll.u32 %v2965, 16
        %v3117 = vor.u32 %v3114, %v3115
        %v3118 = vsel %vm3008, %v3110, %v3117
        %v3120 = vshrl.u32 %v2966, 16
        %v3122 = vrot.slane %v3120, 7
        %v3123 = vrot.slane %v3122, 4
        %v3125 = vshrl.u32 %v2967, 16
        %v3127 = vrot.slane %v3125, 7
        %v3128 = vshll.u32 %v2967, 16
        %v3130 = vor.u32 %v3127, %v3128
        %v3131 = vsel %vm3008, %v3123, %v3130
        %v3132 = vrot.slane %v3127, 4
        %v3134 = vshrl.u32 %v2968, 16
        %v3136 = vrot.slane %v3134, 7
        %v3137 = vshll.u32 %v2968, 16
        %v3139 = vor.u32 %v3136, %v3137
        %v3140 = vsel %vm3008, %v3132, %v3139
        %v3142 = vshrl.u32 %v2969, 16
        %v3144 = vrot.slane %v3142, 7
        %v3145 = vrot.slane %v3144, 4
        %v3147 = vshrl.u32 %v2970, 16
        %v3149 = vrot.slane %v3147, 7
        %v3150 = vshll.u32 %v2970, 16
        %v3152 = vor.u32 %v3149, %v3150
        %v3153 = vsel %vm3008, %v3145, %v3152
        %v3154 = vrot.slane %v3149, 4
        %v3156 = vshrl.u32 %v2971, 16
        %v3158 = vrot.slane %v3156, 7
        %v3159 = vshll.u32 %v2971, 16
        %v3161 = vor.u32 %v3158, %v3159
        %v3162 = vsel %vm3008, %v3154, %v3161
        %v3164 = vshrl.u32 %v2972, 16
        %v3166 = vrot.slane %v3164, 7
        %v3167 = vrot.slane %v3166, 4
        %v3169 = vshrl.u32 %v2973, 16
        %v3171 = vrot.slane %v3169, 7
        %v3172 = vshll.u32 %v2973, 16
        %v3174 = vor.u32 %v3171, %v3172
        %v3175 = vsel %vm3008, %v3167, %v3174
        %v3176 = vrot.slane %v3171, 4
        %v3178 = vshrl.u32 %v2974, 16
        %v3180 = vrot.slane %v3178, 7
        %v3181 = vshll.u32 %v2974, 16
        %v3183 = vor.u32 %v3180, %v3181
        %v3184 = vsel %vm3008, %v3176, %v3183
        %v3186 = vshrl.u32 %v2975, 16
        %v3188 = vrot.slane %v3186, 7
        %v3189 = vrot.slane %v3188, 4
        %v3191 = vshrl.u32 %v2976, 16
        %v3193 = vrot.slane %v3191, 7
        %v3194 = vshll.u32 %v2976, 16
        %v3196 = vor.u32 %v3193, %v3194
        %v3197 = vsel %vm3008, %v3189, %v3196
        %v3198 = vrot.slane %v3193, 4
        %v3200 = vshrl.u32 %v2977, 16
        %v3202 = vrot.slane %v3200, 7
        %v3203 = vshll.u32 %v2977, 16
        %v3205 = vor.u32 %v3202, %v3203
        %v3206 = vsel %vm3008, %v3198, %v3205
        %v3208 = vshrl.u32 %v2978, 16
        %v3210 = vrot.slane %v3208, 7
        %v3211 = vrot.slane %v3210, 4
        %v3213 = vshrl.u32 %v2979, 16
        %v3215 = vrot.slane %v3213, 7
        %v3216 = vshll.u32 %v2979, 16
        %v3218 = vor.u32 %v3215, %v3216
        %v3219 = vsel %vm3008, %v3211, %v3218
        %v3220 = vrot.slane %v3215, 4
        %v3222 = vshrl.u32 %v2980, 16
        %v3224 = vrot.slane %v3222, 7
        %v3225 = vshll.u32 %v2980, 16
        %v3227 = vor.u32 %v3224, %v3225
        %v3228 = vsel %vm3008, %v3220, %v3227
        %v3230 = vshrl.u32 %v2981, 16
        %v3232 = vrot.slane %v3230, 7
        %v3233 = vrot.slane %v3232, 4
        %v3235 = vshrl.u32 %v2982, 16
        %v3237 = vrot.slane %v3235, 7
        %v3238 = vshll.u32 %v2982, 16
        %v3240 = vor.u32 %v3237, %v3238
        %v3241 = vsel %vm3008, %v3233, %v3240
        %v3242 = vrot.slane %v3237, 4
        %v3244 = vshrl.u32 %v2983, 16
        %v3246 = vrot.slane %v3244, 7
        %v3247 = vshll.u32 %v2983, 16
        %v3249 = vor.u32 %v3246, %v3247
        %v3250 = vsel %vm3008, %v3242, %v3249
        %v3252 = vshrl.u32 %v2984, 16
        %v3254 = vrot.slane %v3252, 7
        %v3255 = vrot.slane %v3254, 4
        %v3257 = vshrl.u32 %v2985, 16
        %v3259 = vrot.slane %v3257, 7
        %v3260 = vshll.u32 %v2985, 16
        %v3262 = vor.u32 %v3259, %v3260
        %v3263 = vsel %vm3008, %v3255, %v3262
        %v3264 = vrot.slane %v3259, 4
        %v3266 = vshrl.u32 %v2986, 16
        %v3268 = vrot.slane %v3266, 7
        %v3269 = vshll.u32 %v2986, 16
        %v3271 = vor.u32 %v3268, %v3269
        %v3272 = vsel %vm3008, %v3264, %v3271
        %v3274 = vshrl.u32 %v2987, 16
        %v3276 = vrot.slane %v3274, 7
        %v3277 = vrot.slane %v3276, 4
        %v3279 = vshrl.u32 %v2988, 16
        %v3281 = vrot.slane %v3279, 7
        %v3282 = vshll.u32 %v2988, 16
        %v3284 = vor.u32 %v3281, %v3282
        %v3285 = vsel %vm3008, %v3277, %v3284
        %v3286 = vrot.slane %v3281, 4
        %v3288 = vshrl.u32 %v2989, 16
        %v3290 = vrot.slane %v3288, 7
        %v3291 = vshll.u32 %v2989, 16
        %v3293 = vor.u32 %v3290, %v3291
        %v3294 = vsel %vm3008, %v3286, %v3293
        %v3296 = vshrl.u32 %v2990, 16
        %v3298 = vrot.slane %v3296, 7
        %v3299 = vrot.slane %v3298, 4
        %v3301 = vshrl.u32 %v2991, 16
        %v3303 = vrot.slane %v3301, 7
        %v3304 = vshll.u32 %v2991, 16
        %v3306 = vor.u32 %v3303, %v3304
        %v3307 = vsel %vm3008, %v3299, %v3306
        %v3308 = vrot.slane %v3303, 4
        %v3310 = vshrl.u32 %v2992, 16
        %v3312 = vrot.slane %v3310, 7
        %v3313 = vshll.u32 %v2992, 16
        %v3315 = vor.u32 %v3312, %v3313
        %v3316 = vsel %vm3008, %v3308, %v3315
        %v3318 = vshrl.u32 %v2993, 16
        %v3320 = vrot.slane %v3318, 7
        %v3321 = vrot.slane %v3320, 4
        %v3323 = vshrl.u32 %v2994, 16
        %v3325 = vrot.slane %v3323, 7
        %v3326 = vshll.u32 %v2994, 16
        %v3328 = vor.u32 %v3325, %v3326
        %v3329 = vsel %vm3008, %v3321, %v3328
        %v3330 = vrot.slane %v3325, 4
        %v3332 = vshrl.u32 %v2995, 16
        %v3334 = vrot.slane %v3332, 7
        %v3335 = vshll.u32 %v2995, 16
        %v3337 = vor.u32 %v3334, %v3335
        %v3338 = vsel %vm3008, %v3330, %v3337
        %v3340 = vshrl.u32 %v2996, 16
        %v3342 = vrot.slane %v3340, 7
        %v3343 = vrot.slane %v3342, 4
        %v3345 = vshrl.u32 %v2997, 16
        %v3347 = vrot.slane %v3345, 7
        %v3348 = vshll.u32 %v2997, 16
        %v3350 = vor.u32 %v3347, %v3348
        %v3351 = vsel %vm3008, %v3343, %v3350
        %v3352 = vrot.slane %v3347, 4
        %v3354 = vshrl.u32 %v2998, 16
        %v3356 = vrot.slane %v3354, 7
        %v3357 = vshll.u32 %v2998, 16
        %v3359 = vor.u32 %v3356, %v3357
        %v3360 = vsel %vm3008, %v3352, %v3359
        %v3361 = vld [vmem:[#allocation15] sm:$0xf]
        %v3362 = vld [vmem:[#allocation15 + $0x4] sm:$0xf]
        %v3363 = vld [vmem:[#allocation15 + $0x8] sm:$0xf]
        %v3364 = vld [vmem:[#allocation15 + $0xc] sm:$0xf]
        %v3365 = vld [vmem:[#allocation15 + $0x10] sm:$0xf]
        %v3366 = vld [vmem:[#allocation15 + $0x14] sm:$0xf]
        %v3367 = vld [vmem:[#allocation15 + $0x18] sm:$0xf]
        %v3368 = vld [vmem:[#allocation15 + $0x1c] sm:$0xf]
        %v3369 = vld [vmem:[#allocation15 + $0x20] sm:$0xf]
        %v3370 = vld [vmem:[#allocation15 + $0x24] sm:$0xf]
        %v3371 = vld [vmem:[#allocation15 + $0x28] sm:$0xf]
        %v3372 = vld [vmem:[#allocation15 + $0x2c] sm:$0xf]
        %v3373 = vld [vmem:[#allocation15 + $0x30] sm:$0xf]
        %v3374 = vld [vmem:[#allocation15 + $0x34] sm:$0xf]
        %v3375 = vld [vmem:[#allocation15 + $0x38] sm:$0xf]
        %v3376 = vld [vmem:[#allocation15 + $0x3c] sm:$0xf]
        %v3377 = vunpack.c.l.b16 %v3021
        %v3378 = vunpack.c.l.b16 %v3030
        %v3379 = vunpack.c.l.b16 %v3043
        %v3380 = vunpack.c.l.b16 %v3052
        %v3381 = vunpack.c.l.b16 %v3065
        %v3382 = vunpack.c.l.b16 %v3074
        %v3383 = vunpack.c.l.b16 %v3087
        %v3384 = vunpack.c.l.b16 %v3096
        %v3385 = vunpack.c.l.b16 %v3109
        %v3386 = vunpack.c.l.b16 %v3118
        %v3387 = vunpack.c.l.b16 %v3131
        %v3388 = vunpack.c.l.b16 %v3140
        %v3389 = vunpack.c.l.b16 %v3153
        %v3390 = vunpack.c.l.b16 %v3162
        %v3391 = vunpack.c.l.b16 %v3175
        %v3392 = vunpack.c.l.b16 %v3184
        %v3393 = vunpack.c.l.b16 %v3197
        %v3394 = vunpack.c.l.b16 %v3206
        %v3395 = vunpack.c.l.b16 %v3219
        %v3396 = vunpack.c.l.b16 %v3228
        %v3397 = vunpack.c.l.b16 %v3241
        %v3398 = vunpack.c.l.b16 %v3250
        %v3399 = vunpack.c.l.b16 %v3263
        %v3400 = vunpack.c.l.b16 %v3272
        %v3401 = vunpack.c.l.b16 %v3285
        %v3402 = vunpack.c.l.b16 %v3294
        %v3403 = vunpack.c.l.b16 %v3307
        %v3404 = vunpack.c.l.b16 %v3316
        %v3405 = vunpack.c.l.b16 %v3329
        %v3406 = vunpack.c.l.b16 %v3338
        %v3407 = vunpack.c.l.b16 %v3351
        %v3408 = vunpack.c.l.b16 %v3360
        %v3409 = vpack.c.b16 %v3378, %v3377
        %v3410 = vpack.c.b16 %v3380, %v3379
        %v3411 = vpack.c.b16 %v3382, %v3381
        %v3412 = vpack.c.b16 %v3384, %v3383
        %v3413 = vpack.c.b16 %v3386, %v3385
        %v3414 = vpack.c.b16 %v3388, %v3387
        %v3415 = vpack.c.b16 %v3390, %v3389
        %v3416 = vpack.c.b16 %v3392, %v3391
        %v3417 = vpack.c.b16 %v3394, %v3393
        %v3418 = vpack.c.b16 %v3396, %v3395
        %v3419 = vpack.c.b16 %v3398, %v3397
        %v3420 = vpack.c.b16 %v3400, %v3399
        %v3421 = vpack.c.b16 %v3402, %v3401
        %v3422 = vpack.c.b16 %v3404, %v3403
        %v3423 = vpack.c.b16 %v3406, %v3405
        %v3424 = vpack.c.b16 %v3408, %v3407
        %v3457 = vunpack.c.l.b16 %v3361
        %v3458 = vunpack.c.l.b16 %v3362
        %v3459 = vunpack.c.l.b16 %v3363
        %v3460 = vunpack.c.l.b16 %v3364
        %v3461 = vunpack.c.l.b16 %v3365
        %v3462 = vunpack.c.l.b16 %v3366
        %v3463 = vunpack.c.l.b16 %v3367
        %v3464 = vunpack.c.l.b16 %v3368
        %v3465 = vunpack.c.l.b16 %v3369
        %v3466 = vunpack.c.l.b16 %v3370
        %v3467 = vunpack.c.l.b16 %v3371
        %v3468 = vunpack.c.l.b16 %v3372
        %v3469 = vunpack.c.l.b16 %v3373
        %v3470 = vunpack.c.l.b16 %v3374
        %v3471 = vunpack.c.l.b16 %v3375
        %v3472 = vunpack.c.l.b16 %v3376
        %v3473 = vpack.c.b16 %v3458, %v3457
        %v3474 = vpack.c.b16 %v3460, %v3459
        %v3475 = vpack.c.b16 %v3462, %v3461
        %v3476 = vpack.c.b16 %v3464, %v3463
        %v3477 = vpack.c.b16 %v3466, %v3465
        %v3478 = vpack.c.b16 %v3468, %v3467
        %v3479 = vpack.c.b16 %v3470, %v3469
        %v3480 = vpack.c.b16 %v3472, %v3471
        %3489 = vmatpush.bf16.msra.mxu0 %v3480
        %3490 = vmatpush.bf16.msra.mxu0 %v3479
        %3491 = vmatpush.bf16.msra.mxu0 %v3478
        %3492 = vmatpush.bf16.msra.mxu0 %v3477
        %3493 = vmatpush.bf16.msra.mxu0 %v3476
        %3494 = vmatpush.bf16.msra.mxu0 %v3475
        %3495 = vmatpush.bf16.msra.mxu0 %v3474
        %3496 = vmatpush.bf16.msra.mxu0 %v3473
        %3497 = vmatmul.bf16.gmra.mxu0 %v3409
        %v3498 = vpop.f32.mrf.mxu0
        %v3499 = vadd.f32 0.0, %v3498
        %v3500 = vpop.f32.mrf.mxu0
        %v3501 = vadd.f32 0.0, %v3500
        %3502 = vmatmul.bf16.gmra.mxu0 %v3410
        %v3503 = vpop.f32.mrf.mxu0
        %v3504 = vadd.f32 0.0, %v3503
        %v3505 = vpop.f32.mrf.mxu0
        %v3506 = vadd.f32 0.0, %v3505
        %3507 = vmatmul.bf16.gmra.mxu0 %v3411
        %v3508 = vpop.f32.mrf.mxu0
        %v3509 = vadd.f32 0.0, %v3508
        %v3510 = vpop.f32.mrf.mxu0
        %v3511 = vadd.f32 0.0, %v3510
        %3512 = vmatmul.bf16.gmra.mxu0 %v3412
        %v3513 = vpop.f32.mrf.mxu0
        %v3514 = vadd.f32 0.0, %v3513
        %v3515 = vpop.f32.mrf.mxu0
        %v3516 = vadd.f32 0.0, %v3515
        %3517 = vmatmul.bf16.gmra.mxu0 %v3413
        %v3518 = vpop.f32.mrf.mxu0
        %v3519 = vadd.f32 0.0, %v3518
        %v3520 = vpop.f32.mrf.mxu0
        %v3521 = vadd.f32 0.0, %v3520
        %3522 = vmatmul.bf16.gmra.mxu0 %v3414
        %v3523 = vpop.f32.mrf.mxu0
        %v3524 = vadd.f32 0.0, %v3523
        %v3525 = vpop.f32.mrf.mxu0
        %v3526 = vadd.f32 0.0, %v3525
        %3527 = vmatmul.bf16.gmra.mxu0 %v3415
        %v3528 = vpop.f32.mrf.mxu0
        %v3529 = vadd.f32 0.0, %v3528
        %v3530 = vpop.f32.mrf.mxu0
        %v3531 = vadd.f32 0.0, %v3530
        %3532 = vmatmul.bf16.gmra.mxu0 %v3416
        %v3533 = vpop.f32.mrf.mxu0
        %v3534 = vadd.f32 0.0, %v3533
        %v3535 = vpop.f32.mrf.mxu0
        %v3536 = vadd.f32 0.0, %v3535
        %3537 = vmatmul.bf16.gmra.mxu0 %v3417
        %v3538 = vpop.f32.mrf.mxu0
        %v3539 = vadd.f32 0.0, %v3538
        %v3540 = vpop.f32.mrf.mxu0
        %v3541 = vadd.f32 0.0, %v3540
        %3542 = vmatmul.bf16.gmra.mxu0 %v3418
        %v3543 = vpop.f32.mrf.mxu0
        %v3544 = vadd.f32 0.0, %v3543
        %v3545 = vpop.f32.mrf.mxu0
        %v3546 = vadd.f32 0.0, %v3545
        %3547 = vmatmul.bf16.gmra.mxu0 %v3419
        %v3548 = vpop.f32.mrf.mxu0
        %v3549 = vadd.f32 0.0, %v3548
        %v3550 = vpop.f32.mrf.mxu0
        %v3551 = vadd.f32 0.0, %v3550
        %3552 = vmatmul.bf16.gmra.mxu0 %v3420
        %v3553 = vpop.f32.mrf.mxu0
        %v3554 = vadd.f32 0.0, %v3553
        %v3555 = vpop.f32.mrf.mxu0
        %v3556 = vadd.f32 0.0, %v3555
        %3557 = vmatmul.bf16.gmra.mxu0 %v3421
        %v3558 = vpop.f32.mrf.mxu0
        %v3559 = vadd.f32 0.0, %v3558
        %v3560 = vpop.f32.mrf.mxu0
        %v3561 = vadd.f32 0.0, %v3560
        %3562 = vmatmul.bf16.gmra.mxu0 %v3422
        %v3563 = vpop.f32.mrf.mxu0
        %v3564 = vadd.f32 0.0, %v3563
        %v3565 = vpop.f32.mrf.mxu0
        %v3566 = vadd.f32 0.0, %v3565
        %3567 = vmatmul.bf16.gmra.mxu0 %v3423
        %v3568 = vpop.f32.mrf.mxu0
        %v3569 = vadd.f32 0.0, %v3568
        %v3570 = vpop.f32.mrf.mxu0
        %v3571 = vadd.f32 0.0, %v3570
        %3572 = vmatmul.bf16.gmra.mxu0 %v3424
        %v3573 = vpop.f32.mrf.mxu0
        %v3574 = vadd.f32 0.0, %v3573
        %v3575 = vpop.f32.mrf.mxu0
        %v3576 = vadd.f32 0.0, %v3575
        %3577 = vdwg.mxu0
        %v3579 = vperm.slane %v3005, 0
        %v3581 = vadd.f32 %v3579, %v3499
        %v3582 = vadd.f32 %v3579, %v3501
        %v3583 = vadd.f32 %v3579, %v3504
        %v3584 = vadd.f32 %v3579, %v3506
        %v3585 = vadd.f32 %v3579, %v3509
        %v3586 = vadd.f32 %v3579, %v3511
        %v3587 = vadd.f32 %v3579, %v3514
        %v3588 = vadd.f32 %v3579, %v3516
        %v3589 = vadd.f32 %v3579, %v3519
        %v3590 = vadd.f32 %v3579, %v3521
        %v3591 = vadd.f32 %v3579, %v3524
        %v3592 = vadd.f32 %v3579, %v3526
        %v3593 = vadd.f32 %v3579, %v3529
        %v3594 = vadd.f32 %v3579, %v3531
        %v3595 = vadd.f32 %v3579, %v3534
        %v3596 = vadd.f32 %v3579, %v3536
        %v3597 = vadd.f32 %v3579, %v3539
        %v3598 = vadd.f32 %v3579, %v3541
        %v3599 = vadd.f32 %v3579, %v3544
        %v3600 = vadd.f32 %v3579, %v3546
        %v3601 = vadd.f32 %v3579, %v3549
        %v3602 = vadd.f32 %v3579, %v3551
        %v3603 = vadd.f32 %v3579, %v3554
        %v3604 = vadd.f32 %v3579, %v3556
        %v3605 = vadd.f32 %v3579, %v3559
        %v3606 = vadd.f32 %v3579, %v3561
        %v3607 = vadd.f32 %v3579, %v3564
        %v3608 = vadd.f32 %v3579, %v3566
        %v3609 = vadd.f32 %v3579, %v3569
        %v3610 = vadd.f32 %v3579, %v3571
        %v3611 = vadd.f32 %v3579, %v3574
        %v3612 = vadd.f32 %v3579, %v3576
        %v3614 = vshrl.u32 %v2999, 16
        %v3616 = vrot.slane %v3614, 7
        %v3617 = vrot.slane %v3616, 4
        %v3619 = vshrl.u32 %v3000, 16
        %v3621 = vrot.slane %v3619, 7
        %v3622 = vshll.u32 %v3000, 16
        %v3624 = vor.u32 %v3621, %v3622
        %v3625 = vsel %vm3008, %v3617, %v3624
        %v3626 = vrot.slane %v3621, 4
        %v3628 = vshrl.u32 %v3001, 16
        %v3630 = vrot.slane %v3628, 7
        %v3631 = vshll.u32 %v3001, 16
        %v3633 = vor.u32 %v3630, %v3631
        %v3634 = vsel %vm3008, %v3626, %v3633
        %s3635 = scalar_lea.vmem [#allocation15], 64
        %v3636 = vld [vmem:[%s3635] sm:$0xf]
        %v3637 = vld [vmem:[%s3635 + $0x4] sm:$0xf]
        %v3638 = vld [vmem:[%s3635 + $0x8] sm:$0xf]
        %v3639 = vld [vmem:[%s3635 + $0xc] sm:$0xf]
        %v3640 = vld [vmem:[%s3635 + $0x10] sm:$0xf]
        %v3641 = vld [vmem:[%s3635 + $0x14] sm:$0xf]
        %v3642 = vld [vmem:[%s3635 + $0x18] sm:$0xf]
        %v3643 = vld [vmem:[%s3635 + $0x1c] sm:$0xf]
        %v3644 = vld [vmem:[%s3635 + $0x20] sm:$0xf]
        %v3645 = vld [vmem:[%s3635 + $0x24] sm:$0xf]
        %v3646 = vld [vmem:[%s3635 + $0x28] sm:$0xf]
        %v3647 = vld [vmem:[%s3635 + $0x2c] sm:$0xf]
        %v3648 = vld [vmem:[%s3635 + $0x30] sm:$0xf]
        %v3649 = vld [vmem:[%s3635 + $0x34] sm:$0xf]
        %v3650 = vld [vmem:[%s3635 + $0x38] sm:$0xf]
        %v3651 = vld [vmem:[%s3635 + $0x3c] sm:$0xf]
        %v3652 = vunpack.c.l.b16 %v3625
        %v3653 = vunpack.c.l.b16 %v3634
        %v3654 = vpack.c.b16 %v3653, %v3652
        %v3672 = vunpack.c.l.b16 %v3636
        %v3673 = vunpack.c.l.b16 %v3637
        %v3674 = vunpack.c.l.b16 %v3638
        %v3675 = vunpack.c.l.b16 %v3639
        %v3676 = vunpack.c.l.b16 %v3640
        %v3677 = vunpack.c.l.b16 %v3641
        %v3678 = vunpack.c.l.b16 %v3642
        %v3679 = vunpack.c.l.b16 %v3643
        %v3680 = vunpack.c.l.b16 %v3644
        %v3681 = vunpack.c.l.b16 %v3645
        %v3682 = vunpack.c.l.b16 %v3646
        %v3683 = vunpack.c.l.b16 %v3647
        %v3684 = vunpack.c.l.b16 %v3648
        %v3685 = vunpack.c.l.b16 %v3649
        %v3686 = vunpack.c.l.b16 %v3650
        %v3687 = vunpack.c.l.b16 %v3651
        %v3688 = vpack.c.b16 %v3673, %v3672
        %v3689 = vpack.c.b16 %v3675, %v3674
        %v3690 = vpack.c.b16 %v3677, %v3676
        %v3691 = vpack.c.b16 %v3679, %v3678
        %v3692 = vpack.c.b16 %v3681, %v3680
        %v3693 = vpack.c.b16 %v3683, %v3682
        %v3694 = vpack.c.b16 %v3685, %v3684
        %v3695 = vpack.c.b16 %v3687, %v3686
        %3704 = vmatpush.bf16.msra.mxu0 %v3695
        %3705 = vmatpush.bf16.msra.mxu0 %v3694
        %3706 = vmatpush.bf16.msra.mxu0 %v3693
        %3707 = vmatpush.bf16.msra.mxu0 %v3692
        %3708 = vmatpush.bf16.msra.mxu0 %v3691
        %3709 = vmatpush.bf16.msra.mxu0 %v3690
        %3710 = vmatpush.bf16.msra.mxu0 %v3689
        %3711 = vmatpush.bf16.msra.mxu0 %v3688
        %3712 = vmatmul.bf16.gmra.mxu0 %v3410
        %v3713 = vpop.f32.mrf.mxu0
        %v3714 = vadd.f32 0.0, %v3713
        %v3715 = vpop.f32.mrf.mxu0
        %v3716 = vadd.f32 0.0, %v3715
        %3717 = vmatmul.bf16.gmra.mxu0 %v3411
        %v3718 = vpop.f32.mrf.mxu0
        %v3719 = vadd.f32 0.0, %v3718
        %v3720 = vpop.f32.mrf.mxu0
        %v3721 = vadd.f32 0.0, %v3720
        %3722 = vmatmul.bf16.gmra.mxu0 %v3412
        %v3723 = vpop.f32.mrf.mxu0
        %v3724 = vadd.f32 0.0, %v3723
        %v3725 = vpop.f32.mrf.mxu0
        %v3726 = vadd.f32 0.0, %v3725
        %3727 = vmatmul.bf16.gmra.mxu0 %v3413
        %v3728 = vpop.f32.mrf.mxu0
        %v3729 = vadd.f32 0.0, %v3728
        %v3730 = vpop.f32.mrf.mxu0
        %v3731 = vadd.f32 0.0, %v3730
        %3732 = vmatmul.bf16.gmra.mxu0 %v3414
        %v3733 = vpop.f32.mrf.mxu0
        %v3734 = vadd.f32 0.0, %v3733
        %v3735 = vpop.f32.mrf.mxu0
        %v3736 = vadd.f32 0.0, %v3735
        %3737 = vmatmul.bf16.gmra.mxu0 %v3415
        %v3738 = vpop.f32.mrf.mxu0
        %v3739 = vadd.f32 0.0, %v3738
        %v3740 = vpop.f32.mrf.mxu0
        %v3741 = vadd.f32 0.0, %v3740
        %3742 = vmatmul.bf16.gmra.mxu0 %v3416
        %v3743 = vpop.f32.mrf.mxu0
        %v3744 = vadd.f32 0.0, %v3743
        %v3745 = vpop.f32.mrf.mxu0
        %v3746 = vadd.f32 0.0, %v3745
        %3747 = vmatmul.bf16.gmra.mxu0 %v3417
        %v3748 = vpop.f32.mrf.mxu0
        %v3749 = vadd.f32 0.0, %v3748
        %v3750 = vpop.f32.mrf.mxu0
        %v3751 = vadd.f32 0.0, %v3750
        %3752 = vmatmul.bf16.gmra.mxu0 %v3418
        %v3753 = vpop.f32.mrf.mxu0
        %v3754 = vadd.f32 0.0, %v3753
        %v3755 = vpop.f32.mrf.mxu0
        %v3756 = vadd.f32 0.0, %v3755
        %3757 = vmatmul.bf16.gmra.mxu0 %v3419
        %v3758 = vpop.f32.mrf.mxu0
        %v3759 = vadd.f32 0.0, %v3758
        %v3760 = vpop.f32.mrf.mxu0
        %v3761 = vadd.f32 0.0, %v3760
        %3762 = vmatmul.bf16.gmra.mxu0 %v3420
        %v3763 = vpop.f32.mrf.mxu0
        %v3764 = vadd.f32 0.0, %v3763
        %v3765 = vpop.f32.mrf.mxu0
        %v3766 = vadd.f32 0.0, %v3765
        %3767 = vmatmul.bf16.gmra.mxu0 %v3421
        %v3768 = vpop.f32.mrf.mxu0
        %v3769 = vadd.f32 0.0, %v3768
        %v3770 = vpop.f32.mrf.mxu0
        %v3771 = vadd.f32 0.0, %v3770
        %3772 = vmatmul.bf16.gmra.mxu0 %v3422
        %v3773 = vpop.f32.mrf.mxu0
        %v3774 = vadd.f32 0.0, %v3773
        %v3775 = vpop.f32.mrf.mxu0
        %v3776 = vadd.f32 0.0, %v3775
        %3777 = vmatmul.bf16.gmra.mxu0 %v3423
        %v3778 = vpop.f32.mrf.mxu0
        %v3779 = vadd.f32 0.0, %v3778
        %v3780 = vpop.f32.mrf.mxu0
        %v3781 = vadd.f32 0.0, %v3780
        %3782 = vmatmul.bf16.gmra.mxu0 %v3424
        %v3783 = vpop.f32.mrf.mxu0
        %v3784 = vadd.f32 0.0, %v3783
        %v3785 = vpop.f32.mrf.mxu0
        %v3786 = vadd.f32 0.0, %v3785
        %3787 = vmatmul.bf16.gmra.mxu0 %v3654
        %v3788 = vpop.f32.mrf.mxu0
        %v3789 = vadd.f32 0.0, %v3788
        %v3790 = vpop.f32.mrf.mxu0
        %v3791 = vadd.f32 0.0, %v3790
        %3792 = vdwg.mxu0
        %v3793 = vadd.f32 %v3581, %v3714
        %v3794 = vadd.f32 %v3582, %v3716
        %v3795 = vadd.f32 %v3583, %v3719
        %v3796 = vadd.f32 %v3584, %v3721
        %v3797 = vadd.f32 %v3585, %v3724
        %v3798 = vadd.f32 %v3586, %v3726
        %v3799 = vadd.f32 %v3587, %v3729
        %v3800 = vadd.f32 %v3588, %v3731
        %v3801 = vadd.f32 %v3589, %v3734
        %v3802 = vadd.f32 %v3590, %v3736
        %v3803 = vadd.f32 %v3591, %v3739
        %v3804 = vadd.f32 %v3592, %v3741
        %v3805 = vadd.f32 %v3593, %v3744
        %v3806 = vadd.f32 %v3594, %v3746
        %v3807 = vadd.f32 %v3595, %v3749
        %v3808 = vadd.f32 %v3596, %v3751
        %v3809 = vadd.f32 %v3597, %v3754
        %v3810 = vadd.f32 %v3598, %v3756
        %v3811 = vadd.f32 %v3599, %v3759
        %v3812 = vadd.f32 %v3600, %v3761
        %v3813 = vadd.f32 %v3601, %v3764
        %v3814 = vadd.f32 %v3602, %v3766
        %v3815 = vadd.f32 %v3603, %v3769
        %v3816 = vadd.f32 %v3604, %v3771
        %v3817 = vadd.f32 %v3605, %v3774
        %v3818 = vadd.f32 %v3606, %v3776
        %v3819 = vadd.f32 %v3607, %v3779
        %v3820 = vadd.f32 %v3608, %v3781
        %v3821 = vadd.f32 %v3609, %v3784
        %v3822 = vadd.f32 %v3610, %v3786
        %v3823 = vadd.f32 %v3611, %v3789
        %v3824 = vadd.f32 %v3612, %v3791
        %v3826 = vshrl.u32 %v3002, 16
        %v3828 = vrot.slane %v3826, 7
        %v3829 = vrot.slane %v3828, 4
        %v3831 = vshrl.u32 %v3003, 16
        %v3833 = vrot.slane %v3831, 7
        %v3834 = vshll.u32 %v3003, 16
        %v3836 = vor.u32 %v3833, %v3834
        %v3837 = vsel %vm3008, %v3829, %v3836
        %v3838 = vrot.slane %v3833, 4
        %v3840 = vshrl.u32 %v3004, 16
        %v3842 = vrot.slane %v3840, 7
        %v3843 = vshll.u32 %v3004, 16
        %v3845 = vor.u32 %v3842, %v3843
        %v3846 = vsel %vm3008, %v3838, %v3845
        %s3847 = scalar_lea.vmem [#allocation15], 128
        %v3848 = vld [vmem:[%s3847] sm:$0xf]
        %v3849 = vld [vmem:[%s3847 + $0x4] sm:$0xf]
        %v3850 = vld [vmem:[%s3847 + $0x8] sm:$0xf]
        %v3851 = vld [vmem:[%s3847 + $0xc] sm:$0xf]
        %v3852 = vld [vmem:[%s3847 + $0x10] sm:$0xf]
        %v3853 = vld [vmem:[%s3847 + $0x14] sm:$0xf]
        %v3854 = vld [vmem:[%s3847 + $0x18] sm:$0xf]
        %v3855 = vld [vmem:[%s3847 + $0x1c] sm:$0xf]
        %v3856 = vld [vmem:[%s3847 + $0x20] sm:$0xf]
        %v3857 = vld [vmem:[%s3847 + $0x24] sm:$0xf]
        %v3858 = vld [vmem:[%s3847 + $0x28] sm:$0xf]
        %v3859 = vld [vmem:[%s3847 + $0x2c] sm:$0xf]
        %v3860 = vld [vmem:[%s3847 + $0x30] sm:$0xf]
        %v3861 = vld [vmem:[%s3847 + $0x34] sm:$0xf]
        %v3862 = vld [vmem:[%s3847 + $0x38] sm:$0xf]
        %v3863 = vld [vmem:[%s3847 + $0x3c] sm:$0xf]
        %v3864 = vunpack.c.l.b16 %v3837
        %v3865 = vunpack.c.l.b16 %v3846
        %v3866 = vpack.c.b16 %v3865, %v3864
        %v3884 = vunpack.c.l.b16 %v3848
        %v3885 = vunpack.c.l.b16 %v3849
        %v3886 = vunpack.c.l.b16 %v3850
        %v3887 = vunpack.c.l.b16 %v3851
        %v3888 = vunpack.c.l.b16 %v3852
        %v3889 = vunpack.c.l.b16 %v3853
        %v3890 = vunpack.c.l.b16 %v3854
        %v3891 = vunpack.c.l.b16 %v3855
        %v3892 = vunpack.c.l.b16 %v3856
        %v3893 = vunpack.c.l.b16 %v3857
        %v3894 = vunpack.c.l.b16 %v3858
        %v3895 = vunpack.c.l.b16 %v3859
        %v3896 = vunpack.c.l.b16 %v3860
        %v3897 = vunpack.c.l.b16 %v3861
        %v3898 = vunpack.c.l.b16 %v3862
        %v3899 = vunpack.c.l.b16 %v3863
        %v3900 = vpack.c.b16 %v3885, %v3884
        %v3901 = vpack.c.b16 %v3887, %v3886
        %v3902 = vpack.c.b16 %v3889, %v3888
        %v3903 = vpack.c.b16 %v3891, %v3890
        %v3904 = vpack.c.b16 %v3893, %v3892
        %v3905 = vpack.c.b16 %v3895, %v3894
        %v3906 = vpack.c.b16 %v3897, %v3896
        %v3907 = vpack.c.b16 %v3899, %v3898
        %3916 = vmatpush.bf16.msra.mxu0 %v3907
        %3917 = vmatpush.bf16.msra.mxu0 %v3906
        %3918 = vmatpush.bf16.msra.mxu0 %v3905
        %3919 = vmatpush.bf16.msra.mxu0 %v3904
        %3920 = vmatpush.bf16.msra.mxu0 %v3903
        %3921 = vmatpush.bf16.msra.mxu0 %v3902
        %3922 = vmatpush.bf16.msra.mxu0 %v3901
        %3923 = vmatpush.bf16.msra.mxu0 %v3900
        %3924 = vmatmul.bf16.gmra.mxu0 %v3411
        %v3925 = vpop.f32.mrf.mxu0
        %v3926 = vadd.f32 0.0, %v3925
        %v3927 = vpop.f32.mrf.mxu0
        %v3928 = vadd.f32 0.0, %v3927
        %3929 = vmatmul.bf16.gmra.mxu0 %v3412
        %v3930 = vpop.f32.mrf.mxu0
        %v3931 = vadd.f32 0.0, %v3930
        %v3932 = vpop.f32.mrf.mxu0
        %v3933 = vadd.f32 0.0, %v3932
        %3934 = vmatmul.bf16.gmra.mxu0 %v3413
        %v3935 = vpop.f32.mrf.mxu0
        %v3936 = vadd.f32 0.0, %v3935
        %v3937 = vpop.f32.mrf.mxu0
        %v3938 = vadd.f32 0.0, %v3937
        %3939 = vmatmul.bf16.gmra.mxu0 %v3414
        %v3940 = vpop.f32.mrf.mxu0
        %v3941 = vadd.f32 0.0, %v3940
        %v3942 = vpop.f32.mrf.mxu0
        %v3943 = vadd.f32 0.0, %v3942
        %3944 = vmatmul.bf16.gmra.mxu0 %v3415
        %v3945 = vpop.f32.mrf.mxu0
        %v3946 = vadd.f32 0.0, %v3945
        %v3947 = vpop.f32.mrf.mxu0
        %v3948 = vadd.f32 0.0, %v3947
        %3949 = vmatmul.bf16.gmra.mxu0 %v3416
        %v3950 = vpop.f32.mrf.mxu0
        %v3951 = vadd.f32 0.0, %v3950
        %v3952 = vpop.f32.mrf.mxu0
        %v3953 = vadd.f32 0.0, %v3952
        %3954 = vmatmul.bf16.gmra.mxu0 %v3417
        %v3955 = vpop.f32.mrf.mxu0
        %v3956 = vadd.f32 0.0, %v3955
        %v3957 = vpop.f32.mrf.mxu0
        %v3958 = vadd.f32 0.0, %v3957
        %3959 = vmatmul.bf16.gmra.mxu0 %v3418
        %v3960 = vpop.f32.mrf.mxu0
        %v3961 = vadd.f32 0.0, %v3960
        %v3962 = vpop.f32.mrf.mxu0
        %v3963 = vadd.f32 0.0, %v3962
        %3964 = vmatmul.bf16.gmra.mxu0 %v3419
        %v3965 = vpop.f32.mrf.mxu0
        %v3966 = vadd.f32 0.0, %v3965
        %v3967 = vpop.f32.mrf.mxu0
        %v3968 = vadd.f32 0.0, %v3967
        %3969 = vmatmul.bf16.gmra.mxu0 %v3420
        %v3970 = vpop.f32.mrf.mxu0
        %v3971 = vadd.f32 0.0, %v3970
        %v3972 = vpop.f32.mrf.mxu0
        %v3973 = vadd.f32 0.0, %v3972
        %3974 = vmatmul.bf16.gmra.mxu0 %v3421
        %v3975 = vpop.f32.mrf.mxu0
        %v3976 = vadd.f32 0.0, %v3975
        %v3977 = vpop.f32.mrf.mxu0
        %v3978 = vadd.f32 0.0, %v3977
        %3979 = vmatmul.bf16.gmra.mxu0 %v3422
        %v3980 = vpop.f32.mrf.mxu0
        %v3981 = vadd.f32 0.0, %v3980
        %v3982 = vpop.f32.mrf.mxu0
        %v3983 = vadd.f32 0.0, %v3982
        %3984 = vmatmul.bf16.gmra.mxu0 %v3423
        %v3985 = vpop.f32.mrf.mxu0
        %v3986 = vadd.f32 0.0, %v3985
        %v3987 = vpop.f32.mrf.mxu0
        %v3988 = vadd.f32 0.0, %v3987
        %3989 = vmatmul.bf16.gmra.mxu0 %v3424
        %v3990 = vpop.f32.mrf.mxu0
        %v3991 = vadd.f32 0.0, %v3990
        %v3992 = vpop.f32.mrf.mxu0
        %v3993 = vadd.f32 0.0, %v3992
        %3994 = vmatmul.bf16.gmra.mxu0 %v3654
        %v3995 = vpop.f32.mrf.mxu0
        %v3996 = vadd.f32 0.0, %v3995
        %v3997 = vpop.f32.mrf.mxu0
        %v3998 = vadd.f32 0.0, %v3997
        %3999 = vmatmul.bf16.gmra.mxu0 %v3866
        %v4000 = vpop.f32.mrf.mxu0
        %v4001 = vadd.f32 0.0, %v4000
        %v4002 = vpop.f32.mrf.mxu0
        %v4003 = vadd.f32 0.0, %v4002
        %4004 = vdwg.mxu0
        %v4005 = vadd.f32 %v3793, %v3926
        %v4006 = vadd.f32 %v3794, %v3928
        %v4007 = vadd.f32 %v3795, %v3931
        %v4008 = vadd.f32 %v3796, %v3933
        %v4009 = vadd.f32 %v3797, %v3936
        %v4010 = vadd.f32 %v3798, %v3938
        %v4011 = vadd.f32 %v3799, %v3941
        %v4012 = vadd.f32 %v3800, %v3943
        %v4013 = vadd.f32 %v3801, %v3946
        %v4014 = vadd.f32 %v3802, %v3948
        %v4015 = vadd.f32 %v3803, %v3951
        %v4016 = vadd.f32 %v3804, %v3953
        %v4017 = vadd.f32 %v3805, %v3956
        %v4018 = vadd.f32 %v3806, %v3958
        %v4019 = vadd.f32 %v3807, %v3961
        %v4020 = vadd.f32 %v3808, %v3963
        %v4021 = vadd.f32 %v3809, %v3966
        %v4022 = vadd.f32 %v3810, %v3968
        %v4023 = vadd.f32 %v3811, %v3971
        %v4024 = vadd.f32 %v3812, %v3973
        %v4025 = vadd.f32 %v3813, %v3976
        %v4026 = vadd.f32 %v3814, %v3978
        %v4027 = vadd.f32 %v3815, %v3981
        %v4028 = vadd.f32 %v3816, %v3983
        %v4029 = vadd.f32 %v3817, %v3986
        %v4030 = vadd.f32 %v3818, %v3988
        %v4031 = vadd.f32 %v3819, %v3991
        %v4032 = vadd.f32 %v3820, %v3993
        %v4033 = vadd.f32 %v3821, %v3996
        %v4034 = vadd.f32 %v3822, %v3998
        %v4035 = vadd.f32 %v3823, %v4001
        %v4036 = vadd.f32 %v3824, %v4003
        %v4037 = vmax.f32 %v4005, 0.0
        %v4038 = vmax.f32 %v4006, 0.0
        %v4039 = vmax.f32 %v4007, 0.0
        %v4040 = vmax.f32 %v4008, 0.0
        %v4041 = vmax.f32 %v4009, 0.0
        %v4042 = vmax.f32 %v4010, 0.0
        %v4043 = vmax.f32 %v4011, 0.0
        %v4044 = vmax.f32 %v4012, 0.0
        %v4045 = vmax.f32 %v4013, 0.0
        %v4046 = vmax.f32 %v4014, 0.0
        %v4047 = vmax.f32 %v4015, 0.0
        %v4048 = vmax.f32 %v4016, 0.0
        %v4049 = vmax.f32 %v4017, 0.0
        %v4050 = vmax.f32 %v4018, 0.0
        %v4051 = vmax.f32 %v4019, 0.0
        %v4052 = vmax.f32 %v4020, 0.0
        %v4053 = vmax.f32 %v4021, 0.0
        %v4054 = vmax.f32 %v4022, 0.0
        %v4055 = vmax.f32 %v4023, 0.0
        %v4056 = vmax.f32 %v4024, 0.0
        %v4057 = vmax.f32 %v4025, 0.0
        %v4058 = vmax.f32 %v4026, 0.0
        %v4059 = vmax.f32 %v4027, 0.0
        %v4060 = vmax.f32 %v4028, 0.0
        %v4061 = vmax.f32 %v4029, 0.0
        %v4062 = vmax.f32 %v4030, 0.0
        %v4063 = vmax.f32 %v4031, 0.0
        %v4064 = vmax.f32 %v4032, 0.0
        %v4065 = vmax.f32 %v4033, 0.0
        %v4066 = vmax.f32 %v4034, 0.0
        %v4067 = vmax.f32 %v4035, 0.0
        %v4068 = vmax.f32 %v4036, 0.0
        %v4069 = vpack.c.bf16 %v927, %v926
        %v4070 = vpack.c.bf16 %v929, %v928
        %v4071 = vpack.c.bf16 %v931, %v930
        %v4072 = vpack.c.bf16 %v933, %v932
        %v4073 = vpack.c.bf16 %v935, %v934
        %v4074 = vpack.c.bf16 %v937, %v936
        %v4075 = vpack.c.bf16 %v939, %v938
        %v4076 = vpack.c.bf16 %v941, %v940
        %v4077 = vpack.c.bf16 %v943, %v942
        %v4078 = vpack.c.bf16 %v945, %v944
        %v4079 = vpack.c.bf16 %v947, %v946
        %v4080 = vpack.c.bf16 %v949, %v948
        %v4081 = vpack.c.bf16 %v951, %v950
        %v4082 = vpack.c.bf16 %v953, %v952
        %v4083 = vpack.c.bf16 %v955, %v954
        %v4084 = vpack.c.bf16 %v957, %v956
        %v4085 = vld [vmem:[#allocation16] sm:$0xff]
        %v4086 = vld [vmem:[#allocation16 + $0x8] sm:$0xff]
        %v4087 = vld [vmem:[#allocation16 + $0x10] sm:$0xff]
        %v4088 = vld [vmem:[#allocation16 + $0x18] sm:$0xff]
        %v4089 = vld [vmem:[#allocation16 + $0x20] sm:$0xff]
        %v4090 = vld [vmem:[#allocation16 + $0x28] sm:$0xff]
        %v4091 = vld [vmem:[#allocation16 + $0x30] sm:$0xff]
        %v4092 = vld [vmem:[#allocation16 + $0x38] sm:$0xff]
        %v4093 = vld [vmem:[#allocation16 + $0x40] sm:$0xff]
        %v4094 = vld [vmem:[#allocation16 + $0x48] sm:$0xff]
        %v4095 = vld [vmem:[#allocation16 + $0x50] sm:$0xff]
        %v4096 = vld [vmem:[#allocation16 + $0x58] sm:$0xff]
        %v4097 = vld [vmem:[#allocation16 + $0x60] sm:$0xff]
        %v4098 = vld [vmem:[#allocation16 + $0x68] sm:$0xff]
        %v4099 = vld [vmem:[#allocation16 + $0x70] sm:$0xff]
        %v4100 = vld [vmem:[#allocation16 + $0x78] sm:$0xff]
        %v4101 = vpack.c.bf16 %v4038, %v4037
        %v4102 = vpack.c.bf16 %v4040, %v4039
        %v4103 = vpack.c.bf16 %v4042, %v4041
        %v4104 = vpack.c.bf16 %v4044, %v4043
        %v4105 = vpack.c.bf16 %v4046, %v4045
        %v4106 = vpack.c.bf16 %v4048, %v4047
        %v4107 = vpack.c.bf16 %v4050, %v4049
        %v4108 = vpack.c.bf16 %v4052, %v4051
        %v4109 = vpack.c.bf16 %v4054, %v4053
        %v4110 = vpack.c.bf16 %v4056, %v4055
        %v4111 = vpack.c.bf16 %v4058, %v4057
        %v4112 = vpack.c.bf16 %v4060, %v4059
        %v4113 = vpack.c.bf16 %v4062, %v4061
        %v4114 = vpack.c.bf16 %v4064, %v4063
        %v4115 = vpack.c.bf16 %v4066, %v4065
        %v4116 = vpack.c.bf16 %v4068, %v4067
        %v4117 = vld [vmem:[#allocation16 + $0x80] sm:$0xff]
        %v4118 = vld [vmem:[#allocation16 + $0x88] sm:$0xff]
        %v4119 = vld [vmem:[#allocation16 + $0x90] sm:$0xff]
        %v4120 = vld [vmem:[#allocation16 + $0x98] sm:$0xff]
        %v4121 = vld [vmem:[#allocation16 + $0xa0] sm:$0xff]
        %v4122 = vld [vmem:[#allocation16 + $0xa8] sm:$0xff]
        %v4123 = vld [vmem:[#allocation16 + $0xb0] sm:$0xff]
        %v4124 = vld [vmem:[#allocation16 + $0xb8] sm:$0xff]
        %v4125 = vld [vmem:[#allocation16 + $0xc0] sm:$0xff]
        %v4126 = vld [vmem:[#allocation16 + $0xc8] sm:$0xff]
        %v4127 = vld [vmem:[#allocation16 + $0xd0] sm:$0xff]
        %v4128 = vld [vmem:[#allocation16 + $0xd8] sm:$0xff]
        %v4129 = vld [vmem:[#allocation16 + $0xe0] sm:$0xff]
        %v4130 = vld [vmem:[#allocation16 + $0xe8] sm:$0xff]
        %v4131 = vld [vmem:[#allocation16 + $0xf0] sm:$0xff]
        %v4132 = vld [vmem:[#allocation16 + $0xf8] sm:$0xff]
        %v4149 = vunpack.c.l.b16 %v4117
        %v4150 = vunpack.c.h.b16 %v4117
        %v4151 = vunpack.c.l.b16 %v4118
        %v4152 = vunpack.c.h.b16 %v4118
        %v4153 = vunpack.c.l.b16 %v4119
        %v4154 = vunpack.c.h.b16 %v4119
        %v4155 = vunpack.c.l.b16 %v4120
        %v4156 = vunpack.c.h.b16 %v4120
        %v4157 = vunpack.c.l.b16 %v4121
        %v4158 = vunpack.c.h.b16 %v4121
        %v4159 = vunpack.c.l.b16 %v4122
        %v4160 = vunpack.c.h.b16 %v4122
        %v4161 = vunpack.c.l.b16 %v4123
        %v4162 = vunpack.c.h.b16 %v4123
        %v4163 = vunpack.c.l.b16 %v4124
        %v4164 = vunpack.c.h.b16 %v4124
        %v4165 = vunpack.c.l.b16 %v4125
        %v4166 = vunpack.c.h.b16 %v4125
        %v4167 = vunpack.c.l.b16 %v4126
        %v4168 = vunpack.c.h.b16 %v4126
        %v4169 = vunpack.c.l.b16 %v4127
        %v4170 = vunpack.c.h.b16 %v4127
        %v4171 = vunpack.c.l.b16 %v4128
        %v4172 = vunpack.c.h.b16 %v4128
        %v4173 = vunpack.c.l.b16 %v4129
        %v4174 = vunpack.c.h.b16 %v4129
        %v4175 = vunpack.c.l.b16 %v4130
        %v4176 = vunpack.c.h.b16 %v4130
        %v4177 = vunpack.c.l.b16 %v4131
        %v4178 = vunpack.c.h.b16 %v4131
        %v4179 = vunpack.c.l.b16 %v4132
        %v4180 = vunpack.c.h.b16 %v4132
        %v4181 = vpack.c.b16 %v4151, %v4149
        %v4182 = vpack.c.b16 %v4152, %v4150
        %v4183 = vpack.c.b16 %v4155, %v4153
        %v4184 = vpack.c.b16 %v4156, %v4154
        %v4185 = vpack.c.b16 %v4159, %v4157
        %v4186 = vpack.c.b16 %v4160, %v4158
        %v4187 = vpack.c.b16 %v4163, %v4161
        %v4188 = vpack.c.b16 %v4164, %v4162
        %v4189 = vpack.c.b16 %v4167, %v4165
        %v4190 = vpack.c.b16 %v4168, %v4166
        %v4191 = vpack.c.b16 %v4171, %v4169
        %v4192 = vpack.c.b16 %v4172, %v4170
        %v4193 = vpack.c.b16 %v4175, %v4173
        %v4194 = vpack.c.b16 %v4176, %v4174
        %v4195 = vpack.c.b16 %v4179, %v4177
        %v4196 = vpack.c.b16 %v4180, %v4178
        %4213 = vmatpush.bf16.msra.mxu0 %v4195
        %4214 = vmatpush.bf16.msra.mxu0 %v4193
        %4215 = vmatpush.bf16.msra.mxu0 %v4191
        %4216 = vmatpush.bf16.msra.mxu0 %v4189
        %4217 = vmatpush.bf16.msra.mxu0 %v4187
        %4218 = vmatpush.bf16.msra.mxu0 %v4185
        %4219 = vmatpush.bf16.msra.mxu0 %v4183
        %4220 = vmatpush.bf16.msra.mxu0 %v4181
        %4221 = vmatmul.bf16.gmra.mxu0 %v4101
        %v4222 = vpop.f32.mrf.mxu0
        %v4223 = vadd.f32 0.0, %v4222
        %v4224 = vpop.f32.mrf.mxu0
        %v4225 = vadd.f32 0.0, %v4224
        %4226 = vmatmul.bf16.gmra.mxu0 %v4102
        %v4227 = vpop.f32.mrf.mxu0
        %v4228 = vadd.f32 0.0, %v4227
        %v4229 = vpop.f32.mrf.mxu0
        %v4230 = vadd.f32 0.0, %v4229
        %4231 = vmatmul.bf16.gmra.mxu0 %v4103
        %v4232 = vpop.f32.mrf.mxu0
        %v4233 = vadd.f32 0.0, %v4232
        %v4234 = vpop.f32.mrf.mxu0
        %v4235 = vadd.f32 0.0, %v4234
        %4236 = vmatmul.bf16.gmra.mxu0 %v4104
        %v4237 = vpop.f32.mrf.mxu0
        %v4238 = vadd.f32 0.0, %v4237
        %v4239 = vpop.f32.mrf.mxu0
        %v4240 = vadd.f32 0.0, %v4239
        %4241 = vmatmul.bf16.gmra.mxu0 %v4105
        %v4242 = vpop.f32.mrf.mxu0
        %v4243 = vadd.f32 0.0, %v4242
        %v4244 = vpop.f32.mrf.mxu0
        %v4245 = vadd.f32 0.0, %v4244
        %4246 = vmatmul.bf16.gmra.mxu0 %v4106
        %v4247 = vpop.f32.mrf.mxu0
        %v4248 = vadd.f32 0.0, %v4247
        %v4249 = vpop.f32.mrf.mxu0
        %v4250 = vadd.f32 0.0, %v4249
        %4251 = vmatmul.bf16.gmra.mxu0 %v4107
        %v4252 = vpop.f32.mrf.mxu0
        %v4253 = vadd.f32 0.0, %v4252
        %v4254 = vpop.f32.mrf.mxu0
        %v4255 = vadd.f32 0.0, %v4254
        %4256 = vmatmul.bf16.gmra.mxu0 %v4108
        %v4257 = vpop.f32.mrf.mxu0
        %v4258 = vadd.f32 0.0, %v4257
        %v4259 = vpop.f32.mrf.mxu0
        %v4260 = vadd.f32 0.0, %v4259
        %4261 = vmatmul.bf16.gmra.mxu0 %v4109
        %v4262 = vpop.f32.mrf.mxu0
        %v4263 = vadd.f32 0.0, %v4262
        %v4264 = vpop.f32.mrf.mxu0
        %v4265 = vadd.f32 0.0, %v4264
        %4266 = vmatmul.bf16.gmra.mxu0 %v4110
        %v4267 = vpop.f32.mrf.mxu0
        %v4268 = vadd.f32 0.0, %v4267
        %v4269 = vpop.f32.mrf.mxu0
        %v4270 = vadd.f32 0.0, %v4269
        %4271 = vmatmul.bf16.gmra.mxu0 %v4111
        %v4272 = vpop.f32.mrf.mxu0
        %v4273 = vadd.f32 0.0, %v4272
        %v4274 = vpop.f32.mrf.mxu0
        %v4275 = vadd.f32 0.0, %v4274
        %4276 = vmatmul.bf16.gmra.mxu0 %v4112
        %v4277 = vpop.f32.mrf.mxu0
        %v4278 = vadd.f32 0.0, %v4277
        %v4279 = vpop.f32.mrf.mxu0
        %v4280 = vadd.f32 0.0, %v4279
        %4281 = vmatmul.bf16.gmra.mxu0 %v4113
        %v4282 = vpop.f32.mrf.mxu0
        %v4283 = vadd.f32 0.0, %v4282
        %v4284 = vpop.f32.mrf.mxu0
        %v4285 = vadd.f32 0.0, %v4284
        %4286 = vmatmul.bf16.gmra.mxu0 %v4114
        %v4287 = vpop.f32.mrf.mxu0
        %v4288 = vadd.f32 0.0, %v4287
        %v4289 = vpop.f32.mrf.mxu0
        %v4290 = vadd.f32 0.0, %v4289
        %4291 = vmatmul.bf16.gmra.mxu0 %v4115
        %v4292 = vpop.f32.mrf.mxu0
        %v4293 = vadd.f32 0.0, %v4292
        %v4294 = vpop.f32.mrf.mxu0
        %v4295 = vadd.f32 0.0, %v4294
        %4296 = vmatmul.bf16.gmra.mxu0 %v4116
        %v4297 = vpop.f32.mrf.mxu0
        %v4298 = vadd.f32 0.0, %v4297
        %v4299 = vpop.f32.mrf.mxu0
        %v4300 = vadd.f32 0.0, %v4299
        %4301 = vdwg.mxu0
        %4302 = vmatpush.bf16.msra.mxu0 %v4196
        %4303 = vmatpush.bf16.msra.mxu0 %v4194
        %4304 = vmatpush.bf16.msra.mxu0 %v4192
        %4305 = vmatpush.bf16.msra.mxu0 %v4190
        %4306 = vmatpush.bf16.msra.mxu0 %v4188
        %4307 = vmatpush.bf16.msra.mxu0 %v4186
        %4308 = vmatpush.bf16.msra.mxu0 %v4184
        %4309 = vmatpush.bf16.msra.mxu0 %v4182
        %4310 = vmatmul.bf16.gmra.mxu0 %v4101
        %v4311 = vpop.f32.mrf.mxu0
        %v4312 = vadd.f32 0.0, %v4311
        %v4313 = vpop.f32.mrf.mxu0
        %v4314 = vadd.f32 0.0, %v4313
        %4315 = vmatmul.bf16.gmra.mxu0 %v4102
        %v4316 = vpop.f32.mrf.mxu0
        %v4317 = vadd.f32 0.0, %v4316
        %v4318 = vpop.f32.mrf.mxu0
        %v4319 = vadd.f32 0.0, %v4318
        %4320 = vmatmul.bf16.gmra.mxu0 %v4103
        %v4321 = vpop.f32.mrf.mxu0
        %v4322 = vadd.f32 0.0, %v4321
        %v4323 = vpop.f32.mrf.mxu0
        %v4324 = vadd.f32 0.0, %v4323
        %4325 = vmatmul.bf16.gmra.mxu0 %v4104
        %v4326 = vpop.f32.mrf.mxu0
        %v4327 = vadd.f32 0.0, %v4326
        %v4328 = vpop.f32.mrf.mxu0
        %v4329 = vadd.f32 0.0, %v4328
        %4330 = vmatmul.bf16.gmra.mxu0 %v4105
        %v4331 = vpop.f32.mrf.mxu0
        %v4332 = vadd.f32 0.0, %v4331
        %v4333 = vpop.f32.mrf.mxu0
        %v4334 = vadd.f32 0.0, %v4333
        %4335 = vmatmul.bf16.gmra.mxu0 %v4106
        %v4336 = vpop.f32.mrf.mxu0
        %v4337 = vadd.f32 0.0, %v4336
        %v4338 = vpop.f32.mrf.mxu0
        %v4339 = vadd.f32 0.0, %v4338
        %4340 = vmatmul.bf16.gmra.mxu0 %v4107
        %v4341 = vpop.f32.mrf.mxu0
        %v4342 = vadd.f32 0.0, %v4341
        %v4343 = vpop.f32.mrf.mxu0
        %v4344 = vadd.f32 0.0, %v4343
        %4345 = vmatmul.bf16.gmra.mxu0 %v4108
        %v4346 = vpop.f32.mrf.mxu0
        %v4347 = vadd.f32 0.0, %v4346
        %v4348 = vpop.f32.mrf.mxu0
        %v4349 = vadd.f32 0.0, %v4348
        %4350 = vmatmul.bf16.gmra.mxu0 %v4109
        %v4351 = vpop.f32.mrf.mxu0
        %v4352 = vadd.f32 0.0, %v4351
        %v4353 = vpop.f32.mrf.mxu0
        %v4354 = vadd.f32 0.0, %v4353
        %4355 = vmatmul.bf16.gmra.mxu0 %v4110
        %v4356 = vpop.f32.mrf.mxu0
        %v4357 = vadd.f32 0.0, %v4356
        %v4358 = vpop.f32.mrf.mxu0
        %v4359 = vadd.f32 0.0, %v4358
        %4360 = vmatmul.bf16.gmra.mxu0 %v4111
        %v4361 = vpop.f32.mrf.mxu0
        %v4362 = vadd.f32 0.0, %v4361
        %v4363 = vpop.f32.mrf.mxu0
        %v4364 = vadd.f32 0.0, %v4363
        %4365 = vmatmul.bf16.gmra.mxu0 %v4112
        %v4366 = vpop.f32.mrf.mxu0
        %v4367 = vadd.f32 0.0, %v4366
        %v4368 = vpop.f32.mrf.mxu0
        %v4369 = vadd.f32 0.0, %v4368
        %4370 = vmatmul.bf16.gmra.mxu0 %v4113
        %v4371 = vpop.f32.mrf.mxu0
        %v4372 = vadd.f32 0.0, %v4371
        %v4373 = vpop.f32.mrf.mxu0
        %v4374 = vadd.f32 0.0, %v4373
        %4375 = vmatmul.bf16.gmra.mxu0 %v4114
        %v4376 = vpop.f32.mrf.mxu0
        %v4377 = vadd.f32 0.0, %v4376
        %v4378 = vpop.f32.mrf.mxu0
        %v4379 = vadd.f32 0.0, %v4378
        %4380 = vmatmul.bf16.gmra.mxu0 %v4115
        %v4381 = vpop.f32.mrf.mxu0
        %v4382 = vadd.f32 0.0, %v4381
        %v4383 = vpop.f32.mrf.mxu0
        %v4384 = vadd.f32 0.0, %v4383
        %4385 = vmatmul.bf16.gmra.mxu0 %v4116
        %v4386 = vpop.f32.mrf.mxu0
        %v4387 = vadd.f32 0.0, %v4386
        %v4388 = vpop.f32.mrf.mxu0
        %v4389 = vadd.f32 0.0, %v4388
        %4390 = vdwg.mxu0
        %v4407 = vunpack.c.l.b16 %v4085
        %v4408 = vunpack.c.h.b16 %v4085
        %v4409 = vunpack.c.l.b16 %v4086
        %v4410 = vunpack.c.h.b16 %v4086
        %v4411 = vunpack.c.l.b16 %v4087
        %v4412 = vunpack.c.h.b16 %v4087
        %v4413 = vunpack.c.l.b16 %v4088
        %v4414 = vunpack.c.h.b16 %v4088
        %v4415 = vunpack.c.l.b16 %v4089
        %v4416 = vunpack.c.h.b16 %v4089
        %v4417 = vunpack.c.l.b16 %v4090
        %v4418 = vunpack.c.h.b16 %v4090
        %v4419 = vunpack.c.l.b16 %v4091
        %v4420 = vunpack.c.h.b16 %v4091
        %v4421 = vunpack.c.l.b16 %v4092
        %v4422 = vunpack.c.h.b16 %v4092
        %v4423 = vunpack.c.l.b16 %v4093
        %v4424 = vunpack.c.h.b16 %v4093
        %v4425 = vunpack.c.l.b16 %v4094
        %v4426 = vunpack.c.h.b16 %v4094
        %v4427 = vunpack.c.l.b16 %v4095
        %v4428 = vunpack.c.h.b16 %v4095
        %v4429 = vunpack.c.l.b16 %v4096
        %v4430 = vunpack.c.h.b16 %v4096
        %v4431 = vunpack.c.l.b16 %v4097
        %v4432 = vunpack.c.h.b16 %v4097
        %v4433 = vunpack.c.l.b16 %v4098
        %v4434 = vunpack.c.h.b16 %v4098
        %v4435 = vunpack.c.l.b16 %v4099
        %v4436 = vunpack.c.h.b16 %v4099
        %v4437 = vunpack.c.l.b16 %v4100
        %v4438 = vunpack.c.h.b16 %v4100
        %v4439 = vpack.c.b16 %v4409, %v4407
        %v4440 = vpack.c.b16 %v4410, %v4408
        %v4441 = vpack.c.b16 %v4413, %v4411
        %v4442 = vpack.c.b16 %v4414, %v4412
        %v4443 = vpack.c.b16 %v4417, %v4415
        %v4444 = vpack.c.b16 %v4418, %v4416
        %v4445 = vpack.c.b16 %v4421, %v4419
        %v4446 = vpack.c.b16 %v4422, %v4420
        %v4447 = vpack.c.b16 %v4425, %v4423
        %v4448 = vpack.c.b16 %v4426, %v4424
        %v4449 = vpack.c.b16 %v4429, %v4427
        %v4450 = vpack.c.b16 %v4430, %v4428
        %v4451 = vpack.c.b16 %v4433, %v4431
        %v4452 = vpack.c.b16 %v4434, %v4432
        %v4453 = vpack.c.b16 %v4437, %v4435
        %v4454 = vpack.c.b16 %v4438, %v4436
        %4471 = vmatpush.bf16.msra.mxu0 %v4453
        %4472 = vmatpush.bf16.msra.mxu0 %v4451
        %4473 = vmatpush.bf16.msra.mxu0 %v4449
        %4474 = vmatpush.bf16.msra.mxu0 %v4447
        %4475 = vmatpush.bf16.msra.mxu0 %v4445
        %4476 = vmatpush.bf16.msra.mxu0 %v4443
        %4477 = vmatpush.bf16.msra.mxu0 %v4441
        %4478 = vmatpush.bf16.msra.mxu0 %v4439
        %4479 = vmatmul.bf16.gmra.mxu0 %v4069
        %v4480 = vpop.f32.mrf.mxu0
        %v4481 = vadd.f32 %v4223, %v4480
        %v4482 = vpop.f32.mrf.mxu0
        %v4483 = vadd.f32 %v4225, %v4482
        %4484 = vmatmul.bf16.gmra.mxu0 %v4070
        %v4485 = vpop.f32.mrf.mxu0
        %v4486 = vadd.f32 %v4228, %v4485
        %v4487 = vpop.f32.mrf.mxu0
        %v4488 = vadd.f32 %v4230, %v4487
        %4489 = vmatmul.bf16.gmra.mxu0 %v4071
        %v4490 = vpop.f32.mrf.mxu0
        %v4491 = vadd.f32 %v4233, %v4490
        %v4492 = vpop.f32.mrf.mxu0
        %v4493 = vadd.f32 %v4235, %v4492
        %4494 = vmatmul.bf16.gmra.mxu0 %v4072
        %v4495 = vpop.f32.mrf.mxu0
        %v4496 = vadd.f32 %v4238, %v4495
        %v4497 = vpop.f32.mrf.mxu0
        %v4498 = vadd.f32 %v4240, %v4497
        %4499 = vmatmul.bf16.gmra.mxu0 %v4073
        %v4500 = vpop.f32.mrf.mxu0
        %v4501 = vadd.f32 %v4243, %v4500
        %v4502 = vpop.f32.mrf.mxu0
        %v4503 = vadd.f32 %v4245, %v4502
        %4504 = vmatmul.bf16.gmra.mxu0 %v4074
        %v4505 = vpop.f32.mrf.mxu0
        %v4506 = vadd.f32 %v4248, %v4505
        %v4507 = vpop.f32.mrf.mxu0
        %v4508 = vadd.f32 %v4250, %v4507
        %4509 = vmatmul.bf16.gmra.mxu0 %v4075
        %v4510 = vpop.f32.mrf.mxu0
        %v4511 = vadd.f32 %v4253, %v4510
        %v4512 = vpop.f32.mrf.mxu0
        %v4513 = vadd.f32 %v4255, %v4512
        %4514 = vmatmul.bf16.gmra.mxu0 %v4076
        %v4515 = vpop.f32.mrf.mxu0
        %v4516 = vadd.f32 %v4258, %v4515
        %v4517 = vpop.f32.mrf.mxu0
        %v4518 = vadd.f32 %v4260, %v4517
        %4519 = vmatmul.bf16.gmra.mxu0 %v4077
        %v4520 = vpop.f32.mrf.mxu0
        %v4521 = vadd.f32 %v4263, %v4520
        %v4522 = vpop.f32.mrf.mxu0
        %v4523 = vadd.f32 %v4265, %v4522
        %4524 = vmatmul.bf16.gmra.mxu0 %v4078
        %v4525 = vpop.f32.mrf.mxu0
        %v4526 = vadd.f32 %v4268, %v4525
        %v4527 = vpop.f32.mrf.mxu0
        %v4528 = vadd.f32 %v4270, %v4527
        %4529 = vmatmul.bf16.gmra.mxu0 %v4079
        %v4530 = vpop.f32.mrf.mxu0
        %v4531 = vadd.f32 %v4273, %v4530
        %v4532 = vpop.f32.mrf.mxu0
        %v4533 = vadd.f32 %v4275, %v4532
        %4534 = vmatmul.bf16.gmra.mxu0 %v4080
        %v4535 = vpop.f32.mrf.mxu0
        %v4536 = vadd.f32 %v4278, %v4535
        %v4537 = vpop.f32.mrf.mxu0
        %v4538 = vadd.f32 %v4280, %v4537
        %4539 = vmatmul.bf16.gmra.mxu0 %v4081
        %v4540 = vpop.f32.mrf.mxu0
        %v4541 = vadd.f32 %v4283, %v4540
        %v4542 = vpop.f32.mrf.mxu0
        %v4543 = vadd.f32 %v4285, %v4542
        %4544 = vmatmul.bf16.gmra.mxu0 %v4082
        %v4545 = vpop.f32.mrf.mxu0
        %v4546 = vadd.f32 %v4288, %v4545
        %v4547 = vpop.f32.mrf.mxu0
        %v4548 = vadd.f32 %v4290, %v4547
        %4549 = vmatmul.bf16.gmra.mxu0 %v4083
        %v4550 = vpop.f32.mrf.mxu0
        %v4551 = vadd.f32 %v4293, %v4550
        %v4552 = vpop.f32.mrf.mxu0
        %v4553 = vadd.f32 %v4295, %v4552
        %4554 = vmatmul.bf16.gmra.mxu0 %v4084
        %v4555 = vpop.f32.mrf.mxu0
        %v4556 = vadd.f32 %v4298, %v4555
        %v4557 = vpop.f32.mrf.mxu0
        %v4558 = vadd.f32 %v4300, %v4557
        %4559 = vdwg.mxu0
        %4560 = vmatpush.bf16.msra.mxu0 %v4454
        %4561 = vmatpush.bf16.msra.mxu0 %v4452
        %4562 = vmatpush.bf16.msra.mxu0 %v4450
        %4563 = vmatpush.bf16.msra.mxu0 %v4448
        %4564 = vmatpush.bf16.msra.mxu0 %v4446
        %4565 = vmatpush.bf16.msra.mxu0 %v4444
        %4566 = vmatpush.bf16.msra.mxu0 %v4442
        %4567 = vmatpush.bf16.msra.mxu0 %v4440
        %4568 = vmatmul.bf16.gmra.mxu0 %v4069
        %v4569 = vpop.f32.mrf.mxu0
        %v4570 = vadd.f32 %v4312, %v4569
        %v4571 = vpop.f32.mrf.mxu0
        %v4572 = vadd.f32 %v4314, %v4571
        %4573 = vmatmul.bf16.gmra.mxu0 %v4070
        %v4574 = vpop.f32.mrf.mxu0
        %v4575 = vadd.f32 %v4317, %v4574
        %v4576 = vpop.f32.mrf.mxu0
        %v4577 = vadd.f32 %v4319, %v4576
        %4578 = vmatmul.bf16.gmra.mxu0 %v4071
        %v4579 = vpop.f32.mrf.mxu0
        %v4580 = vadd.f32 %v4322, %v4579
        %v4581 = vpop.f32.mrf.mxu0
        %v4582 = vadd.f32 %v4324, %v4581
        %4583 = vmatmul.bf16.gmra.mxu0 %v4072
        %v4584 = vpop.f32.mrf.mxu0
        %v4585 = vadd.f32 %v4327, %v4584
        %v4586 = vpop.f32.mrf.mxu0
        %v4587 = vadd.f32 %v4329, %v4586
        %4588 = vmatmul.bf16.gmra.mxu0 %v4073
        %v4589 = vpop.f32.mrf.mxu0
        %v4590 = vadd.f32 %v4332, %v4589
        %v4591 = vpop.f32.mrf.mxu0
        %v4592 = vadd.f32 %v4334, %v4591
        %4593 = vmatmul.bf16.gmra.mxu0 %v4074
        %v4594 = vpop.f32.mrf.mxu0
        %v4595 = vadd.f32 %v4337, %v4594
        %v4596 = vpop.f32.mrf.mxu0
        %v4597 = vadd.f32 %v4339, %v4596
        %4598 = vmatmul.bf16.gmra.mxu0 %v4075
        %v4599 = vpop.f32.mrf.mxu0
        %v4600 = vadd.f32 %v4342, %v4599
        %v4601 = vpop.f32.mrf.mxu0
        %v4602 = vadd.f32 %v4344, %v4601
        %4603 = vmatmul.bf16.gmra.mxu0 %v4076
        %v4604 = vpop.f32.mrf.mxu0
        %v4605 = vadd.f32 %v4347, %v4604
        %v4606 = vpop.f32.mrf.mxu0
        %v4607 = vadd.f32 %v4349, %v4606
        %4608 = vmatmul.bf16.gmra.mxu0 %v4077
        %v4609 = vpop.f32.mrf.mxu0
        %v4610 = vadd.f32 %v4352, %v4609
        %v4611 = vpop.f32.mrf.mxu0
        %v4612 = vadd.f32 %v4354, %v4611
        %4613 = vmatmul.bf16.gmra.mxu0 %v4078
        %v4614 = vpop.f32.mrf.mxu0
        %v4615 = vadd.f32 %v4357, %v4614
        %v4616 = vpop.f32.mrf.mxu0
        %v4617 = vadd.f32 %v4359, %v4616
        %4618 = vmatmul.bf16.gmra.mxu0 %v4079
        %v4619 = vpop.f32.mrf.mxu0
        %v4620 = vadd.f32 %v4362, %v4619
        %v4621 = vpop.f32.mrf.mxu0
        %v4622 = vadd.f32 %v4364, %v4621
        %4623 = vmatmul.bf16.gmra.mxu0 %v4080
        %v4624 = vpop.f32.mrf.mxu0
        %v4625 = vadd.f32 %v4367, %v4624
        %v4626 = vpop.f32.mrf.mxu0
        %v4627 = vadd.f32 %v4369, %v4626
        %4628 = vmatmul.bf16.gmra.mxu0 %v4081
        %v4629 = vpop.f32.mrf.mxu0
        %v4630 = vadd.f32 %v4372, %v4629
        %v4631 = vpop.f32.mrf.mxu0
        %v4632 = vadd.f32 %v4374, %v4631
        %4633 = vmatmul.bf16.gmra.mxu0 %v4082
        %v4634 = vpop.f32.mrf.mxu0
        %v4635 = vadd.f32 %v4377, %v4634
        %v4636 = vpop.f32.mrf.mxu0
        %v4637 = vadd.f32 %v4379, %v4636
        %4638 = vmatmul.bf16.gmra.mxu0 %v4083
        %v4639 = vpop.f32.mrf.mxu0
        %v4640 = vadd.f32 %v4382, %v4639
        %v4641 = vpop.f32.mrf.mxu0
        %v4642 = vadd.f32 %v4384, %v4641
        %4643 = vmatmul.bf16.gmra.mxu0 %v4084
        %v4644 = vpop.f32.mrf.mxu0
        %v4645 = vadd.f32 %v4387, %v4644
        %v4646 = vpop.f32.mrf.mxu0
        %v4647 = vadd.f32 %v4389, %v4646
        %4648 = vdwg.mxu0
        %v4649 = vld [vmem:[%s10] sm:$0x3]
        %v4651 = vperm.slane %v4649, 0
        %v4652 = vperm.slane %v4649, 1
        %v4655 = vadd.f32 %v4481, %v4651
        %v4656 = vadd.f32 %v4570, %v4652
        %v4657 = vadd.f32 %v4483, %v4651
        %v4658 = vadd.f32 %v4572, %v4652
        %v4659 = vadd.f32 %v4486, %v4651
        %v4660 = vadd.f32 %v4575, %v4652
        %v4661 = vadd.f32 %v4488, %v4651
        %v4662 = vadd.f32 %v4577, %v4652
        %v4663 = vadd.f32 %v4491, %v4651
        %v4664 = vadd.f32 %v4580, %v4652
        %v4665 = vadd.f32 %v4493, %v4651
        %v4666 = vadd.f32 %v4582, %v4652
        %v4667 = vadd.f32 %v4496, %v4651
        %v4668 = vadd.f32 %v4585, %v4652
        %v4669 = vadd.f32 %v4498, %v4651
        %v4670 = vadd.f32 %v4587, %v4652
        %v4671 = vadd.f32 %v4501, %v4651
        %v4672 = vadd.f32 %v4590, %v4652
        %v4673 = vadd.f32 %v4503, %v4651
        %v4674 = vadd.f32 %v4592, %v4652
        %v4675 = vadd.f32 %v4506, %v4651
        %v4676 = vadd.f32 %v4595, %v4652
        %v4677 = vadd.f32 %v4508, %v4651
        %v4678 = vadd.f32 %v4597, %v4652
        %v4679 = vadd.f32 %v4511, %v4651
        %v4680 = vadd.f32 %v4600, %v4652
        %v4681 = vadd.f32 %v4513, %v4651
        %v4682 = vadd.f32 %v4602, %v4652
        %v4683 = vadd.f32 %v4516, %v4651
        %v4684 = vadd.f32 %v4605, %v4652
        %v4685 = vadd.f32 %v4518, %v4651
        %v4686 = vadd.f32 %v4607, %v4652
        %v4687 = vadd.f32 %v4521, %v4651
        %v4688 = vadd.f32 %v4610, %v4652
        %v4689 = vadd.f32 %v4523, %v4651
        %v4690 = vadd.f32 %v4612, %v4652
        %v4691 = vadd.f32 %v4526, %v4651
        %v4692 = vadd.f32 %v4615, %v4652
        %v4693 = vadd.f32 %v4528, %v4651
        %v4694 = vadd.f32 %v4617, %v4652
        %v4695 = vadd.f32 %v4531, %v4651
        %v4696 = vadd.f32 %v4620, %v4652
        %v4697 = vadd.f32 %v4533, %v4651
        %v4698 = vadd.f32 %v4622, %v4652
        %v4699 = vadd.f32 %v4536, %v4651
        %v4700 = vadd.f32 %v4625, %v4652
        %v4701 = vadd.f32 %v4538, %v4651
        %v4702 = vadd.f32 %v4627, %v4652
        %v4703 = vadd.f32 %v4541, %v4651
        %v4704 = vadd.f32 %v4630, %v4652
        %v4705 = vadd.f32 %v4543, %v4651
        %v4706 = vadd.f32 %v4632, %v4652
        %v4707 = vadd.f32 %v4546, %v4651
        %v4708 = vadd.f32 %v4635, %v4652
        %v4709 = vadd.f32 %v4548, %v4651
        %v4710 = vadd.f32 %v4637, %v4652
        %v4711 = vadd.f32 %v4551, %v4651
        %v4712 = vadd.f32 %v4640, %v4652
        %v4713 = vadd.f32 %v4553, %v4651
        %v4714 = vadd.f32 %v4642, %v4652
        %v4715 = vadd.f32 %v4556, %v4651
        %v4716 = vadd.f32 %v4645, %v4652
        %v4717 = vadd.f32 %v4558, %v4651
        %v4718 = vadd.f32 %v4647, %v4652
        %v4719 = vmul.f32 %v4655, 0.5
        %v4720 = vmul.f32 %v4656, 0.5
        %v4721 = vmul.f32 %v4657, 0.5
        %v4722 = vmul.f32 %v4658, 0.5
        %v4723 = vmul.f32 %v4659, 0.5
        %v4724 = vmul.f32 %v4660, 0.5
        %v4725 = vmul.f32 %v4661, 0.5
        %v4726 = vmul.f32 %v4662, 0.5
        %v4727 = vmul.f32 %v4663, 0.5
        %v4728 = vmul.f32 %v4664, 0.5
        %v4729 = vmul.f32 %v4665, 0.5
        %v4730 = vmul.f32 %v4666, 0.5
        %v4731 = vmul.f32 %v4667, 0.5
        %v4732 = vmul.f32 %v4668, 0.5
        %v4733 = vmul.f32 %v4669, 0.5
        %v4734 = vmul.f32 %v4670, 0.5
        %v4735 = vmul.f32 %v4671, 0.5
        %v4736 = vmul.f32 %v4672, 0.5
        %v4737 = vmul.f32 %v4673, 0.5
        %v4738 = vmul.f32 %v4674, 0.5
        %v4739 = vmul.f32 %v4675, 0.5
        %v4740 = vmul.f32 %v4676, 0.5
        %v4741 = vmul.f32 %v4677, 0.5
        %v4742 = vmul.f32 %v4678, 0.5
        %v4743 = vmul.f32 %v4679, 0.5
        %v4744 = vmul.f32 %v4680, 0.5
        %v4745 = vmul.f32 %v4681, 0.5
        %v4746 = vmul.f32 %v4682, 0.5
        %v4747 = vmul.f32 %v4683, 0.5
        %v4748 = vmul.f32 %v4684, 0.5
        %v4749 = vmul.f32 %v4685, 0.5
        %v4750 = vmul.f32 %v4686, 0.5
        %v4751 = vmul.f32 %v4687, 0.5
        %v4752 = vmul.f32 %v4688, 0.5
        %v4753 = vmul.f32 %v4689, 0.5
        %v4754 = vmul.f32 %v4690, 0.5
        %v4755 = vmul.f32 %v4691, 0.5
        %v4756 = vmul.f32 %v4692, 0.5
        %v4757 = vmul.f32 %v4693, 0.5
        %v4758 = vmul.f32 %v4694, 0.5
        %v4759 = vmul.f32 %v4695, 0.5
        %v4760 = vmul.f32 %v4696, 0.5
        %v4761 = vmul.f32 %v4697, 0.5
        %v4762 = vmul.f32 %v4698, 0.5
        %v4763 = vmul.f32 %v4699, 0.5
        %v4764 = vmul.f32 %v4700, 0.5
        %v4765 = vmul.f32 %v4701, 0.5
        %v4766 = vmul.f32 %v4702, 0.5
        %v4767 = vmul.f32 %v4703, 0.5
        %v4768 = vmul.f32 %v4704, 0.5
        %v4769 = vmul.f32 %v4705, 0.5
        %v4770 = vmul.f32 %v4706, 0.5
        %v4771 = vmul.f32 %v4707, 0.5
        %v4772 = vmul.f32 %v4708, 0.5
        %v4773 = vmul.f32 %v4709, 0.5
        %v4774 = vmul.f32 %v4710, 0.5
        %v4775 = vmul.f32 %v4711, 0.5
        %v4776 = vmul.f32 %v4712, 0.5
        %v4777 = vmul.f32 %v4713, 0.5
        %v4778 = vmul.f32 %v4714, 0.5
        %v4779 = vmul.f32 %v4715, 0.5
        %v4780 = vmul.f32 %v4716, 0.5
        %v4781 = vmul.f32 %v4717, 0.5
        %v4782 = vmul.f32 %v4718, 0.5
        %v4783 = vmax.f32 %v4719, 0.0
        %v4784 = vmax.f32 %v4720, 0.0
        %v4785 = vmax.f32 %v4721, 0.0
        %v4786 = vmax.f32 %v4722, 0.0
        %v4787 = vmax.f32 %v4723, 0.0
        %v4788 = vmax.f32 %v4724, 0.0
        %v4789 = vmax.f32 %v4725, 0.0
        %v4790 = vmax.f32 %v4726, 0.0
        %v4791 = vmax.f32 %v4727, 0.0
        %v4792 = vmax.f32 %v4728, 0.0
        %v4793 = vmax.f32 %v4729, 0.0
        %v4794 = vmax.f32 %v4730, 0.0
        %v4795 = vmax.f32 %v4731, 0.0
        %v4796 = vmax.f32 %v4732, 0.0
        %v4797 = vmax.f32 %v4733, 0.0
        %v4798 = vmax.f32 %v4734, 0.0
        %v4799 = vmax.f32 %v4735, 0.0
        %v4800 = vmax.f32 %v4736, 0.0
        %v4801 = vmax.f32 %v4737, 0.0
        %v4802 = vmax.f32 %v4738, 0.0
        %v4803 = vmax.f32 %v4739, 0.0
        %v4804 = vmax.f32 %v4740, 0.0
        %v4805 = vmax.f32 %v4741, 0.0
        %v4806 = vmax.f32 %v4742, 0.0
        %v4807 = vmax.f32 %v4743, 0.0
        %v4808 = vmax.f32 %v4744, 0.0
        %v4809 = vmax.f32 %v4745, 0.0
        %v4810 = vmax.f32 %v4746, 0.0
        %v4811 = vmax.f32 %v4747, 0.0
        %v4812 = vmax.f32 %v4748, 0.0
        %v4813 = vmax.f32 %v4749, 0.0
        %v4814 = vmax.f32 %v4750, 0.0
        %v4815 = vmax.f32 %v4751, 0.0
        %v4816 = vmax.f32 %v4752, 0.0
        %v4817 = vmax.f32 %v4753, 0.0
        %v4818 = vmax.f32 %v4754, 0.0
        %v4819 = vmax.f32 %v4755, 0.0
        %v4820 = vmax.f32 %v4756, 0.0
        %v4821 = vmax.f32 %v4757, 0.0
        %v4822 = vmax.f32 %v4758, 0.0
        %v4823 = vmax.f32 %v4759, 0.0
        %v4824 = vmax.f32 %v4760, 0.0
        %v4825 = vmax.f32 %v4761, 0.0
        %v4826 = vmax.f32 %v4762, 0.0
        %v4827 = vmax.f32 %v4763, 0.0
        %v4828 = vmax.f32 %v4764, 0.0
        %v4829 = vmax.f32 %v4765, 0.0
        %v4830 = vmax.f32 %v4766, 0.0
        %v4831 = vmax.f32 %v4767, 0.0
        %v4832 = vmax.f32 %v4768, 0.0
        %v4833 = vmax.f32 %v4769, 0.0
        %v4834 = vmax.f32 %v4770, 0.0
        %v4835 = vmax.f32 %v4771, 0.0
        %v4836 = vmax.f32 %v4772, 0.0
        %v4837 = vmax.f32 %v4773, 0.0
        %v4838 = vmax.f32 %v4774, 0.0
        %v4839 = vmax.f32 %v4775, 0.0
        %v4840 = vmax.f32 %v4776, 0.0
        %v4841 = vmax.f32 %v4777, 0.0
        %v4842 = vmax.f32 %v4778, 0.0
        %v4843 = vmax.f32 %v4779, 0.0
        %v4844 = vmax.f32 %v4780, 0.0
        %v4845 = vmax.f32 %v4781, 0.0
        %v4846 = vmax.f32 %v4782, 0.0
        %4847 = vst [vmem:[%s518] sm:$0xff] %v4783
        %4848 = vst [vmem:[%s518 + $0x8] sm:$0xff] %v4784
        %4849 = vst [vmem:[%s518 + $0x10] sm:$0xff] %v4785
        %4850 = vst [vmem:[%s518 + $0x18] sm:$0xff] %v4786
        %4851 = vst [vmem:[%s518 + $0x20] sm:$0xff] %v4787
        %4852 = vst [vmem:[%s518 + $0x28] sm:$0xff] %v4788
        %4853 = vst [vmem:[%s518 + $0x30] sm:$0xff] %v4789
        %4854 = vst [vmem:[%s518 + $0x38] sm:$0xff] %v4790
        %4855 = vst [vmem:[%s518 + $0x40] sm:$0xff] %v4791
        %4856 = vst [vmem:[%s518 + $0x48] sm:$0xff] %v4792
        %4857 = vst [vmem:[%s518 + $0x50] sm:$0xff] %v4793
        %4858 = vst [vmem:[%s518 + $0x58] sm:$0xff] %v4794
        %4859 = vst [vmem:[%s518 + $0x60] sm:$0xff] %v4795
        %4860 = vst [vmem:[%s518 + $0x68] sm:$0xff] %v4796
        %4861 = vst [vmem:[%s518 + $0x70] sm:$0xff] %v4797
        %4862 = vst [vmem:[%s518 + $0x78] sm:$0xff] %v4798
        %4863 = vst [vmem:[%s518 + $0x80] sm:$0xff] %v4799
        %4864 = vst [vmem:[%s518 + $0x88] sm:$0xff] %v4800
        %4865 = vst [vmem:[%s518 + $0x90] sm:$0xff] %v4801
        %4866 = vst [vmem:[%s518 + $0x98] sm:$0xff] %v4802
        %4867 = vst [vmem:[%s518 + $0xa0] sm:$0xff] %v4803
        %4868 = vst [vmem:[%s518 + $0xa8] sm:$0xff] %v4804
        %4869 = vst [vmem:[%s518 + $0xb0] sm:$0xff] %v4805
        %4870 = vst [vmem:[%s518 + $0xb8] sm:$0xff] %v4806
        %4871 = vst [vmem:[%s518 + $0xc0] sm:$0xff] %v4807
        %4872 = vst [vmem:[%s518 + $0xc8] sm:$0xff] %v4808
        %4873 = vst [vmem:[%s518 + $0xd0] sm:$0xff] %v4809
        %4874 = vst [vmem:[%s518 + $0xd8] sm:$0xff] %v4810
        %4875 = vst [vmem:[%s518 + $0xe0] sm:$0xff] %v4811
        %4876 = vst [vmem:[%s518 + $0xe8] sm:$0xff] %v4812
        %4877 = vst [vmem:[%s518 + $0xf0] sm:$0xff] %v4813
        %4878 = vst [vmem:[%s518 + $0xf8] sm:$0xff] %v4814
        %4879 = vst [vmem:[%s518 + $0x100] sm:$0xff] %v4815
        %4880 = vst [vmem:[%s518 + $0x108] sm:$0xff] %v4816
        %4881 = vst [vmem:[%s518 + $0x110] sm:$0xff] %v4817
        %4882 = vst [vmem:[%s518 + $0x118] sm:$0xff] %v4818
        %4883 = vst [vmem:[%s518 + $0x120] sm:$0xff] %v4819
        %4884 = vst [vmem:[%s518 + $0x128] sm:$0xff] %v4820
        %4885 = vst [vmem:[%s518 + $0x130] sm:$0xff] %v4821
        %4886 = vst [vmem:[%s518 + $0x138] sm:$0xff] %v4822
        %4887 = vst [vmem:[%s518 + $0x140] sm:$0xff] %v4823
        %4888 = vst [vmem:[%s518 + $0x148] sm:$0xff] %v4824
        %4889 = vst [vmem:[%s518 + $0x150] sm:$0xff] %v4825
        %4890 = vst [vmem:[%s518 + $0x158] sm:$0xff] %v4826
        %4891 = vst [vmem:[%s518 + $0x160] sm:$0xff] %v4827
        %4892 = vst [vmem:[%s518 + $0x168] sm:$0xff] %v4828
        %4893 = vst [vmem:[%s518 + $0x170] sm:$0xff] %v4829
        %4894 = vst [vmem:[%s518 + $0x178] sm:$0xff] %v4830
        %4895 = vst [vmem:[%s518 + $0x180] sm:$0xff] %v4831
        %4896 = vst [vmem:[%s518 + $0x188] sm:$0xff] %v4832
        %4897 = vst [vmem:[%s518 + $0x190] sm:$0xff] %v4833
        %4898 = vst [vmem:[%s518 + $0x198] sm:$0xff] %v4834
        %4899 = vst [vmem:[%s518 + $0x1a0] sm:$0xff] %v4835
        %4900 = vst [vmem:[%s518 + $0x1a8] sm:$0xff] %v4836
        %4901 = vst [vmem:[%s518 + $0x1b0] sm:$0xff] %v4837
        %4902 = vst [vmem:[%s518 + $0x1b8] sm:$0xff] %v4838
        %4903 = vst [vmem:[%s518 + $0x1c0] sm:$0xff] %v4839
        %4904 = vst [vmem:[%s518 + $0x1c8] sm:$0xff] %v4840
        %4905 = vst [vmem:[%s518 + $0x1d0] sm:$0xff] %v4841
        %4906 = vst [vmem:[%s518 + $0x1d8] sm:$0xff] %v4842
        %4907 = vst [vmem:[%s518 + $0x1e0] sm:$0xff] %v4843
        %4908 = vst [vmem:[%s518 + $0x1e8] sm:$0xff] %v4844
        %4909 = vst [vmem:[%s518 + $0x1f0] sm:$0xff] %v4845
        %4910 = vst [vmem:[%s518 + $0x1f8] sm:$0xff] %v4846
        %s4911 = sand.u32 %s276, 1
        %s4912 = scalar_lea.sflag [#allocation6], %s4911
        %s4913 = sand.u32 %s276, 1
        %s4914 = smul.addr %s4913, 512
        %s4915 = scalar_lea.vmem [#allocation18], %s4914
        // Predicated region
        $region97: #{resnetk_block_forward.1} parent=63 // pred_check
          %p4916 = pneg %p286
        $region98: #{resnetk_block_forward.1} parent=63 // pred_check_branch
          %4918 = sbr.rel (%p4916) target = $region100
        $region99: #{resnetk_block_forward.1} parent=63 // pred_region
          %4920 = vsyncadd %s4912, 0
          %s4921 = smul.addr %s32, 64
          %s4922 = smul.addr %s4921, 8
          %s4923 = scalar_lea.hbm %s11, %s4922
          %s4924 = sshll.u32 %s4915, 4
          %s4925 = int_to_ptr.vmem [resolvable:$true] %s4924
          %s4926 = sshll.u32 %s4923, 4
          %s4927 = int_to_ptr.hbm [resolvable:$true] %s4926
          %4932 = dma.vmem_to_hbm [thread:$0]  %s4925, 8192, %s4927, %s4912, 256, 256, 16
        $region100: #{resnetk_block_forward.1} parent=63 // pred_fallthru
          _
      $region64: #{resnetk_block_forward.1} parent=5 // pred_fallthru
        _
      %p4933 = scmp.le.s32.totalorder 2, %s27
      // Predicated region
      $region101: #{resnetk_block_forward.1} parent=5 // pred_check
        %p4934 = pneg %p4933
      $region102: #{resnetk_block_forward.1} parent=5 // pred_check_branch
        %4936 = sbr.rel (%p4934) target = $region104
      $region103: #{resnetk_block_forward.1} parent=5 // pred_region
        %s4937 = ssub.s32 %s27, 2
        // Predicated region
        $region105: #{resnetk_block_forward.1} parent=103 // pred_check
          %p4938 = pneg %p292
        $region106: #{resnetk_block_forward.1} parent=103 // pred_check_branch
          %4940 = sbr.rel (%p4938) target = $region108
        $region107: #{resnetk_block_forward.1} parent=103 // pred_region
          %s4941 = sand.u32 %s277, 1
          %s4942 = scalar_lea.sflag [#allocation6], %s4941
          %s4943 = sand.u32 %s277, 1
          %s4944 = smul.addr %s4943, 512
          %s4945 = scalar_lea.vmem [#allocation18], %s4944
          %4947 = dma.done %s4942, 8192
        $region108: #{resnetk_block_forward.1} parent=103 // pred_fallthru
          _
      $region104: #{resnetk_block_forward.1} parent=5 // pred_fallthru
        _
    $region6: #{resnetk_block_forward.1} parent=1 // loop_footer
      %s31 = sadd.s32 1, %s27
    $region7: #{resnetk_block_forward.1} parent=1 // loop_footer_branch
      %26 = sbr.rel target = $region3
    $region8: #{resnetk_block_forward.1} parent=1 // loop_exit
      _
    %4948 = vsyncpa [#allocation5], 1
    %s4949 = scalar_lea.sflag [#allocation5], 1
    %4950 = vsyncpa %s4949, 1
    %4951 = vsyncpa [#allocation8], 1
    %4952 = vsyncpa [#allocation11], 1
    %4953 = vsyncpa [#allocation14], 1
    %4954 = vsyncpa [#allocation17], 1
    %4955 = vsyncpa [#allocation6], 1
    %s4956 = scalar_lea.sflag [#allocation6], 1
    %4957 = vsyncpa %s4956, 1

</llo_original>
